<compile_context>
chip_gen: v5e
topology: v5e:2x2
jax: 0.10.0
libtpu: 0.0.40
codegen_flags: <defaults>
</compile_context>

<pallas_src>
import math
import functools

import jax
import jax.numpy as jnp
from jax.experimental import pallas as pl
from jax.experimental.pallas import tpu as pltpu

LANE = 128


def _decoder_block_kernel(
    x_ref,        # (N, d_model)            f32  -- one sequence (current grid step)
    wqkv_ref,     # (d_model, 3*H*hd_pad)   bf16 head-major, lane-padded, pre-transposed
    bqkv_ref,     # (1, 3*H*hd_pad)         f32
    wout_ref,     # (H*hd_pad, d_model)     bf16 per-head row blocks, pre-transposed
    bout_ref,     # (1, d_model)            f32
    g1_ref,       # (1, d_model)            f32  LayerNorm1 gamma
    be1_ref,      # (1, d_model)            f32  LayerNorm1 beta
    w1_ref,       # (d_model, ff_hidden)    bf16 pre-transposed
    b1_ref,       # (1, ff_hidden)          f32
    w2_ref,       # (ff_hidden, d_model)    bf16 pre-transposed
    b2_ref,       # (1, d_model)            f32
    g2_ref,       # (1, d_model)            f32  LayerNorm2 gamma
    be2_ref,      # (1, d_model)            f32  LayerNorm2 beta
    o_ref,        # (N, d_model)            f32
    *,
    num_heads: int,
    head_dim: int,
    hd_pad: int,
    eps: float,
):
    x_f32 = x_ref[...].astype(jnp.float32)     # residual path stays f32
    x_bf = x_f32.astype(jnp.bfloat16)          # MXU operand

    # ---- fused QKV projection (bf16 MXU, f32 accumulate) ----
    qkv = jnp.dot(x_bf, wqkv_ref[...],
                  preferred_element_type=jnp.float32) + bqkv_ref[...]

    # ---- multi-head self attention; output projection fused into the head loop ----
    scale = 1.0 / math.sqrt(head_dim)
    attn = jnp.zeros_like(x_f32)               # (N, d_model) f32 accumulator
    # TODO(synk): for long sequences, tile the KV axis with an online (flash-style)
    # softmax instead of materializing the full (N, N) score matrix per head.
    for h in range(num_heads):                 # H is small -> short static unroll
        # lane-aligned per-head slices (hd_pad is a multiple of 128) -> free views
        q = qkv[:, (0 * num_heads + h) * hd_pad:(0 * num_heads + h + 1) * hd_pad]
        k = qkv[:, (1 * num_heads + h) * hd_pad:(1 * num_heads + h + 1) * hd_pad]
        v = qkv[:, (2 * num_heads + h) * hd_pad:(2 * num_heads + h + 1) * hd_pad]

        q_bf = (q * scale).astype(jnp.bfloat16)
        k_bf = k.astype(jnp.bfloat16)
        # q @ k^T with the transpose folded into the matmul operand (no XLU transpose)
        s = jax.lax.dot_general(q_bf, k_bf, (((1,), (1,)), ((), ())),
                                preferred_element_type=jnp.float32)      # (N, N)

        # numerically stable softmax; divide goes to the EUP
        s_max = jnp.max(s, axis=-1, keepdims=True)
        p = jnp.exp(s - s_max)
        p_sum = jnp.sum(p, axis=-1, keepdims=True)
        p = p * pl.reciprocal(p_sum, approx=True)

        head_out = jnp.dot(p.astype(jnp.bfloat16), v.astype(jnp.bfloat16),
                           preferred_element_type=jnp.float32)           # (N, hd_pad)

        # fused output projection: lane-dense (N, d_model) accumulation per head;
        # padded rows of wout are zero, so the extra hd_pad columns are harmless.
        attn = attn + jnp.dot(head_out.astype(jnp.bfloat16),
                              wout_ref[h * hd_pad:(h + 1) * hd_pad, :],
                              preferred_element_type=jnp.float32)
    attn = attn + bout_ref[...]

    # ---- residual + LayerNorm1 (f32 statistics) ----
    h1 = x_f32 + attn
    mu1 = jnp.mean(h1, axis=-1, keepdims=True)
    c1 = h1 - mu1
    var1 = jnp.mean(c1 * c1, axis=-1, keepdims=True)
    h1n = c1 * jax.lax.rsqrt(var1 + eps) * g1_ref[...] + be1_ref[...]

    # ---- FFN: Linear -> ReLU -> Linear (bf16 MXU, f32 accumulate) ----
    # TODO(synk): nn.Dropout is the identity in eval mode; train-mode stochastic
    # masking would need pltpu.prng_seed / pltpu.prng_random_bits.
    hid = jnp.dot(h1n.astype(jnp.bfloat16), w1_ref[...],
                  preferred_element_type=jnp.float32) + b1_ref[...]
    hid = jnp.maximum(hid, 0.0)
    ffn = jnp.dot(hid.astype(jnp.bfloat16), w2_ref[...],
                  preferred_element_type=jnp.float32) + b2_ref[...]

    # ---- residual + LayerNorm2 ----
    h2 = h1n + ffn
    mu2 = jnp.mean(h2, axis=-1, keepdims=True)
    c2 = h2 - mu2
    var2 = jnp.mean(c2 * c2, axis=-1, keepdims=True)
    out = c2 * jax.lax.rsqrt(var2 + eps) * g2_ref[...] + be2_ref[...]

    o_ref[...] = out.astype(o_ref.dtype)


def decoder_block_pallas(x, params, *, num_heads: int, eps: float = 1e-5):
    """x: (B, N, d_model). params: dict of PyTorch-layout weights/biases."""
    B, N, d_model = x.shape
    assert d_model % num_heads == 0
    assert d_model % LANE == 0, "d_model must be a multiple of 128 (lane width)"
    assert N % 8 == 0, "sequence length must be a multiple of 8 (sublane tiling)"
    head_dim = d_model // num_heads
    ff_hidden = params["w_ff1"].shape[0]
    # Pad head_dim up to a lane multiple so per-head qkv slices are lane-aligned.
    hd_pad = ((head_dim + LANE - 1) // LANE) * LANE

    f32, bf16 = jnp.float32, jnp.bfloat16

    # ---- wrapper-side layout plumbing (one-time) ----
    # Fused QKV weight -> head-major, lane-padded, pre-transposed (in, out), bf16.
    wqkv = params["w_qkv"].astype(f32).reshape(3, num_heads, head_dim, d_model)
    wqkv_pad = jnp.zeros((3, num_heads, hd_pad, d_model), f32)
    wqkv_pad = wqkv_pad.at[:, :, :head_dim, :].set(wqkv)
    wqkv_t = wqkv_pad.reshape(3 * num_heads * hd_pad, d_model).T.astype(bf16)

    bqkv = params["b_qkv"].astype(f32).reshape(3, num_heads, head_dim)
    bqkv_pad = jnp.zeros((3, num_heads, hd_pad), f32).at[:, :, :head_dim].set(bqkv)
    bqkv_row = bqkv_pad.reshape(1, 3 * num_heads * hd_pad)

    # Output projection -> (in, out) with per-head row blocks padded to hd_pad, bf16.
    wout_t = params["w_out"].astype(f32).T.reshape(num_heads, head_dim, d_model)
    wout_pad = jnp.zeros((num_heads, hd_pad, d_model), f32)
    wout_pad = wout_pad.at[:, :head_dim, :].set(wout_t)
    wout_rows = wout_pad.reshape(num_heads * hd_pad, d_model).astype(bf16)

    w1_t = params["w_ff1"].astype(f32).T.astype(bf16)   # (d_model, ff_hidden)
    w2_t = params["w_ff2"].astype(f32).T.astype(bf16)   # (ff_hidden, d_model)

    bout = params["b_out"].astype(f32).reshape(1, d_model)
    b1 = params["b_ff1"].astype(f32).reshape(1, ff_hidden)
    b2 = params["b_ff2"].astype(f32).reshape(1, d_model)
    g1 = params["ln1_gamma"].astype(f32).reshape(1, d_model)
    be1 = params["ln1_beta"].astype(f32).reshape(1, d_model)
    g2 = params["ln2_gamma"].astype(f32).reshape(1, d_model)
    be2 = params["ln2_beta"].astype(f32).reshape(1, d_model)

    x2d = x.reshape(B * N, d_model)

    kernel = functools.partial(
        _decoder_block_kernel,
        num_heads=num_heads, head_dim=head_dim, hd_pad=hd_pad, eps=eps)

    # Resident (VMEM-pinned) spec: full-array block with a constant index_map.
    def resident(a):
        return pl.BlockSpec(a.shape, lambda b: (0,) * a.ndim)

    weight_args = (wqkv_t, bqkv_row, wout_rows, bout, g1, be1,
                   w1_t, b1, w2_t, b2, g2, be2)

    # VMEM budget: resident weights (double-buffer worst case) + pipelined x/out
    # tiles + per-step intermediates; clamped to [32 MiB, 64 MiB] (v7x physical).
    resident_bytes = sum(int(a.size) * a.dtype.itemsize for a in weight_args)
    tile_bytes = 2 * 2 * N * d_model * 4
    interm_bytes = 4 * N * (3 * num_heads * hd_pad + ff_hidden
                            + 8 * d_model + 4 * N + 2 * hd_pad)
    vmem_limit = int(min(max(2 * resident_bytes + tile_bytes + 4 * interm_bytes,
                             32 << 20), 64 << 20))

    out2d = pl.pallas_call(
        kernel,
        out_shape=jax.ShapeDtypeStruct((B * N, d_model), x.dtype),
        grid=(B,),                                     # one sequence per grid step
        in_specs=[pl.BlockSpec((N, d_model), lambda b: (b, 0))]
                 + [resident(a) for a in weight_args],
        out_specs=pl.BlockSpec((N, d_model), lambda b: (b, 0)),
        input_output_aliases={0: 0},                   # reuse x's HBM rows for out
        compiler_params=pltpu.CompilerParams(
            dimension_semantics=("parallel",),         # shard batch across TCs (v7x)
            vmem_limit_bytes=vmem_limit),
    )(x2d, *weight_args)

    return out2d.reshape(B, N, d_model)


def decoder_block_reference(x, params, *, num_heads: int, eps: float = 1e-5):
    """Pure-JAX (f32) mirror of the PyTorch DecoderBlock forward (eval mode)."""
    B, N, d_model = x.shape
    head_dim = d_model // num_heads

    qkv = x @ params["w_qkv"].T + params["b_qkv"]                        # (B,N,3d)
    qkv = qkv.reshape(B, N, 3, num_heads, head_dim).transpose(2, 0, 3, 1, 4)
    q, k, v = qkv[0], qkv[1], qkv[2]                                     # (B,H,N,hd)
    scores = jnp.einsum('bhnd,bhmd->bhnm', q, k) / math.sqrt(head_dim)
    weights = jax.nn.softmax(scores, axis=-1)
    attn = jnp.einsum('bhnm,bhmd->bhnd', weights, v)
    attn = attn.transpose(0, 2, 1, 3).reshape(B, N, d_model)
    attn = attn @ params["w_out"].T + params["b_out"]

    def layer_norm(z, gamma, beta):
        mu = jnp.mean(z, axis=-1, keepdims=True)
        var = jnp.mean((z - mu) ** 2, axis=-1, keepdims=True)
        return (z - mu) * jax.lax.rsqrt(var + eps) * gamma + beta

    h1 = layer_norm(x + attn, params["ln1_gamma"], params["ln1_beta"])
    ffn = jnp.maximum(h1 @ params["w_ff1"].T + params["b_ff1"], 0.0)
    ffn = ffn @ params["w_ff2"].T + params["b_ff2"]
    return layer_norm(h1 + ffn, params["ln2_gamma"], params["ln2_beta"])


if __name__ == "__main__":
    # Small shapes consistent with the module (real module: d_model=768, H=8, ff=2048).
    B, N = 2, 8
    d_model, num_heads, ff_hidden = 128, 8, 256

    key = jax.random.PRNGKey(0)
    keys = jax.random.split(key, 13)

    def uniform(k, shape, fan_in):
        bound = 1.0 / math.sqrt(fan_in)
        return jax.random.uniform(k, shape, minval=-bound, maxval=bound,
                                  dtype=jnp.float32)

    x = jax.random.normal(keys[0], (B, N, d_model), dtype=jnp.float32)

    params = {
        # PyTorch Linear layout: weight (out_features, in_features)
        "w_qkv": uniform(keys[1], (3 * d_model, d_model), d_model),
        "b_qkv": uniform(keys[2], (3 * d_model,), d_model),
        "w_out": uniform(keys[3], (d_model, d_model), d_model),
        "b_out": uniform(keys[4], (d_model,), d_model),
        "w_ff1": uniform(keys[5], (ff_hidden, d_model), d_model),
        "b_ff1": uniform(keys[6], (ff_hidden,), d_model),
        "w_ff2": uniform(keys[7], (d_model, ff_hidden), ff_hidden),
        "b_ff2": uniform(keys[8], (d_model,), ff_hidden),
        # LayerNorm params perturbed from 1/0 to exercise scale/shift
        "ln1_gamma": 1.0 + 0.1 * jax.random.normal(keys[9], (d_model,), jnp.float32),
        "ln1_beta": 0.1 * jax.random.normal(keys[10], (d_model,), jnp.float32),
        "ln2_gamma": 1.0 + 0.1 * jax.random.normal(keys[11], (d_model,), jnp.float32),
        "ln2_beta": 0.1 * jax.random.normal(keys[12], (d_model,), jnp.float32),
    }

    run = jax.jit(functools.partial(decoder_block_pallas, num_heads=num_heads))
    out = jax.block_until_ready(run(x, params))

    ref = decoder_block_reference(x, params, num_heads=num_heads)
    assert out.shape == (B, N, d_model)
    # Tolerance reflects bf16 MXU operands (f32 accumulation) and the EUP
    # approximate reciprocal in the softmax normalization.
    assert jnp.allclose(out, ref, atol=5e-2, rtol=5e-2), "mismatch vs reference"

    print("KERNEL_OK")
</pallas_src>

<mosaic_0001>
module attributes {stable_mosaic.version = 11 : i64} {
  func.func @_decoder_block_kernel(%arg0: i32, %arg1: memref<8x128xf32, #tpu.memory_space<vmem>>, %arg2: memref<128x3072xbf16, #tpu.memory_space<vmem>>, %arg3: memref<1x3072xf32, #tpu.memory_space<vmem>>, %arg4: memref<1024x128xbf16, #tpu.memory_space<vmem>>, %arg5: memref<1x128xf32, #tpu.memory_space<vmem>>, %arg6: memref<1x128xf32, #tpu.memory_space<vmem>>, %arg7: memref<1x128xf32, #tpu.memory_space<vmem>>, %arg8: memref<128x256xbf16, #tpu.memory_space<vmem>>, %arg9: memref<1x256xf32, #tpu.memory_space<vmem>>, %arg10: memref<256x128xbf16, #tpu.memory_space<vmem>>, %arg11: memref<1x128xf32, #tpu.memory_space<vmem>>, %arg12: memref<1x128xf32, #tpu.memory_space<vmem>>, %arg13: memref<1x128xf32, #tpu.memory_space<vmem>>, %arg14: memref<8x128xf32, #tpu.memory_space<vmem>>) attributes {dimension_semantics = [#tpu.dimension_semantics<parallel>], iteration_bounds = array<i64: 2>, scalar_prefetch = 0 : i64, scratch_operands = 0 : i64, tpu.core_type = #tpu.core_type<tc>, window_params = [{transform_indices = @transform_0, window_bounds = array<i64: 8, 128>}, {pipeline_mode = #tpu.pipeline_mode<synchronous>, transform_indices = @transform_1, window_bounds = array<i64: 128, 3072>}, {pipeline_mode = #tpu.pipeline_mode<synchronous>, transform_indices = @transform_2, window_bounds = array<i64: 1, 3072>}, {pipeline_mode = #tpu.pipeline_mode<synchronous>, transform_indices = @transform_3, window_bounds = array<i64: 1024, 128>}, {pipeline_mode = #tpu.pipeline_mode<synchronous>, transform_indices = @transform_4, window_bounds = array<i64: 1, 128>}, {pipeline_mode = #tpu.pipeline_mode<synchronous>, transform_indices = @transform_5, window_bounds = array<i64: 1, 128>}, {pipeline_mode = #tpu.pipeline_mode<synchronous>, transform_indices = @transform_6, window_bounds = array<i64: 1, 128>}, {pipeline_mode = #tpu.pipeline_mode<synchronous>, transform_indices = @transform_7, window_bounds = array<i64: 128, 256>}, {pipeline_mode = #tpu.pipeline_mode<synchronous>, transform_indices = @transform_8, window_bounds = array<i64: 1, 256>}, {pipeline_mode = #tpu.pipeline_mode<synchronous>, transform_indices = @transform_9, window_bounds = array<i64: 256, 128>}, {pipeline_mode = #tpu.pipeline_mode<synchronous>, transform_indices = @transform_10, window_bounds = array<i64: 1, 128>}, {pipeline_mode = #tpu.pipeline_mode<synchronous>, transform_indices = @transform_11, window_bounds = array<i64: 1, 128>}, {pipeline_mode = #tpu.pipeline_mode<synchronous>, transform_indices = @transform_12, window_bounds = array<i64: 1, 128>}, {transform_indices = @transform_13, window_bounds = array<i64: 8, 128>}]} {
    %c0 = arith.constant 0 : index
    %c0_0 = arith.constant 0 : index
    %0 = vector.load %arg1[%c0, %c0_0] : memref<8x128xf32, #tpu.memory_space<vmem>>, vector<8x128xf32>
    %1 = arith.truncf %0 : vector<8x128xf32> to vector<8x128xbf16>
    %c0_1 = arith.constant 0 : index
    %c0_2 = arith.constant 0 : index
    %2 = vector.load %arg2[%c0_1, %c0_2] : memref<128x3072xbf16, #tpu.memory_space<vmem>>, vector<128x3072xbf16>
    %cst = arith.constant dense<0.000000e+00> : vector<8x3072xf32>
    %3 = tpu.matmul %1, %2, %cst {dimension_numbers = #tpu.dot_dimension_numbers<[1], [0], [0], [1], [0, 0, 1, 1], [], []>} : vector<8x128xbf16>, vector<128x3072xbf16>, vector<8x3072xf32> -> vector<8x3072xf32>
    %c0_3 = arith.constant 0 : index
    %c0_4 = arith.constant 0 : index
    %4 = vector.load %arg3[%c0_3, %c0_4] : memref<1x3072xf32, #tpu.memory_space<vmem>>, vector<1x3072xf32>
    %5 = vector.broadcast %4 : vector<1x3072xf32> to vector<8x3072xf32>
    %6 = arith.addf %3, %5 : vector<8x3072xf32>
    %cst_5 = arith.constant 0.000000e+00 : f32
    %7 = vector.broadcast %cst_5 : f32 to vector<8x128xf32>
    %8 = vector.extract_strided_slice %6 {offsets = [0, 0], sizes = [8, 128], strides = [1, 1]} : vector<8x3072xf32> to vector<8x128xf32>
    %9 = vector.extract_strided_slice %6 {offsets = [0, 1024], sizes = [8, 128], strides = [1, 1]} : vector<8x3072xf32> to vector<8x128xf32>
    %10 = vector.extract_strided_slice %6 {offsets = [0, 2048], sizes = [8, 128], strides = [1, 1]} : vector<8x3072xf32> to vector<8x128xf32>
    %cst_6 = arith.constant 2.500000e-01 : f32
    %11 = vector.broadcast %cst_6 : f32 to vector<8x128xf32>
    %12 = arith.mulf %8, %11 : vector<8x128xf32>
    %13 = arith.truncf %12 : vector<8x128xf32> to vector<8x128xbf16>
    %14 = arith.truncf %9 : vector<8x128xf32> to vector<8x128xbf16>
    %cst_7 = arith.constant dense<0.000000e+00> : vector<8x8xf32>
    %15 = tpu.matmul %13, %14, %cst_7 {dimension_numbers = #tpu.dot_dimension_numbers<[1], [1], [0], [0], [0, 0, 1, 0], [], []>} : vector<8x128xbf16>, vector<8x128xbf16>, vector<8x8xf32> -> vector<8x8xf32>
    %cst_8 = arith.constant dense<0xFF800000> : vector<8xf32>
    %16 = vector.multi_reduction <maximumf>, %15, %cst_8 [1] : vector<8x8xf32> to vector<8xf32>
    %17 = vector.shape_cast %16 : vector<8xf32> to vector<8x1xf32>
    %18 = vector.broadcast %17 : vector<8x1xf32> to vector<8x8xf32>
    %19 = arith.subf %15, %18 : vector<8x8xf32>
    %20 = math.exp %19 : vector<8x8xf32>
    %cst_9 = arith.constant dense<0.000000e+00> : vector<8xf32>
    %21 = vector.multi_reduction <add>, %20, %cst_9 [1] : vector<8x8xf32> to vector<8xf32>
    %22 = vector.shape_cast %21 : vector<8xf32> to vector<8x1xf32>
    %23 = tpu.reciprocal %22 {approx = true} : vector<8x1xf32> -> vector<8x1xf32>
    %24 = vector.broadcast %23 : vector<8x1xf32> to vector<8x8xf32>
    %25 = arith.mulf %20, %24 : vector<8x8xf32>
    %26 = arith.truncf %25 : vector<8x8xf32> to vector<8x8xbf16>
    %27 = arith.truncf %10 : vector<8x128xf32> to vector<8x128xbf16>
    %cst_10 = arith.constant dense<0.000000e+00> : vector<8x128xf32>
    %28 = tpu.matmul %26, %27, %cst_10 {dimension_numbers = #tpu.dot_dimension_numbers<[1], [0], [0], [1], [0, 0, 1, 1], [], []>} : vector<8x8xbf16>, vector<8x128xbf16>, vector<8x128xf32> -> vector<8x128xf32>
    %29 = arith.truncf %28 : vector<8x128xf32> to vector<8x128xbf16>
    %c0_11 = arith.constant 0 : index
    %c0_12 = arith.constant 0 : index
    %30 = vector.load %arg4[%c0_11, %c0_12] : memref<1024x128xbf16, #tpu.memory_space<vmem>>, vector<128x128xbf16>
    %cst_13 = arith.constant dense<0.000000e+00> : vector<8x128xf32>
    %31 = tpu.matmul %29, %30, %cst_13 {dimension_numbers = #tpu.dot_dimension_numbers<[1], [0], [0], [1], [0, 0, 1, 1], [], []>} : vector<8x128xbf16>, vector<128x128xbf16>, vector<8x128xf32> -> vector<8x128xf32>
    %32 = arith.addf %7, %31 : vector<8x128xf32>
    %33 = vector.extract_strided_slice %6 {offsets = [0, 128], sizes = [8, 128], strides = [1, 1]} : vector<8x3072xf32> to vector<8x128xf32>
    %34 = vector.extract_strided_slice %6 {offsets = [0, 1152], sizes = [8, 128], strides = [1, 1]} : vector<8x3072xf32> to vector<8x128xf32>
    %35 = vector.extract_strided_slice %6 {offsets = [0, 2176], sizes = [8, 128], strides = [1, 1]} : vector<8x3072xf32> to vector<8x128xf32>
    %cst_14 = arith.constant 2.500000e-01 : f32
    %36 = vector.broadcast %cst_14 : f32 to vector<8x128xf32>
    %37 = arith.mulf %33, %36 : vector<8x128xf32>
    %38 = arith.truncf %37 : vector<8x128xf32> to vector<8x128xbf16>
    %39 = arith.truncf %34 : vector<8x128xf32> to vector<8x128xbf16>
    %cst_15 = arith.constant dense<0.000000e+00> : vector<8x8xf32>
    %40 = tpu.matmul %38, %39, %cst_15 {dimension_numbers = #tpu.dot_dimension_numbers<[1], [1], [0], [0], [0, 0, 1, 0], [], []>} : vector<8x128xbf16>, vector<8x128xbf16>, vector<8x8xf32> -> vector<8x8xf32>
    %cst_16 = arith.constant dense<0xFF800000> : vector<8xf32>
    %41 = vector.multi_reduction <maximumf>, %40, %cst_16 [1] : vector<8x8xf32> to vector<8xf32>
    %42 = vector.shape_cast %41 : vector<8xf32> to vector<8x1xf32>
    %43 = vector.broadcast %42 : vector<8x1xf32> to vector<8x8xf32>
    %44 = arith.subf %40, %43 : vector<8x8xf32>
    %45 = math.exp %44 : vector<8x8xf32>
    %cst_17 = arith.constant dense<0.000000e+00> : vector<8xf32>
    %46 = vector.multi_reduction <add>, %45, %cst_17 [1] : vector<8x8xf32> to vector<8xf32>
    %47 = vector.shape_cast %46 : vector<8xf32> to vector<8x1xf32>
    %48 = tpu.reciprocal %47 {approx = true} : vector<8x1xf32> -> vector<8x1xf32>
    %49 = vector.broadcast %48 : vector<8x1xf32> to vector<8x8xf32>
    %50 = arith.mulf %45, %49 : vector<8x8xf32>
    %51 = arith.truncf %50 : vector<8x8xf32> to vector<8x8xbf16>
    %52 = arith.truncf %35 : vector<8x128xf32> to vector<8x128xbf16>
    %cst_18 = arith.constant dense<0.000000e+00> : vector<8x128xf32>
    %53 = tpu.matmul %51, %52, %cst_18 {dimension_numbers = #tpu.dot_dimension_numbers<[1], [0], [0], [1], [0, 0, 1, 1], [], []>} : vector<8x8xbf16>, vector<8x128xbf16>, vector<8x128xf32> -> vector<8x128xf32>
    %54 = arith.truncf %53 : vector<8x128xf32> to vector<8x128xbf16>
    %c128 = arith.constant 128 : index
    %c0_19 = arith.constant 0 : index
    %55 = vector.load %arg4[%c128, %c0_19] : memref<1024x128xbf16, #tpu.memory_space<vmem>>, vector<128x128xbf16>
    %cst_20 = arith.constant dense<0.000000e+00> : vector<8x128xf32>
    %56 = tpu.matmul %54, %55, %cst_20 {dimension_numbers = #tpu.dot_dimension_numbers<[1], [0], [0], [1], [0, 0, 1, 1], [], []>} : vector<8x128xbf16>, vector<128x128xbf16>, vector<8x128xf32> -> vector<8x128xf32>
    %57 = arith.addf %32, %56 : vector<8x128xf32>
    %58 = vector.extract_strided_slice %6 {offsets = [0, 256], sizes = [8, 128], strides = [1, 1]} : vector<8x3072xf32> to vector<8x128xf32>
    %59 = vector.extract_strided_slice %6 {offsets = [0, 1280], sizes = [8, 128], strides = [1, 1]} : vector<8x3072xf32> to vector<8x128xf32>
    %60 = vector.extract_strided_slice %6 {offsets = [0, 2304], sizes = [8, 128], strides = [1, 1]} : vector<8x3072xf32> to vector<8x128xf32>
    %cst_21 = arith.constant 2.500000e-01 : f32
    %61 = vector.broadcast %cst_21 : f32 to vector<8x128xf32>
    %62 = arith.mulf %58, %61 : vector<8x128xf32>
    %63 = arith.truncf %62 : vector<8x128xf32> to vector<8x128xbf16>
    %64 = arith.truncf %59 : vector<8x128xf32> to vector<8x128xbf16>
    %cst_22 = arith.constant dense<0.000000e+00> : vector<8x8xf32>
    %65 = tpu.matmul %63, %64, %cst_22 {dimension_numbers = #tpu.dot_dimension_numbers<[1], [1], [0], [0], [0, 0, 1, 0], [], []>} : vector<8x128xbf16>, vector<8x128xbf16>, vector<8x8xf32> -> vector<8x8xf32>
    %cst_23 = arith.constant dense<0xFF800000> : vector<8xf32>
    %66 = vector.multi_reduction <maximumf>, %65, %cst_23 [1] : vector<8x8xf32> to vector<8xf32>
    %67 = vector.shape_cast %66 : vector<8xf32> to vector<8x1xf32>
    %68 = vector.broadcast %67 : vector<8x1xf32> to vector<8x8xf32>
    %69 = arith.subf %65, %68 : vector<8x8xf32>
    %70 = math.exp %69 : vector<8x8xf32>
    %cst_24 = arith.constant dense<0.000000e+00> : vector<8xf32>
    %71 = vector.multi_reduction <add>, %70, %cst_24 [1] : vector<8x8xf32> to vector<8xf32>
    %72 = vector.shape_cast %71 : vector<8xf32> to vector<8x1xf32>
    %73 = tpu.reciprocal %72 {approx = true} : vector<8x1xf32> -> vector<8x1xf32>
    %74 = vector.broadcast %73 : vector<8x1xf32> to vector<8x8xf32>
    %75 = arith.mulf %70, %74 : vector<8x8xf32>
    %76 = arith.truncf %75 : vector<8x8xf32> to vector<8x8xbf16>
    %77 = arith.truncf %60 : vector<8x128xf32> to vector<8x128xbf16>
    %cst_25 = arith.constant dense<0.000000e+00> : vector<8x128xf32>
    %78 = tpu.matmul %76, %77, %cst_25 {dimension_numbers = #tpu.dot_dimension_numbers<[1], [0], [0], [1], [0, 0, 1, 1], [], []>} : vector<8x8xbf16>, vector<8x128xbf16>, vector<8x128xf32> -> vector<8x128xf32>
    %79 = arith.truncf %78 : vector<8x128xf32> to vector<8x128xbf16>
    %c256 = arith.constant 256 : index
    %c0_26 = arith.constant 0 : index
    %80 = vector.load %arg4[%c256, %c0_26] : memref<1024x128xbf16, #tpu.memory_space<vmem>>, vector<128x128xbf16>
    %cst_27 = arith.constant dense<0.000000e+00> : vector<8x128xf32>
    %81 = tpu.matmul %79, %80, %cst_27 {dimension_numbers = #tpu.dot_dimension_numbers<[1], [0], [0], [1], [0, 0, 1, 1], [], []>} : vector<8x128xbf16>, vector<128x128xbf16>, vector<8x128xf32> -> vector<8x128xf32>
    %82 = arith.addf %57, %81 : vector<8x128xf32>
    %83 = vector.extract_strided_slice %6 {offsets = [0, 384], sizes = [8, 128], strides = [1, 1]} : vector<8x3072xf32> to vector<8x128xf32>
    %84 = vector.extract_strided_slice %6 {offsets = [0, 1408], sizes = [8, 128], strides = [1, 1]} : vector<8x3072xf32> to vector<8x128xf32>
    %85 = vector.extract_strided_slice %6 {offsets = [0, 2432], sizes = [8, 128], strides = [1, 1]} : vector<8x3072xf32> to vector<8x128xf32>
    %cst_28 = arith.constant 2.500000e-01 : f32
    %86 = vector.broadcast %cst_28 : f32 to vector<8x128xf32>
    %87 = arith.mulf %83, %86 : vector<8x128xf32>
    %88 = arith.truncf %87 : vector<8x128xf32> to vector<8x128xbf16>
    %89 = arith.truncf %84 : vector<8x128xf32> to vector<8x128xbf16>
    %cst_29 = arith.constant dense<0.000000e+00> : vector<8x8xf32>
    %90 = tpu.matmul %88, %89, %cst_29 {dimension_numbers = #tpu.dot_dimension_numbers<[1], [1], [0], [0], [0, 0, 1, 0], [], []>} : vector<8x128xbf16>, vector<8x128xbf16>, vector<8x8xf32> -> vector<8x8xf32>
    %cst_30 = arith.constant dense<0xFF800000> : vector<8xf32>
    %91 = vector.multi_reduction <maximumf>, %90, %cst_30 [1] : vector<8x8xf32> to vector<8xf32>
    %92 = vector.shape_cast %91 : vector<8xf32> to vector<8x1xf32>
    %93 = vector.broadcast %92 : vector<8x1xf32> to vector<8x8xf32>
    %94 = arith.subf %90, %93 : vector<8x8xf32>
    %95 = math.exp %94 : vector<8x8xf32>
    %cst_31 = arith.constant dense<0.000000e+00> : vector<8xf32>
    %96 = vector.multi_reduction <add>, %95, %cst_31 [1] : vector<8x8xf32> to vector<8xf32>
    %97 = vector.shape_cast %96 : vector<8xf32> to vector<8x1xf32>
    %98 = tpu.reciprocal %97 {approx = true} : vector<8x1xf32> -> vector<8x1xf32>
    %99 = vector.broadcast %98 : vector<8x1xf32> to vector<8x8xf32>
    %100 = arith.mulf %95, %99 : vector<8x8xf32>
    %101 = arith.truncf %100 : vector<8x8xf32> to vector<8x8xbf16>
    %102 = arith.truncf %85 : vector<8x128xf32> to vector<8x128xbf16>
    %cst_32 = arith.constant dense<0.000000e+00> : vector<8x128xf32>
    %103 = tpu.matmul %101, %102, %cst_32 {dimension_numbers = #tpu.dot_dimension_numbers<[1], [0], [0], [1], [0, 0, 1, 1], [], []>} : vector<8x8xbf16>, vector<8x128xbf16>, vector<8x128xf32> -> vector<8x128xf32>
    %104 = arith.truncf %103 : vector<8x128xf32> to vector<8x128xbf16>
    %c384 = arith.constant 384 : index
    %c0_33 = arith.constant 0 : index
    %105 = vector.load %arg4[%c384, %c0_33] : memref<1024x128xbf16, #tpu.memory_space<vmem>>, vector<128x128xbf16>
    %cst_34 = arith.constant dense<0.000000e+00> : vector<8x128xf32>
    %106 = tpu.matmul %104, %105, %cst_34 {dimension_numbers = #tpu.dot_dimension_numbers<[1], [0], [0], [1], [0, 0, 1, 1], [], []>} : vector<8x128xbf16>, vector<128x128xbf16>, vector<8x128xf32> -> vector<8x128xf32>
    %107 = arith.addf %82, %106 : vector<8x128xf32>
    %108 = vector.extract_strided_slice %6 {offsets = [0, 512], sizes = [8, 128], strides = [1, 1]} : vector<8x3072xf32> to vector<8x128xf32>
    %109 = vector.extract_strided_slice %6 {offsets = [0, 1536], sizes = [8, 128], strides = [1, 1]} : vector<8x3072xf32> to vector<8x128xf32>
    %110 = vector.extract_strided_slice %6 {offsets = [0, 2560], sizes = [8, 128], strides = [1, 1]} : vector<8x3072xf32> to vector<8x128xf32>
    %cst_35 = arith.constant 2.500000e-01 : f32
    %111 = vector.broadcast %cst_35 : f32 to vector<8x128xf32>
    %112 = arith.mulf %108, %111 : vector<8x128xf32>
    %113 = arith.truncf %112 : vector<8x128xf32> to vector<8x128xbf16>
    %114 = arith.truncf %109 : vector<8x128xf32> to vector<8x128xbf16>
    %cst_36 = arith.constant dense<0.000000e+00> : vector<8x8xf32>
    %115 = tpu.matmul %113, %114, %cst_36 {dimension_numbers = #tpu.dot_dimension_numbers<[1], [1], [0], [0], [0, 0, 1, 0], [], []>} : vector<8x128xbf16>, vector<8x128xbf16>, vector<8x8xf32> -> vector<8x8xf32>
    %cst_37 = arith.constant dense<0xFF800000> : vector<8xf32>
    %116 = vector.multi_reduction <maximumf>, %115, %cst_37 [1] : vector<8x8xf32> to vector<8xf32>
    %117 = vector.shape_cast %116 : vector<8xf32> to vector<8x1xf32>
    %118 = vector.broadcast %117 : vector<8x1xf32> to vector<8x8xf32>
    %119 = arith.subf %115, %118 : vector<8x8xf32>
    %120 = math.exp %119 : vector<8x8xf32>
    %cst_38 = arith.constant dense<0.000000e+00> : vector<8xf32>
    %121 = vector.multi_reduction <add>, %120, %cst_38 [1] : vector<8x8xf32> to vector<8xf32>
    %122 = vector.shape_cast %121 : vector<8xf32> to vector<8x1xf32>
    %123 = tpu.reciprocal %122 {approx = true} : vector<8x1xf32> -> vector<8x1xf32>
    %124 = vector.broadcast %123 : vector<8x1xf32> to vector<8x8xf32>
    %125 = arith.mulf %120, %124 : vector<8x8xf32>
    %126 = arith.truncf %125 : vector<8x8xf32> to vector<8x8xbf16>
    %127 = arith.truncf %110 : vector<8x128xf32> to vector<8x128xbf16>
    %cst_39 = arith.constant dense<0.000000e+00> : vector<8x128xf32>
    %128 = tpu.matmul %126, %127, %cst_39 {dimension_numbers = #tpu.dot_dimension_numbers<[1], [0], [0], [1], [0, 0, 1, 1], [], []>} : vector<8x8xbf16>, vector<8x128xbf16>, vector<8x128xf32> -> vector<8x128xf32>
    %129 = arith.truncf %128 : vector<8x128xf32> to vector<8x128xbf16>
    %c512 = arith.constant 512 : index
    %c0_40 = arith.constant 0 : index
    %130 = vector.load %arg4[%c512, %c0_40] : memref<1024x128xbf16, #tpu.memory_space<vmem>>, vector<128x128xbf16>
    %cst_41 = arith.constant dense<0.000000e+00> : vector<8x128xf32>
    %131 = tpu.matmul %129, %130, %cst_41 {dimension_numbers = #tpu.dot_dimension_numbers<[1], [0], [0], [1], [0, 0, 1, 1], [], []>} : vector<8x128xbf16>, vector<128x128xbf16>, vector<8x128xf32> -> vector<8x128xf32>
    %132 = arith.addf %107, %131 : vector<8x128xf32>
    %133 = vector.extract_strided_slice %6 {offsets = [0, 640], sizes = [8, 128], strides = [1, 1]} : vector<8x3072xf32> to vector<8x128xf32>
    %134 = vector.extract_strided_slice %6 {offsets = [0, 1664], sizes = [8, 128], strides = [1, 1]} : vector<8x3072xf32> to vector<8x128xf32>
    %135 = vector.extract_strided_slice %6 {offsets = [0, 2688], sizes = [8, 128], strides = [1, 1]} : vector<8x3072xf32> to vector<8x128xf32>
    %cst_42 = arith.constant 2.500000e-01 : f32
    %136 = vector.broadcast %cst_42 : f32 to vector<8x128xf32>
    %137 = arith.mulf %133, %136 : vector<8x128xf32>
    %138 = arith.truncf %137 : vector<8x128xf32> to vector<8x128xbf16>
    %139 = arith.truncf %134 : vector<8x128xf32> to vector<8x128xbf16>
    %cst_43 = arith.constant dense<0.000000e+00> : vector<8x8xf32>
    %140 = tpu.matmul %138, %139, %cst_43 {dimension_numbers = #tpu.dot_dimension_numbers<[1], [1], [0], [0], [0, 0, 1, 0], [], []>} : vector<8x128xbf16>, vector<8x128xbf16>, vector<8x8xf32> -> vector<8x8xf32>
    %cst_44 = arith.constant dense<0xFF800000> : vector<8xf32>
    %141 = vector.multi_reduction <maximumf>, %140, %cst_44 [1] : vector<8x8xf32> to vector<8xf32>
    %142 = vector.shape_cast %141 : vector<8xf32> to vector<8x1xf32>
    %143 = vector.broadcast %142 : vector<8x1xf32> to vector<8x8xf32>
    %144 = arith.subf %140, %143 : vector<8x8xf32>
    %145 = math.exp %144 : vector<8x8xf32>
    %cst_45 = arith.constant dense<0.000000e+00> : vector<8xf32>
    %146 = vector.multi_reduction <add>, %145, %cst_45 [1] : vector<8x8xf32> to vector<8xf32>
    %147 = vector.shape_cast %146 : vector<8xf32> to vector<8x1xf32>
    %148 = tpu.reciprocal %147 {approx = true} : vector<8x1xf32> -> vector<8x1xf32>
    %149 = vector.broadcast %148 : vector<8x1xf32> to vector<8x8xf32>
    %150 = arith.mulf %145, %149 : vector<8x8xf32>
    %151 = arith.truncf %150 : vector<8x8xf32> to vector<8x8xbf16>
    %152 = arith.truncf %135 : vector<8x128xf32> to vector<8x128xbf16>
    %cst_46 = arith.constant dense<0.000000e+00> : vector<8x128xf32>
    %153 = tpu.matmul %151, %152, %cst_46 {dimension_numbers = #tpu.dot_dimension_numbers<[1], [0], [0], [1], [0, 0, 1, 1], [], []>} : vector<8x8xbf16>, vector<8x128xbf16>, vector<8x128xf32> -> vector<8x128xf32>
    %154 = arith.truncf %153 : vector<8x128xf32> to vector<8x128xbf16>
    %c640 = arith.constant 640 : index
    %c0_47 = arith.constant 0 : index
    %155 = vector.load %arg4[%c640, %c0_47] : memref<1024x128xbf16, #tpu.memory_space<vmem>>, vector<128x128xbf16>
    %cst_48 = arith.constant dense<0.000000e+00> : vector<8x128xf32>
    %156 = tpu.matmul %154, %155, %cst_48 {dimension_numbers = #tpu.dot_dimension_numbers<[1], [0], [0], [1], [0, 0, 1, 1], [], []>} : vector<8x128xbf16>, vector<128x128xbf16>, vector<8x128xf32> -> vector<8x128xf32>
    %157 = arith.addf %132, %156 : vector<8x128xf32>
    %158 = vector.extract_strided_slice %6 {offsets = [0, 768], sizes = [8, 128], strides = [1, 1]} : vector<8x3072xf32> to vector<8x128xf32>
    %159 = vector.extract_strided_slice %6 {offsets = [0, 1792], sizes = [8, 128], strides = [1, 1]} : vector<8x3072xf32> to vector<8x128xf32>
    %160 = vector.extract_strided_slice %6 {offsets = [0, 2816], sizes = [8, 128], strides = [1, 1]} : vector<8x3072xf32> to vector<8x128xf32>
    %cst_49 = arith.constant 2.500000e-01 : f32
    %161 = vector.broadcast %cst_49 : f32 to vector<8x128xf32>
    %162 = arith.mulf %158, %161 : vector<8x128xf32>
    %163 = arith.truncf %162 : vector<8x128xf32> to vector<8x128xbf16>
    %164 = arith.truncf %159 : vector<8x128xf32> to vector<8x128xbf16>
    %cst_50 = arith.constant dense<0.000000e+00> : vector<8x8xf32>
    %165 = tpu.matmul %163, %164, %cst_50 {dimension_numbers = #tpu.dot_dimension_numbers<[1], [1], [0], [0], [0, 0, 1, 0], [], []>} : vector<8x128xbf16>, vector<8x128xbf16>, vector<8x8xf32> -> vector<8x8xf32>
    %cst_51 = arith.constant dense<0xFF800000> : vector<8xf32>
    %166 = vector.multi_reduction <maximumf>, %165, %cst_51 [1] : vector<8x8xf32> to vector<8xf32>
    %167 = vector.shape_cast %166 : vector<8xf32> to vector<8x1xf32>
    %168 = vector.broadcast %167 : vector<8x1xf32> to vector<8x8xf32>
    %169 = arith.subf %165, %168 : vector<8x8xf32>
    %170 = math.exp %169 : vector<8x8xf32>
    %cst_52 = arith.constant dense<0.000000e+00> : vector<8xf32>
    %171 = vector.multi_reduction <add>, %170, %cst_52 [1] : vector<8x8xf32> to vector<8xf32>
    %172 = vector.shape_cast %171 : vector<8xf32> to vector<8x1xf32>
    %173 = tpu.reciprocal %172 {approx = true} : vector<8x1xf32> -> vector<8x1xf32>
    %174 = vector.broadcast %173 : vector<8x1xf32> to vector<8x8xf32>
    %175 = arith.mulf %170, %174 : vector<8x8xf32>
    %176 = arith.truncf %175 : vector<8x8xf32> to vector<8x8xbf16>
    %177 = arith.truncf %160 : vector<8x128xf32> to vector<8x128xbf16>
    %cst_53 = arith.constant dense<0.000000e+00> : vector<8x128xf32>
    %178 = tpu.matmul %176, %177, %cst_53 {dimension_numbers = #tpu.dot_dimension_numbers<[1], [0], [0], [1], [0, 0, 1, 1], [], []>} : vector<8x8xbf16>, vector<8x128xbf16>, vector<8x128xf32> -> vector<8x128xf32>
    %179 = arith.truncf %178 : vector<8x128xf32> to vector<8x128xbf16>
    %c768 = arith.constant 768 : index
    %c0_54 = arith.constant 0 : index
    %180 = vector.load %arg4[%c768, %c0_54] : memref<1024x128xbf16, #tpu.memory_space<vmem>>, vector<128x128xbf16>
    %cst_55 = arith.constant dense<0.000000e+00> : vector<8x128xf32>
    %181 = tpu.matmul %179, %180, %cst_55 {dimension_numbers = #tpu.dot_dimension_numbers<[1], [0], [0], [1], [0, 0, 1, 1], [], []>} : vector<8x128xbf16>, vector<128x128xbf16>, vector<8x128xf32> -> vector<8x128xf32>
    %182 = arith.addf %157, %181 : vector<8x128xf32>
    %183 = vector.extract_strided_slice %6 {offsets = [0, 896], sizes = [8, 128], strides = [1, 1]} : vector<8x3072xf32> to vector<8x128xf32>
    %184 = vector.extract_strided_slice %6 {offsets = [0, 1920], sizes = [8, 128], strides = [1, 1]} : vector<8x3072xf32> to vector<8x128xf32>
    %185 = vector.extract_strided_slice %6 {offsets = [0, 2944], sizes = [8, 128], strides = [1, 1]} : vector<8x3072xf32> to vector<8x128xf32>
    %cst_56 = arith.constant 2.500000e-01 : f32
    %186 = vector.broadcast %cst_56 : f32 to vector<8x128xf32>
    %187 = arith.mulf %183, %186 : vector<8x128xf32>
    %188 = arith.truncf %187 : vector<8x128xf32> to vector<8x128xbf16>
    %189 = arith.truncf %184 : vector<8x128xf32> to vector<8x128xbf16>
    %cst_57 = arith.constant dense<0.000000e+00> : vector<8x8xf32>
    %190 = tpu.matmul %188, %189, %cst_57 {dimension_numbers = #tpu.dot_dimension_numbers<[1], [1], [0], [0], [0, 0, 1, 0], [], []>} : vector<8x128xbf16>, vector<8x128xbf16>, vector<8x8xf32> -> vector<8x8xf32>
    %cst_58 = arith.constant dense<0xFF800000> : vector<8xf32>
    %191 = vector.multi_reduction <maximumf>, %190, %cst_58 [1] : vector<8x8xf32> to vector<8xf32>
    %192 = vector.shape_cast %191 : vector<8xf32> to vector<8x1xf32>
    %193 = vector.broadcast %192 : vector<8x1xf32> to vector<8x8xf32>
    %194 = arith.subf %190, %193 : vector<8x8xf32>
    %195 = math.exp %194 : vector<8x8xf32>
    %cst_59 = arith.constant dense<0.000000e+00> : vector<8xf32>
    %196 = vector.multi_reduction <add>, %195, %cst_59 [1] : vector<8x8xf32> to vector<8xf32>
    %197 = vector.shape_cast %196 : vector<8xf32> to vector<8x1xf32>
    %198 = tpu.reciprocal %197 {approx = true} : vector<8x1xf32> -> vector<8x1xf32>
    %199 = vector.broadcast %198 : vector<8x1xf32> to vector<8x8xf32>
    %200 = arith.mulf %195, %199 : vector<8x8xf32>
    %201 = arith.truncf %200 : vector<8x8xf32> to vector<8x8xbf16>
    %202 = arith.truncf %185 : vector<8x128xf32> to vector<8x128xbf16>
    %cst_60 = arith.constant dense<0.000000e+00> : vector<8x128xf32>
    %203 = tpu.matmul %201, %202, %cst_60 {dimension_numbers = #tpu.dot_dimension_numbers<[1], [0], [0], [1], [0, 0, 1, 1], [], []>} : vector<8x8xbf16>, vector<8x128xbf16>, vector<8x128xf32> -> vector<8x128xf32>
    %204 = arith.truncf %203 : vector<8x128xf32> to vector<8x128xbf16>
    %c896 = arith.constant 896 : index
    %c0_61 = arith.constant 0 : index
    %205 = vector.load %arg4[%c896, %c0_61] : memref<1024x128xbf16, #tpu.memory_space<vmem>>, vector<128x128xbf16>
    %cst_62 = arith.constant dense<0.000000e+00> : vector<8x128xf32>
    %206 = tpu.matmul %204, %205, %cst_62 {dimension_numbers = #tpu.dot_dimension_numbers<[1], [0], [0], [1], [0, 0, 1, 1], [], []>} : vector<8x128xbf16>, vector<128x128xbf16>, vector<8x128xf32> -> vector<8x128xf32>
    %207 = arith.addf %182, %206 : vector<8x128xf32>
    %c0_63 = arith.constant 0 : index
    %c0_64 = arith.constant 0 : index
    %208 = vector.load %arg5[%c0_63, %c0_64] : memref<1x128xf32, #tpu.memory_space<vmem>>, vector<1x128xf32>
    %209 = vector.broadcast %208 : vector<1x128xf32> to vector<8x128xf32>
    %210 = arith.addf %207, %209 : vector<8x128xf32>
    %211 = arith.addf %0, %210 : vector<8x128xf32>
    %cst_65 = arith.constant dense<0.000000e+00> : vector<8xf32>
    %212 = vector.multi_reduction <add>, %211, %cst_65 [1] : vector<8x128xf32> to vector<8xf32>
    %213 = vector.shape_cast %212 : vector<8xf32> to vector<8x1xf32>
    %cst_66 = arith.constant 1.280000e+02 : f32
    %214 = vector.broadcast %cst_66 : f32 to vector<8x1xf32>
    %215 = arith.divf %213, %214 : vector<8x1xf32>
    %216 = vector.broadcast %215 : vector<8x1xf32> to vector<8x128xf32>
    %217 = arith.subf %211, %216 : vector<8x128xf32>
    %218 = arith.mulf %217, %217 : vector<8x128xf32>
    %cst_67 = arith.constant dense<0.000000e+00> : vector<8xf32>
    %219 = vector.multi_reduction <add>, %218, %cst_67 [1] : vector<8x128xf32> to vector<8xf32>
    %220 = vector.shape_cast %219 : vector<8xf32> to vector<8x1xf32>
    %cst_68 = arith.constant 1.280000e+02 : f32
    %221 = vector.broadcast %cst_68 : f32 to vector<8x1xf32>
    %222 = arith.divf %220, %221 : vector<8x1xf32>
    %cst_69 = arith.constant 9.99999974E-6 : f32
    %223 = vector.broadcast %cst_69 : f32 to vector<8x1xf32>
    %224 = arith.addf %222, %223 : vector<8x1xf32>
    %225 = math.rsqrt %224 : vector<8x1xf32>
    %226 = vector.broadcast %225 : vector<8x1xf32> to vector<8x128xf32>
    %227 = arith.mulf %217, %226 : vector<8x128xf32>
    %c0_70 = arith.constant 0 : index
    %c0_71 = arith.constant 0 : index
    %228 = vector.load %arg6[%c0_70, %c0_71] : memref<1x128xf32, #tpu.memory_space<vmem>>, vector<1x128xf32>
    %229 = vector.broadcast %228 : vector<1x128xf32> to vector<8x128xf32>
    %230 = arith.mulf %227, %229 : vector<8x128xf32>
    %c0_72 = arith.constant 0 : index
    %c0_73 = arith.constant 0 : index
    %231 = vector.load %arg7[%c0_72, %c0_73] : memref<1x128xf32, #tpu.memory_space<vmem>>, vector<1x128xf32>
    %232 = vector.broadcast %231 : vector<1x128xf32> to vector<8x128xf32>
    %233 = arith.addf %230, %232 : vector<8x128xf32>
    %234 = arith.truncf %233 : vector<8x128xf32> to vector<8x128xbf16>
    %c0_74 = arith.constant 0 : index
    %c0_75 = arith.constant 0 : index
    %235 = vector.load %arg8[%c0_74, %c0_75] : memref<128x256xbf16, #tpu.memory_space<vmem>>, vector<128x256xbf16>
    %cst_76 = arith.constant dense<0.000000e+00> : vector<8x256xf32>
    %236 = tpu.matmul %234, %235, %cst_76 {dimension_numbers = #tpu.dot_dimension_numbers<[1], [0], [0], [1], [0, 0, 1, 1], [], []>} : vector<8x128xbf16>, vector<128x256xbf16>, vector<8x256xf32> -> vector<8x256xf32>
    %c0_77 = arith.constant 0 : index
    %c0_78 = arith.constant 0 : index
    %237 = vector.load %arg9[%c0_77, %c0_78] : memref<1x256xf32, #tpu.memory_space<vmem>>, vector<1x256xf32>
    %238 = vector.broadcast %237 : vector<1x256xf32> to vector<8x256xf32>
    %239 = arith.addf %236, %238 : vector<8x256xf32>
    %cst_79 = arith.constant 0.000000e+00 : f32
    %240 = vector.broadcast %cst_79 : f32 to vector<8x256xf32>
    %241 = arith.maximumf %239, %240 : vector<8x256xf32>
    %242 = arith.truncf %241 : vector<8x256xf32> to vector<8x256xbf16>
    %c0_80 = arith.constant 0 : index
    %c0_81 = arith.constant 0 : index
    %243 = vector.load %arg10[%c0_80, %c0_81] : memref<256x128xbf16, #tpu.memory_space<vmem>>, vector<256x128xbf16>
    %cst_82 = arith.constant dense<0.000000e+00> : vector<8x128xf32>
    %244 = tpu.matmul %242, %243, %cst_82 {dimension_numbers = #tpu.dot_dimension_numbers<[1], [0], [0], [1], [0, 0, 1, 1], [], []>} : vector<8x256xbf16>, vector<256x128xbf16>, vector<8x128xf32> -> vector<8x128xf32>
    %c0_83 = arith.constant 0 : index
    %c0_84 = arith.constant 0 : index
    %245 = vector.load %arg11[%c0_83, %c0_84] : memref<1x128xf32, #tpu.memory_space<vmem>>, vector<1x128xf32>
    %246 = vector.broadcast %245 : vector<1x128xf32> to vector<8x128xf32>
    %247 = arith.addf %244, %246 : vector<8x128xf32>
    %248 = arith.addf %233, %247 : vector<8x128xf32>
    %cst_85 = arith.constant dense<0.000000e+00> : vector<8xf32>
    %249 = vector.multi_reduction <add>, %248, %cst_85 [1] : vector<8x128xf32> to vector<8xf32>
    %250 = vector.shape_cast %249 : vector<8xf32> to vector<8x1xf32>
    %cst_86 = arith.constant 1.280000e+02 : f32
    %251 = vector.broadcast %cst_86 : f32 to vector<8x1xf32>
    %252 = arith.divf %250, %251 : vector<8x1xf32>
    %253 = vector.broadcast %252 : vector<8x1xf32> to vector<8x128xf32>
    %254 = arith.subf %248, %253 : vector<8x128xf32>
    %255 = arith.mulf %254, %254 : vector<8x128xf32>
    %cst_87 = arith.constant dense<0.000000e+00> : vector<8xf32>
    %256 = vector.multi_reduction <add>, %255, %cst_87 [1] : vector<8x128xf32> to vector<8xf32>
    %257 = vector.shape_cast %256 : vector<8xf32> to vector<8x1xf32>
    %cst_88 = arith.constant 1.280000e+02 : f32
    %258 = vector.broadcast %cst_88 : f32 to vector<8x1xf32>
    %259 = arith.divf %257, %258 : vector<8x1xf32>
    %cst_89 = arith.constant 9.99999974E-6 : f32
    %260 = vector.broadcast %cst_89 : f32 to vector<8x1xf32>
    %261 = arith.addf %259, %260 : vector<8x1xf32>
    %262 = math.rsqrt %261 : vector<8x1xf32>
    %263 = vector.broadcast %262 : vector<8x1xf32> to vector<8x128xf32>
    %264 = arith.mulf %254, %263 : vector<8x128xf32>
    %c0_90 = arith.constant 0 : index
    %c0_91 = arith.constant 0 : index
    %265 = vector.load %arg12[%c0_90, %c0_91] : memref<1x128xf32, #tpu.memory_space<vmem>>, vector<1x128xf32>
    %266 = vector.broadcast %265 : vector<1x128xf32> to vector<8x128xf32>
    %267 = arith.mulf %264, %266 : vector<8x128xf32>
    %c0_92 = arith.constant 0 : index
    %c0_93 = arith.constant 0 : index
    %268 = vector.load %arg13[%c0_92, %c0_93] : memref<1x128xf32, #tpu.memory_space<vmem>>, vector<1x128xf32>
    %269 = vector.broadcast %268 : vector<1x128xf32> to vector<8x128xf32>
    %270 = arith.addf %267, %269 : vector<8x128xf32>
    %c0_94 = arith.constant 0 : index
    %c0_95 = arith.constant 0 : index
    %271 = vector.load %arg14[%c0_94, %c0_95] : memref<8x128xf32, #tpu.memory_space<vmem>>, vector<8x128xf32>
    tpu.vector_store %arg14[%c0_94, %c0_95], %270 {strides = array<i32>} : memref<8x128xf32, #tpu.memory_space<vmem>>, vector<8x128xf32>,
    return
  }
  func.func @transform_0(%arg0: i32) -> (i32, i32) {
    %c0_i32 = arith.constant 0 : i32
    %c0_i32_0 = arith.constant 0 : i32
    return %arg0, %c0_i32 : i32, i32
  }
  func.func @transform_1(%arg0: i32) -> (i32, i32) {
    %c0_i32 = arith.constant 0 : i32
    %c0_i32_0 = arith.constant 0 : i32
    %c0_i32_1 = arith.constant 0 : i32
    return %c0_i32, %c0_i32_0 : i32, i32
  }
  func.func @transform_2(%arg0: i32) -> (i32, i32) {
    %c0_i32 = arith.constant 0 : i32
    %c0_i32_0 = arith.constant 0 : i32
    %c0_i32_1 = arith.constant 0 : i32
    return %c0_i32, %c0_i32_0 : i32, i32
  }
  func.func @transform_3(%arg0: i32) -> (i32, i32) {
    %c0_i32 = arith.constant 0 : i32
    %c0_i32_0 = arith.constant 0 : i32
    %c0_i32_1 = arith.constant 0 : i32
    return %c0_i32, %c0_i32_0 : i32, i32
  }
  func.func @transform_4(%arg0: i32) -> (i32, i32) {
    %c0_i32 = arith.constant 0 : i32
    %c0_i32_0 = arith.constant 0 : i32
    %c0_i32_1 = arith.constant 0 : i32
    return %c0_i32, %c0_i32_0 : i32, i32
  }
  func.func @transform_5(%arg0: i32) -> (i32, i32) {
    %c0_i32 = arith.constant 0 : i32
    %c0_i32_0 = arith.constant 0 : i32
    %c0_i32_1 = arith.constant 0 : i32
    return %c0_i32, %c0_i32_0 : i32, i32
  }
  func.func @transform_6(%arg0: i32) -> (i32, i32) {
    %c0_i32 = arith.constant 0 : i32
    %c0_i32_0 = arith.constant 0 : i32
    %c0_i32_1 = arith.constant 0 : i32
    return %c0_i32, %c0_i32_0 : i32, i32
  }
  func.func @transform_7(%arg0: i32) -> (i32, i32) {
    %c0_i32 = arith.constant 0 : i32
    %c0_i32_0 = arith.constant 0 : i32
    %c0_i32_1 = arith.constant 0 : i32
    return %c0_i32, %c0_i32_0 : i32, i32
  }
  func.func @transform_8(%arg0: i32) -> (i32, i32) {
    %c0_i32 = arith.constant 0 : i32
    %c0_i32_0 = arith.constant 0 : i32
    %c0_i32_1 = arith.constant 0 : i32
    return %c0_i32, %c0_i32_0 : i32, i32
  }
  func.func @transform_9(%arg0: i32) -> (i32, i32) {
    %c0_i32 = arith.constant 0 : i32
    %c0_i32_0 = arith.constant 0 : i32
    %c0_i32_1 = arith.constant 0 : i32
    return %c0_i32, %c0_i32_0 : i32, i32
  }
  func.func @transform_10(%arg0: i32) -> (i32, i32) {
    %c0_i32 = arith.constant 0 : i32
    %c0_i32_0 = arith.constant 0 : i32
    %c0_i32_1 = arith.constant 0 : i32
    return %c0_i32, %c0_i32_0 : i32, i32
  }
  func.func @transform_11(%arg0: i32) -> (i32, i32) {
    %c0_i32 = arith.constant 0 : i32
    %c0_i32_0 = arith.constant 0 : i32
    %c0_i32_1 = arith.constant 0 : i32
    return %c0_i32, %c0_i32_0 : i32, i32
  }
  func.func @transform_12(%arg0: i32) -> (i32, i32) {
    %c0_i32 = arith.constant 0 : i32
    %c0_i32_0 = arith.constant 0 : i32
    %c0_i32_1 = arith.constant 0 : i32
    return %c0_i32, %c0_i32_0 : i32, i32
  }
  func.func @transform_13(%arg0: i32) -> (i32, i32) {
    %c0_i32 = arith.constant 0 : i32
    %c0_i32_0 = arith.constant 0 : i32
    return %arg0, %c0_i32 : i32, i32
  }
}

</mosaic_0001>

<llo_original>
// kernel: decoder_block_pallas.1
$region0: #{decoder_block_pallas.1}
  #allocation0 [shape = 'u32[]', space=smem, size = 0x4, offset = 0x4, fixed_abs, tag = 'smem constant byte address 0x4 - core index']
  #allocation1 [shape = 'u32[72,128]{1,0:T(1,128)}', space=vmem, size = 0x9000, scoped, tag = 'internal scratch']
  %s0 = inlined_call_operand.vmem [shape: f32[16,128], index: 0, kind: input, shape index: {}, may-alias: {0,13}]
  %s1 = inlined_call_operand.vmem [shape: bf16[128,3072], index: 1, kind: input, shape index: {}]
  %s2 = inlined_call_operand.vmem [shape: f32[1,3072], index: 2, kind: input, shape index: {}]
  %s3 = inlined_call_operand.vmem [shape: bf16[1024,128], index: 3, kind: input, shape index: {}]
  %s4 = inlined_call_operand.vmem [shape: f32[1,128], index: 4, kind: input, shape index: {}]
  %s5 = inlined_call_operand.vmem [shape: f32[1,128], index: 5, kind: input, shape index: {}]
  %s6 = inlined_call_operand.vmem [shape: f32[1,128], index: 6, kind: input, shape index: {}]
  %s7 = inlined_call_operand.vmem [shape: bf16[128,256], index: 7, kind: input, shape index: {}]
  %s8 = inlined_call_operand.vmem [shape: f32[1,256], index: 8, kind: input, shape index: {}]
  %s9 = inlined_call_operand.vmem [shape: bf16[256,128], index: 9, kind: input, shape index: {}]
  %s10 = inlined_call_operand.vmem [shape: f32[1,128], index: 10, kind: input, shape index: {}]
  %s11 = inlined_call_operand.vmem [shape: f32[1,128], index: 11, kind: input, shape index: {}]
  %s12 = inlined_call_operand.vmem [shape: f32[1,128], index: 12, kind: input, shape index: {}]
  %s13 = inlined_call_operand.vmem [shape: f32[16,128], index: 13, kind: output, shape index: {}, may-alias: {0,13}]
  %s14 = sld [smem:[#allocation0]]
  $region85: #{decoder_block_pallas.1} parent=0
    _
  %s16 = ssub.s32 1, %s14
  %s17 = scalar_select 0, %s16, %s14
  loop: start=0, step=1, limit=4
  $region2: #{decoder_block_pallas.1} parent=0 // loop_pre_header
    _
  $region3: #{decoder_block_pallas.1} parent=0 // loop_header
    %s19 = sphi 0, %s23
    %p20 = scmp.ge.s32.totalorder %s19, 4
    %s29 = sphi 0, %s31
    %s32 = sphi 0, %s29
    %s33 = sphi 0, %s32
    %s49 = sphi 0, %s33
    %s53 = sphi 0, %s53
    %s55 = sphi 0, %s53
    %s56 = sphi 0, %s55
    %s70 = sphi 0, %s56
    %s74 = sphi 0, %s74
    %s76 = sphi 0, %s74
    %s77 = sphi 0, %s76
    %s91 = sphi 0, %s77
    %s95 = sphi 0, %s95
    %s97 = sphi 0, %s95
    %s98 = sphi 0, %s97
    %s112 = sphi 0, %s98
    %s116 = sphi 0, %s116
    %s118 = sphi 0, %s116
    %s119 = sphi 0, %s118
    %s133 = sphi 0, %s119
    %s137 = sphi 0, %s137
    %s139 = sphi 0, %s137
    %s140 = sphi 0, %s139
    %s154 = sphi 0, %s140
    %s158 = sphi 0, %s158
    %s160 = sphi 0, %s158
    %s161 = sphi 0, %s160
    %s175 = sphi 0, %s161
    %s179 = sphi 0, %s179
    %s181 = sphi 0, %s179
    %s182 = sphi 0, %s181
    %s196 = sphi 0, %s182
    %s200 = sphi 0, %s200
    %s202 = sphi 0, %s200
    %s203 = sphi 0, %s202
    %s217 = sphi 0, %s203
    %s221 = sphi 0, %s221
    %s223 = sphi 0, %s221
    %s224 = sphi 0, %s223
    %s238 = sphi 0, %s224
    %s242 = sphi 0, %s242
    %s244 = sphi 0, %s242
    %s245 = sphi 0, %s244
    %s259 = sphi 0, %s245
    %s263 = sphi 0, %s263
    %s265 = sphi 0, %s263
    %s266 = sphi 0, %s265
    %s280 = sphi 0, %s266
    %s284 = sphi 0, %s284
    %s286 = sphi 0, %s284
    %s287 = sphi 0, %s286
    %s301 = sphi 0, %s287
    %s307 = sphi 0, %s309
    %s310 = sphi 0, %s307
    %s311 = sphi 0, %s310
    %s327 = sphi 0, %s311
  $region4: #{decoder_block_pallas.1} parent=0 // loop_header_branch
    %22 = sbr.rel (%p20) target = $region8
  $region5: #{decoder_block_pallas.1} parent=0 // loop_body
    %s24 = ssub.s32 %s19, 1
    %s25 = ssub.s32 %s19, 2
    %s26 = sadd.s32 %s19, 1
    %s27 = ssub.s32 %s19, %s26
    %p28 = scmp.eq.s32.totalorder %s27, 0
    %s30 = sadd.s32 %s29, 1
    %s31 = scalar_select %p28, %s29, %s30
    %p34 = pneg %p28
    %p35 = scmp.eq.s32.totalorder %s19, 1
    %p36 = por %p34, %p35
    %p37 = scmp.ne.s32.totalorder %s29, %s32
    %p38 = scmp.eq.s32.totalorder %s19, 0
    %p39 = por %p37, %p38
    %p40 = scmp.ne.s32.totalorder %s29, %s32
    %p41 = scmp.eq.s32.totalorder %s24, 1
    %p42 = por %p40, %p41
    %p43 = scmp.ne.s32.totalorder %s32, %s33
    %p44 = scmp.eq.s32.totalorder %s24, 0
    %p45 = por %p43, %p44
    %p46 = scmp.ne.s32.totalorder %s32, %s33
    %p47 = scmp.eq.s32.totalorder %s25, 1
    %p48 = por %p46, %p47
    %p50 = scmp.ne.s32.totalorder %s33, %s49
    %p51 = scmp.eq.s32.totalorder %s25, 0
    %p52 = por %p50, %p51
    %s54 = sadd.s32 %s53, 1
    %p57 = scmp.eq.s32.totalorder %s19, 1
    %p58 = scmp.ne.s32.totalorder %s53, %s55
    %p59 = scmp.eq.s32.totalorder %s19, 0
    %p60 = por %p58, %p59
    %p61 = scmp.ne.s32.totalorder %s53, %s55
    %p62 = scmp.eq.s32.totalorder %s24, 1
    %p63 = por %p61, %p62
    %p64 = scmp.ne.s32.totalorder %s55, %s56
    %p65 = scmp.eq.s32.totalorder %s24, 0
    %p66 = por %p64, %p65
    %p67 = scmp.ne.s32.totalorder %s55, %s56
    %p68 = scmp.eq.s32.totalorder %s25, 1
    %p69 = por %p67, %p68
    %p71 = scmp.ne.s32.totalorder %s56, %s70
    %p72 = scmp.eq.s32.totalorder %s25, 0
    %p73 = por %p71, %p72
    %s75 = sadd.s32 %s74, 1
    %p78 = scmp.eq.s32.totalorder %s19, 1
    %p79 = scmp.ne.s32.totalorder %s74, %s76
    %p80 = scmp.eq.s32.totalorder %s19, 0
    %p81 = por %p79, %p80
    %p82 = scmp.ne.s32.totalorder %s74, %s76
    %p83 = scmp.eq.s32.totalorder %s24, 1
    %p84 = por %p82, %p83
    %p85 = scmp.ne.s32.totalorder %s76, %s77
    %p86 = scmp.eq.s32.totalorder %s24, 0
    %p87 = por %p85, %p86
    %p88 = scmp.ne.s32.totalorder %s76, %s77
    %p89 = scmp.eq.s32.totalorder %s25, 1
    %p90 = por %p88, %p89
    %p92 = scmp.ne.s32.totalorder %s77, %s91
    %p93 = scmp.eq.s32.totalorder %s25, 0
    %p94 = por %p92, %p93
    %s96 = sadd.s32 %s95, 1
    %p99 = scmp.eq.s32.totalorder %s19, 1
    %p100 = scmp.ne.s32.totalorder %s95, %s97
    %p101 = scmp.eq.s32.totalorder %s19, 0
    %p102 = por %p100, %p101
    %p103 = scmp.ne.s32.totalorder %s95, %s97
    %p104 = scmp.eq.s32.totalorder %s24, 1
    %p105 = por %p103, %p104
    %p106 = scmp.ne.s32.totalorder %s97, %s98
    %p107 = scmp.eq.s32.totalorder %s24, 0
    %p108 = por %p106, %p107
    %p109 = scmp.ne.s32.totalorder %s97, %s98
    %p110 = scmp.eq.s32.totalorder %s25, 1
    %p111 = por %p109, %p110
    %p113 = scmp.ne.s32.totalorder %s98, %s112
    %p114 = scmp.eq.s32.totalorder %s25, 0
    %p115 = por %p113, %p114
    %s117 = sadd.s32 %s116, 1
    %p120 = scmp.eq.s32.totalorder %s19, 1
    %p121 = scmp.ne.s32.totalorder %s116, %s118
    %p122 = scmp.eq.s32.totalorder %s19, 0
    %p123 = por %p121, %p122
    %p124 = scmp.ne.s32.totalorder %s116, %s118
    %p125 = scmp.eq.s32.totalorder %s24, 1
    %p126 = por %p124, %p125
    %p127 = scmp.ne.s32.totalorder %s118, %s119
    %p128 = scmp.eq.s32.totalorder %s24, 0
    %p129 = por %p127, %p128
    %p130 = scmp.ne.s32.totalorder %s118, %s119
    %p131 = scmp.eq.s32.totalorder %s25, 1
    %p132 = por %p130, %p131
    %p134 = scmp.ne.s32.totalorder %s119, %s133
    %p135 = scmp.eq.s32.totalorder %s25, 0
    %p136 = por %p134, %p135
    %s138 = sadd.s32 %s137, 1
    %p141 = scmp.eq.s32.totalorder %s19, 1
    %p142 = scmp.ne.s32.totalorder %s137, %s139
    %p143 = scmp.eq.s32.totalorder %s19, 0
    %p144 = por %p142, %p143
    %p145 = scmp.ne.s32.totalorder %s137, %s139
    %p146 = scmp.eq.s32.totalorder %s24, 1
    %p147 = por %p145, %p146
    %p148 = scmp.ne.s32.totalorder %s139, %s140
    %p149 = scmp.eq.s32.totalorder %s24, 0
    %p150 = por %p148, %p149
    %p151 = scmp.ne.s32.totalorder %s139, %s140
    %p152 = scmp.eq.s32.totalorder %s25, 1
    %p153 = por %p151, %p152
    %p155 = scmp.ne.s32.totalorder %s140, %s154
    %p156 = scmp.eq.s32.totalorder %s25, 0
    %p157 = por %p155, %p156
    %s159 = sadd.s32 %s158, 1
    %p162 = scmp.eq.s32.totalorder %s19, 1
    %p163 = scmp.ne.s32.totalorder %s158, %s160
    %p164 = scmp.eq.s32.totalorder %s19, 0
    %p165 = por %p163, %p164
    %p166 = scmp.ne.s32.totalorder %s158, %s160
    %p167 = scmp.eq.s32.totalorder %s24, 1
    %p168 = por %p166, %p167
    %p169 = scmp.ne.s32.totalorder %s160, %s161
    %p170 = scmp.eq.s32.totalorder %s24, 0
    %p171 = por %p169, %p170
    %p172 = scmp.ne.s32.totalorder %s160, %s161
    %p173 = scmp.eq.s32.totalorder %s25, 1
    %p174 = por %p172, %p173
    %p176 = scmp.ne.s32.totalorder %s161, %s175
    %p177 = scmp.eq.s32.totalorder %s25, 0
    %p178 = por %p176, %p177
    %s180 = sadd.s32 %s179, 1
    %p183 = scmp.eq.s32.totalorder %s19, 1
    %p184 = scmp.ne.s32.totalorder %s179, %s181
    %p185 = scmp.eq.s32.totalorder %s19, 0
    %p186 = por %p184, %p185
    %p187 = scmp.ne.s32.totalorder %s179, %s181
    %p188 = scmp.eq.s32.totalorder %s24, 1
    %p189 = por %p187, %p188
    %p190 = scmp.ne.s32.totalorder %s181, %s182
    %p191 = scmp.eq.s32.totalorder %s24, 0
    %p192 = por %p190, %p191
    %p193 = scmp.ne.s32.totalorder %s181, %s182
    %p194 = scmp.eq.s32.totalorder %s25, 1
    %p195 = por %p193, %p194
    %p197 = scmp.ne.s32.totalorder %s182, %s196
    %p198 = scmp.eq.s32.totalorder %s25, 0
    %p199 = por %p197, %p198
    %s201 = sadd.s32 %s200, 1
    %p204 = scmp.eq.s32.totalorder %s19, 1
    %p205 = scmp.ne.s32.totalorder %s200, %s202
    %p206 = scmp.eq.s32.totalorder %s19, 0
    %p207 = por %p205, %p206
    %p208 = scmp.ne.s32.totalorder %s200, %s202
    %p209 = scmp.eq.s32.totalorder %s24, 1
    %p210 = por %p208, %p209
    %p211 = scmp.ne.s32.totalorder %s202, %s203
    %p212 = scmp.eq.s32.totalorder %s24, 0
    %p213 = por %p211, %p212
    %p214 = scmp.ne.s32.totalorder %s202, %s203
    %p215 = scmp.eq.s32.totalorder %s25, 1
    %p216 = por %p214, %p215
    %p218 = scmp.ne.s32.totalorder %s203, %s217
    %p219 = scmp.eq.s32.totalorder %s25, 0
    %p220 = por %p218, %p219
    %s222 = sadd.s32 %s221, 1
    %p225 = scmp.eq.s32.totalorder %s19, 1
    %p226 = scmp.ne.s32.totalorder %s221, %s223
    %p227 = scmp.eq.s32.totalorder %s19, 0
    %p228 = por %p226, %p227
    %p229 = scmp.ne.s32.totalorder %s221, %s223
    %p230 = scmp.eq.s32.totalorder %s24, 1
    %p231 = por %p229, %p230
    %p232 = scmp.ne.s32.totalorder %s223, %s224
    %p233 = scmp.eq.s32.totalorder %s24, 0
    %p234 = por %p232, %p233
    %p235 = scmp.ne.s32.totalorder %s223, %s224
    %p236 = scmp.eq.s32.totalorder %s25, 1
    %p237 = por %p235, %p236
    %p239 = scmp.ne.s32.totalorder %s224, %s238
    %p240 = scmp.eq.s32.totalorder %s25, 0
    %p241 = por %p239, %p240
    %s243 = sadd.s32 %s242, 1
    %p246 = scmp.eq.s32.totalorder %s19, 1
    %p247 = scmp.ne.s32.totalorder %s242, %s244
    %p248 = scmp.eq.s32.totalorder %s19, 0
    %p249 = por %p247, %p248
    %p250 = scmp.ne.s32.totalorder %s242, %s244
    %p251 = scmp.eq.s32.totalorder %s24, 1
    %p252 = por %p250, %p251
    %p253 = scmp.ne.s32.totalorder %s244, %s245
    %p254 = scmp.eq.s32.totalorder %s24, 0
    %p255 = por %p253, %p254
    %p256 = scmp.ne.s32.totalorder %s244, %s245
    %p257 = scmp.eq.s32.totalorder %s25, 1
    %p258 = por %p256, %p257
    %p260 = scmp.ne.s32.totalorder %s245, %s259
    %p261 = scmp.eq.s32.totalorder %s25, 0
    %p262 = por %p260, %p261
    %s264 = sadd.s32 %s263, 1
    %p267 = scmp.eq.s32.totalorder %s19, 1
    %p268 = scmp.ne.s32.totalorder %s263, %s265
    %p269 = scmp.eq.s32.totalorder %s19, 0
    %p270 = por %p268, %p269
    %p271 = scmp.ne.s32.totalorder %s263, %s265
    %p272 = scmp.eq.s32.totalorder %s24, 1
    %p273 = por %p271, %p272
    %p274 = scmp.ne.s32.totalorder %s265, %s266
    %p275 = scmp.eq.s32.totalorder %s24, 0
    %p276 = por %p274, %p275
    %p277 = scmp.ne.s32.totalorder %s265, %s266
    %p278 = scmp.eq.s32.totalorder %s25, 1
    %p279 = por %p277, %p278
    %p281 = scmp.ne.s32.totalorder %s266, %s280
    %p282 = scmp.eq.s32.totalorder %s25, 0
    %p283 = por %p281, %p282
    %s285 = sadd.s32 %s284, 1
    %p288 = scmp.eq.s32.totalorder %s19, 1
    %p289 = scmp.ne.s32.totalorder %s284, %s286
    %p290 = scmp.eq.s32.totalorder %s19, 0
    %p291 = por %p289, %p290
    %p292 = scmp.ne.s32.totalorder %s284, %s286
    %p293 = scmp.eq.s32.totalorder %s24, 1
    %p294 = por %p292, %p293
    %p295 = scmp.ne.s32.totalorder %s286, %s287
    %p296 = scmp.eq.s32.totalorder %s24, 0
    %p297 = por %p295, %p296
    %p298 = scmp.ne.s32.totalorder %s286, %s287
    %p299 = scmp.eq.s32.totalorder %s25, 1
    %p300 = por %p298, %p299
    %p302 = scmp.ne.s32.totalorder %s287, %s301
    %p303 = scmp.eq.s32.totalorder %s25, 0
    %p304 = por %p302, %p303
    %s305 = ssub.s32 %s19, %s26
    %p306 = scmp.eq.s32.totalorder %s305, 0
    %s308 = sadd.s32 %s307, 1
    %s309 = scalar_select %p306, %s307, %s308
    %p312 = pneg %p306
    %p313 = scmp.eq.s32.totalorder %s19, 1
    %p314 = por %p312, %p313
    %p315 = scmp.ne.s32.totalorder %s307, %s310
    %p316 = scmp.eq.s32.totalorder %s19, 0
    %p317 = por %p315, %p316
    %p318 = scmp.ne.s32.totalorder %s307, %s310
    %p319 = scmp.eq.s32.totalorder %s24, 1
    %p320 = por %p318, %p319
    %p321 = scmp.ne.s32.totalorder %s310, %s311
    %p322 = scmp.eq.s32.totalorder %s24, 0
    %p323 = por %p321, %p322
    %p324 = scmp.ne.s32.totalorder %s310, %s311
    %p325 = scmp.eq.s32.totalorder %s25, 1
    %p326 = por %p324, %p325
    %p328 = scmp.ne.s32.totalorder %s311, %s327
    %p329 = scmp.eq.s32.totalorder %s25, 0
    %p330 = por %p328, %p329
    %p331 = scmp.le.s32.totalorder 1, %s19
    %p332 = scmp.lt.s32.totalorder %s19, 3
    %p333 = pnand %p331, %p332
    %p334 = pneg %p333
    // Predicated region
    $region9: #{decoder_block_pallas.1} parent=5 // pred_check
      _
    $region10: #{decoder_block_pallas.1} parent=5 // pred_check_branch
      %336 = sbr.rel (%p333) target = $region12
    $region11: #{decoder_block_pallas.1} parent=5 // pred_region
      %s337 = ssub.s32 %s19, 1
      // Predicated region
      $region13: #{decoder_block_pallas.1} parent=11 // pred_check
        %p338 = pneg %p66
      $region14: #{decoder_block_pallas.1} parent=11 // pred_check_branch
        %340 = sbr.rel (%p338) target = $region16
      $region15: #{decoder_block_pallas.1} parent=11 // pred_region
        _
      $region16: #{decoder_block_pallas.1} parent=11 // pred_fallthru
        _
      // Predicated region
      $region17: #{decoder_block_pallas.1} parent=11 // pred_check
        %p341 = pneg %p87
      $region18: #{decoder_block_pallas.1} parent=11 // pred_check_branch
        %343 = sbr.rel (%p341) target = $region20
      $region19: #{decoder_block_pallas.1} parent=11 // pred_region
        _
      $region20: #{decoder_block_pallas.1} parent=11 // pred_fallthru
        _
      // Predicated region
      $region21: #{decoder_block_pallas.1} parent=11 // pred_check
        %p344 = pneg %p108
      $region22: #{decoder_block_pallas.1} parent=11 // pred_check_branch
        %346 = sbr.rel (%p344) target = $region24
      $region23: #{decoder_block_pallas.1} parent=11 // pred_region
        _
      $region24: #{decoder_block_pallas.1} parent=11 // pred_fallthru
        _
      // Predicated region
      $region25: #{decoder_block_pallas.1} parent=11 // pred_check
        %p347 = pneg %p129
      $region26: #{decoder_block_pallas.1} parent=11 // pred_check_branch
        %349 = sbr.rel (%p347) target = $region28
      $region27: #{decoder_block_pallas.1} parent=11 // pred_region
        _
      $region28: #{decoder_block_pallas.1} parent=11 // pred_fallthru
        _
      // Predicated region
      $region29: #{decoder_block_pallas.1} parent=11 // pred_check
        %p350 = pneg %p150
      $region30: #{decoder_block_pallas.1} parent=11 // pred_check_branch
        %352 = sbr.rel (%p350) target = $region32
      $region31: #{decoder_block_pallas.1} parent=11 // pred_region
        _
      $region32: #{decoder_block_pallas.1} parent=11 // pred_fallthru
        _
      // Predicated region
      $region33: #{decoder_block_pallas.1} parent=11 // pred_check
        %p353 = pneg %p171
      $region34: #{decoder_block_pallas.1} parent=11 // pred_check_branch
        %355 = sbr.rel (%p353) target = $region36
      $region35: #{decoder_block_pallas.1} parent=11 // pred_region
        _
      $region36: #{decoder_block_pallas.1} parent=11 // pred_fallthru
        _
      // Predicated region
      $region37: #{decoder_block_pallas.1} parent=11 // pred_check
        %p356 = pneg %p192
      $region38: #{decoder_block_pallas.1} parent=11 // pred_check_branch
        %358 = sbr.rel (%p356) target = $region40
      $region39: #{decoder_block_pallas.1} parent=11 // pred_region
        _
      $region40: #{decoder_block_pallas.1} parent=11 // pred_fallthru
        _
      // Predicated region
      $region41: #{decoder_block_pallas.1} parent=11 // pred_check
        %p359 = pneg %p213
      $region42: #{decoder_block_pallas.1} parent=11 // pred_check_branch
        %361 = sbr.rel (%p359) target = $region44
      $region43: #{decoder_block_pallas.1} parent=11 // pred_region
        _
      $region44: #{decoder_block_pallas.1} parent=11 // pred_fallthru
        _
      // Predicated region
      $region45: #{decoder_block_pallas.1} parent=11 // pred_check
        %p362 = pneg %p234
      $region46: #{decoder_block_pallas.1} parent=11 // pred_check_branch
        %364 = sbr.rel (%p362) target = $region48
      $region47: #{decoder_block_pallas.1} parent=11 // pred_region
        _
      $region48: #{decoder_block_pallas.1} parent=11 // pred_fallthru
        _
      // Predicated region
      $region49: #{decoder_block_pallas.1} parent=11 // pred_check
        %p365 = pneg %p255
      $region50: #{decoder_block_pallas.1} parent=11 // pred_check_branch
        %367 = sbr.rel (%p365) target = $region52
      $region51: #{decoder_block_pallas.1} parent=11 // pred_region
        _
      $region52: #{decoder_block_pallas.1} parent=11 // pred_fallthru
        _
      // Predicated region
      $region53: #{decoder_block_pallas.1} parent=11 // pred_check
        %p368 = pneg %p276
      $region54: #{decoder_block_pallas.1} parent=11 // pred_check_branch
        %370 = sbr.rel (%p368) target = $region56
      $region55: #{decoder_block_pallas.1} parent=11 // pred_region
        _
      $region56: #{decoder_block_pallas.1} parent=11 // pred_fallthru
        _
      // Predicated region
      $region57: #{decoder_block_pallas.1} parent=11 // pred_check
        %p371 = pneg %p297
      $region58: #{decoder_block_pallas.1} parent=11 // pred_check_branch
        %373 = sbr.rel (%p371) target = $region60
      $region59: #{decoder_block_pallas.1} parent=11 // pred_region
        _
      $region60: #{decoder_block_pallas.1} parent=11 // pred_fallthru
        _
    $region12: #{decoder_block_pallas.1} parent=5 // pred_fallthru
      _
    %p374 = scmp.lt.s32.totalorder %s19, 2
    // Predicated region
    $region61: #{decoder_block_pallas.1} parent=5 // pred_check
      %p375 = pneg %p374
    $region62: #{decoder_block_pallas.1} parent=5 // pred_check_branch
      %377 = sbr.rel (%p375) target = $region64
    $region63: #{decoder_block_pallas.1} parent=5 // pred_region
      // Predicated region
      $region65: #{decoder_block_pallas.1} parent=63 // pred_check
        %p378 = pneg %p39
      $region66: #{decoder_block_pallas.1} parent=63 // pred_check_branch
        %380 = sbr.rel (%p378) target = $region68
      $region67: #{decoder_block_pallas.1} parent=63 // pred_region
        %p381 = scmp.lt.s32.totalorder %s19, 1
        %s382 = scalar_select %p381, %s19, 1
        %s383 = smul.addr %s382, 8
        %s384 = scalar_lea.vmem %s0, %s383
      $region68: #{decoder_block_pallas.1} parent=63 // pred_fallthru
        _
    $region64: #{decoder_block_pallas.1} parent=5 // pred_fallthru
      _
    %p385 = scmp.le.s32.totalorder 1, %s19
    %p386 = scmp.lt.s32.totalorder %s19, 3
    %p387 = pnand %p385, %p386
    %p388 = pneg %p387
    // Predicated region
    $region69: #{decoder_block_pallas.1} parent=5 // pred_check
      _
    $region70: #{decoder_block_pallas.1} parent=5 // pred_check_branch
      %390 = sbr.rel (%p387) target = $region72
    $region71: #{decoder_block_pallas.1} parent=5 // pred_region
      %s391 = ssub.s32 %s19, 1
      %p392 = scmp.lt.s32.totalorder %s24, 1
      %s393 = scalar_select %p392, %s24, 1
      %s394 = smul.addr %s393, 8
      %s395 = scalar_lea.vmem %s0, %s394
      %p396 = pneg %p45
      %p397 = pneg %p42
      %p398 = pneg %p66
      %p399 = pneg %p63
      %p400 = pneg %p87
      %p401 = pneg %p84
      %p402 = pneg %p108
      %p403 = pneg %p105
      %p404 = pneg %p129
      %p405 = pneg %p126
      %p406 = pneg %p150
      %p407 = pneg %p147
      %p408 = pneg %p171
      %p409 = pneg %p168
      %p410 = pneg %p192
      %p411 = pneg %p189
      %p412 = pneg %p213
      %p413 = pneg %p210
      %p414 = pneg %p234
      %p415 = pneg %p231
      %p416 = pneg %p255
      %p417 = pneg %p252
      %p418 = pneg %p276
      %p419 = pneg %p273
      %p420 = pneg %p297
      %p421 = pneg %p294
      %p422 = pneg %p323
      %p423 = pneg %p320
      %p424 = scmp.lt.s32.totalorder %s24, 1
      %s425 = scalar_select %p424, %s24, 1
      %s426 = smul.addr %s425, 8
      %s427 = scalar_lea.vmem %s13, %s426
      %p428 = scmp.lt.s32.totalorder %s24, 1
      %s429 = scalar_select %p428, %s24, 1
      %s430 = smul.addr %s429, 8
      %s431 = scalar_lea.vmem %s0, %s430
      %p432 = scmp.lt.s32.totalorder %s24, 1
      %s433 = scalar_select %p432, %s24, 1
      %s434 = smul.addr %s433, 8
      %s435 = scalar_lea.vmem %s13, %s434
      %v437 = vld [vmem:[%s431] sm:$0xff]
      %v438 = vpack.c.bf16 %v437, %v437
      %v439 = vld [vmem:[%s1] sm:$0xff]
      %v440 = vld [vmem:[%s1 + $0x8] sm:$0xff]
      %v441 = vld [vmem:[%s1 + $0x10] sm:$0xff]
      %v442 = vld [vmem:[%s1 + $0x18] sm:$0xff]
      %v443 = vld [vmem:[%s1 + $0x20] sm:$0xff]
      %v444 = vld [vmem:[%s1 + $0x28] sm:$0xff]
      %v445 = vld [vmem:[%s1 + $0x30] sm:$0xff]
      %v446 = vld [vmem:[%s1 + $0x38] sm:$0xff]
      %v447 = vld [vmem:[%s1 + $0x40] sm:$0xff]
      %v448 = vld [vmem:[%s1 + $0x48] sm:$0xff]
      %v449 = vld [vmem:[%s1 + $0x50] sm:$0xff]
      %v450 = vld [vmem:[%s1 + $0x58] sm:$0xff]
      %v451 = vld [vmem:[%s1 + $0x60] sm:$0xff]
      %v452 = vld [vmem:[%s1 + $0x68] sm:$0xff]
      %v453 = vld [vmem:[%s1 + $0x70] sm:$0xff]
      %v454 = vld [vmem:[%s1 + $0x78] sm:$0xff]
      %v455 = vld [vmem:[%s1 + $0x80] sm:$0xff]
      %v456 = vld [vmem:[%s1 + $0x88] sm:$0xff]
      %v457 = vld [vmem:[%s1 + $0x90] sm:$0xff]
      %v458 = vld [vmem:[%s1 + $0x98] sm:$0xff]
      %v459 = vld [vmem:[%s1 + $0xa0] sm:$0xff]
      %v460 = vld [vmem:[%s1 + $0xa8] sm:$0xff]
      %v461 = vld [vmem:[%s1 + $0xb0] sm:$0xff]
      %v462 = vld [vmem:[%s1 + $0xb8] sm:$0xff]
      %v463 = vld [vmem:[%s1 + $0xc0] sm:$0xff]
      %v464 = vld [vmem:[%s1 + $0xc8] sm:$0xff]
      %v465 = vld [vmem:[%s1 + $0xd0] sm:$0xff]
      %v466 = vld [vmem:[%s1 + $0xd8] sm:$0xff]
      %v467 = vld [vmem:[%s1 + $0xe0] sm:$0xff]
      %v468 = vld [vmem:[%s1 + $0xe8] sm:$0xff]
      %v469 = vld [vmem:[%s1 + $0xf0] sm:$0xff]
      %v470 = vld [vmem:[%s1 + $0xf8] sm:$0xff]
      %v471 = vld [vmem:[%s1 + $0x100] sm:$0xff]
      %v472 = vld [vmem:[%s1 + $0x108] sm:$0xff]
      %v473 = vld [vmem:[%s1 + $0x110] sm:$0xff]
      %v474 = vld [vmem:[%s1 + $0x118] sm:$0xff]
      %v475 = vld [vmem:[%s1 + $0x120] sm:$0xff]
      %v476 = vld [vmem:[%s1 + $0x128] sm:$0xff]
      %v477 = vld [vmem:[%s1 + $0x130] sm:$0xff]
      %v478 = vld [vmem:[%s1 + $0x138] sm:$0xff]
      %v479 = vld [vmem:[%s1 + $0x140] sm:$0xff]
      %v480 = vld [vmem:[%s1 + $0x148] sm:$0xff]
      %v481 = vld [vmem:[%s1 + $0x150] sm:$0xff]
      %v482 = vld [vmem:[%s1 + $0x158] sm:$0xff]
      %v483 = vld [vmem:[%s1 + $0x160] sm:$0xff]
      %v484 = vld [vmem:[%s1 + $0x168] sm:$0xff]
      %v485 = vld [vmem:[%s1 + $0x170] sm:$0xff]
      %v486 = vld [vmem:[%s1 + $0x178] sm:$0xff]
      %v487 = vld [vmem:[%s1 + $0x180] sm:$0xff]
      %v488 = vld [vmem:[%s1 + $0x188] sm:$0xff]
      %v489 = vld [vmem:[%s1 + $0x190] sm:$0xff]
      %v490 = vld [vmem:[%s1 + $0x198] sm:$0xff]
      %v491 = vld [vmem:[%s1 + $0x1a0] sm:$0xff]
      %v492 = vld [vmem:[%s1 + $0x1a8] sm:$0xff]
      %v493 = vld [vmem:[%s1 + $0x1b0] sm:$0xff]
      %v494 = vld [vmem:[%s1 + $0x1b8] sm:$0xff]
      %v495 = vld [vmem:[%s1 + $0x1c0] sm:$0xff]
      %v496 = vld [vmem:[%s1 + $0x1c8] sm:$0xff]
      %v497 = vld [vmem:[%s1 + $0x1d0] sm:$0xff]
      %v498 = vld [vmem:[%s1 + $0x1d8] sm:$0xff]
      %v499 = vld [vmem:[%s1 + $0x1e0] sm:$0xff]
      %v500 = vld [vmem:[%s1 + $0x1e8] sm:$0xff]
      %v501 = vld [vmem:[%s1 + $0x1f0] sm:$0xff]
      %v502 = vld [vmem:[%s1 + $0x1f8] sm:$0xff]
      %v503 = vld [vmem:[%s1 + $0x200] sm:$0xff]
      %v504 = vld [vmem:[%s1 + $0x208] sm:$0xff]
      %v505 = vld [vmem:[%s1 + $0x210] sm:$0xff]
      %v506 = vld [vmem:[%s1 + $0x218] sm:$0xff]
      %v507 = vld [vmem:[%s1 + $0x220] sm:$0xff]
      %v508 = vld [vmem:[%s1 + $0x228] sm:$0xff]
      %v509 = vld [vmem:[%s1 + $0x230] sm:$0xff]
      %v510 = vld [vmem:[%s1 + $0x238] sm:$0xff]
      %v511 = vld [vmem:[%s1 + $0x240] sm:$0xff]
      %v512 = vld [vmem:[%s1 + $0x248] sm:$0xff]
      %v513 = vld [vmem:[%s1 + $0x250] sm:$0xff]
      %v514 = vld [vmem:[%s1 + $0x258] sm:$0xff]
      %v515 = vld [vmem:[%s1 + $0x260] sm:$0xff]
      %v516 = vld [vmem:[%s1 + $0x268] sm:$0xff]
      %v517 = vld [vmem:[%s1 + $0x270] sm:$0xff]
      %v518 = vld [vmem:[%s1 + $0x278] sm:$0xff]
      %v519 = vld [vmem:[%s1 + $0x280] sm:$0xff]
      %v520 = vld [vmem:[%s1 + $0x288] sm:$0xff]
      %v521 = vld [vmem:[%s1 + $0x290] sm:$0xff]
      %v522 = vld [vmem:[%s1 + $0x298] sm:$0xff]
      %v523 = vld [vmem:[%s1 + $0x2a0] sm:$0xff]
      %v524 = vld [vmem:[%s1 + $0x2a8] sm:$0xff]
      %v525 = vld [vmem:[%s1 + $0x2b0] sm:$0xff]
      %v526 = vld [vmem:[%s1 + $0x2b8] sm:$0xff]
      %v527 = vld [vmem:[%s1 + $0x2c0] sm:$0xff]
      %v528 = vld [vmem:[%s1 + $0x2c8] sm:$0xff]
      %v529 = vld [vmem:[%s1 + $0x2d0] sm:$0xff]
      %v530 = vld [vmem:[%s1 + $0x2d8] sm:$0xff]
      %v531 = vld [vmem:[%s1 + $0x2e0] sm:$0xff]
      %v532 = vld [vmem:[%s1 + $0x2e8] sm:$0xff]
      %v533 = vld [vmem:[%s1 + $0x2f0] sm:$0xff]
      %v534 = vld [vmem:[%s1 + $0x2f8] sm:$0xff]
      %v535 = vld [vmem:[%s1 + $0x300] sm:$0xff]
      %v536 = vld [vmem:[%s1 + $0x308] sm:$0xff]
      %v537 = vld [vmem:[%s1 + $0x310] sm:$0xff]
      %v538 = vld [vmem:[%s1 + $0x318] sm:$0xff]
      %v539 = vld [vmem:[%s1 + $0x320] sm:$0xff]
      %v540 = vld [vmem:[%s1 + $0x328] sm:$0xff]
      %v541 = vld [vmem:[%s1 + $0x330] sm:$0xff]
      %v542 = vld [vmem:[%s1 + $0x338] sm:$0xff]
      %v543 = vld [vmem:[%s1 + $0x340] sm:$0xff]
      %v544 = vld [vmem:[%s1 + $0x348] sm:$0xff]
      %v545 = vld [vmem:[%s1 + $0x350] sm:$0xff]
      %v546 = vld [vmem:[%s1 + $0x358] sm:$0xff]
      %v547 = vld [vmem:[%s1 + $0x360] sm:$0xff]
      %v548 = vld [vmem:[%s1 + $0x368] sm:$0xff]
      %v549 = vld [vmem:[%s1 + $0x370] sm:$0xff]
      %v550 = vld [vmem:[%s1 + $0x378] sm:$0xff]
      %v551 = vld [vmem:[%s1 + $0x380] sm:$0xff]
      %v552 = vld [vmem:[%s1 + $0x388] sm:$0xff]
      %v553 = vld [vmem:[%s1 + $0x390] sm:$0xff]
      %v554 = vld [vmem:[%s1 + $0x398] sm:$0xff]
      %v555 = vld [vmem:[%s1 + $0x3a0] sm:$0xff]
      %v556 = vld [vmem:[%s1 + $0x3a8] sm:$0xff]
      %v557 = vld [vmem:[%s1 + $0x3b0] sm:$0xff]
      %v558 = vld [vmem:[%s1 + $0x3b8] sm:$0xff]
      %v559 = vld [vmem:[%s1 + $0x3c0] sm:$0xff]
      %v560 = vld [vmem:[%s1 + $0x3c8] sm:$0xff]
      %v561 = vld [vmem:[%s1 + $0x3d0] sm:$0xff]
      %v562 = vld [vmem:[%s1 + $0x3d8] sm:$0xff]
      %v563 = vld [vmem:[%s1 + $0x3e0] sm:$0xff]
      %v564 = vld [vmem:[%s1 + $0x3e8] sm:$0xff]
      %v565 = vld [vmem:[%s1 + $0x3f0] sm:$0xff]
      %v566 = vld [vmem:[%s1 + $0x3f8] sm:$0xff]
      %v567 = vld [vmem:[%s1 + $0x400] sm:$0xff]
      %v568 = vld [vmem:[%s1 + $0x408] sm:$0xff]
      %v569 = vld [vmem:[%s1 + $0x410] sm:$0xff]
      %v570 = vld [vmem:[%s1 + $0x418] sm:$0xff]
      %v571 = vld [vmem:[%s1 + $0x420] sm:$0xff]
      %v572 = vld [vmem:[%s1 + $0x428] sm:$0xff]
      %v573 = vld [vmem:[%s1 + $0x430] sm:$0xff]
      %v574 = vld [vmem:[%s1 + $0x438] sm:$0xff]
      %v575 = vld [vmem:[%s1 + $0x440] sm:$0xff]
      %v576 = vld [vmem:[%s1 + $0x448] sm:$0xff]
      %v577 = vld [vmem:[%s1 + $0x450] sm:$0xff]
      %v578 = vld [vmem:[%s1 + $0x458] sm:$0xff]
      %v579 = vld [vmem:[%s1 + $0x460] sm:$0xff]
      %v580 = vld [vmem:[%s1 + $0x468] sm:$0xff]
      %v581 = vld [vmem:[%s1 + $0x470] sm:$0xff]
      %v582 = vld [vmem:[%s1 + $0x478] sm:$0xff]
      %v583 = vld [vmem:[%s1 + $0x480] sm:$0xff]
      %v584 = vld [vmem:[%s1 + $0x488] sm:$0xff]
      %v585 = vld [vmem:[%s1 + $0x490] sm:$0xff]
      %v586 = vld [vmem:[%s1 + $0x498] sm:$0xff]
      %v587 = vld [vmem:[%s1 + $0x4a0] sm:$0xff]
      %v588 = vld [vmem:[%s1 + $0x4a8] sm:$0xff]
      %v589 = vld [vmem:[%s1 + $0x4b0] sm:$0xff]
      %v590 = vld [vmem:[%s1 + $0x4b8] sm:$0xff]
      %v591 = vld [vmem:[%s1 + $0x4c0] sm:$0xff]
      %v592 = vld [vmem:[%s1 + $0x4c8] sm:$0xff]
      %v593 = vld [vmem:[%s1 + $0x4d0] sm:$0xff]
      %v594 = vld [vmem:[%s1 + $0x4d8] sm:$0xff]
      %v595 = vld [vmem:[%s1 + $0x4e0] sm:$0xff]
      %v596 = vld [vmem:[%s1 + $0x4e8] sm:$0xff]
      %v597 = vld [vmem:[%s1 + $0x4f0] sm:$0xff]
      %v598 = vld [vmem:[%s1 + $0x4f8] sm:$0xff]
      %v599 = vld [vmem:[%s1 + $0x500] sm:$0xff]
      %v600 = vld [vmem:[%s1 + $0x508] sm:$0xff]
      %v601 = vld [vmem:[%s1 + $0x510] sm:$0xff]
      %v602 = vld [vmem:[%s1 + $0x518] sm:$0xff]
      %v603 = vld [vmem:[%s1 + $0x520] sm:$0xff]
      %v604 = vld [vmem:[%s1 + $0x528] sm:$0xff]
      %v605 = vld [vmem:[%s1 + $0x530] sm:$0xff]
      %v606 = vld [vmem:[%s1 + $0x538] sm:$0xff]
      %v607 = vld [vmem:[%s1 + $0x540] sm:$0xff]
      %v608 = vld [vmem:[%s1 + $0x548] sm:$0xff]
      %v609 = vld [vmem:[%s1 + $0x550] sm:$0xff]
      %v610 = vld [vmem:[%s1 + $0x558] sm:$0xff]
      %v611 = vld [vmem:[%s1 + $0x560] sm:$0xff]
      %v612 = vld [vmem:[%s1 + $0x568] sm:$0xff]
      %v613 = vld [vmem:[%s1 + $0x570] sm:$0xff]
      %v614 = vld [vmem:[%s1 + $0x578] sm:$0xff]
      %v615 = vld [vmem:[%s1 + $0x580] sm:$0xff]
      %v616 = vld [vmem:[%s1 + $0x588] sm:$0xff]
      %v617 = vld [vmem:[%s1 + $0x590] sm:$0xff]
      %v618 = vld [vmem:[%s1 + $0x598] sm:$0xff]
      %v619 = vld [vmem:[%s1 + $0x5a0] sm:$0xff]
      %v620 = vld [vmem:[%s1 + $0x5a8] sm:$0xff]
      %v621 = vld [vmem:[%s1 + $0x5b0] sm:$0xff]
      %v622 = vld [vmem:[%s1 + $0x5b8] sm:$0xff]
      %v623 = vld [vmem:[%s1 + $0x5c0] sm:$0xff]
      %v624 = vld [vmem:[%s1 + $0x5c8] sm:$0xff]
      %v625 = vld [vmem:[%s1 + $0x5d0] sm:$0xff]
      %v626 = vld [vmem:[%s1 + $0x5d8] sm:$0xff]
      %v627 = vld [vmem:[%s1 + $0x5e0] sm:$0xff]
      %v628 = vld [vmem:[%s1 + $0x5e8] sm:$0xff]
      %v629 = vld [vmem:[%s1 + $0x5f0] sm:$0xff]
      %v630 = vld [vmem:[%s1 + $0x5f8] sm:$0xff]
      %v631 = vld [vmem:[%s2] sm:$0xff]
      %v632 = vld [vmem:[%s2 + $0x8] sm:$0xff]
      %v633 = vld [vmem:[%s2 + $0x10] sm:$0xff]
      %v637 = vperm.slane %v631, 0
      %v638 = vperm.slane %v631, 1
      %v639 = vperm.slane %v631, 2
      %v640 = vperm.slane %v631, 3
      %v641 = vperm.slane %v631, 4
      %v642 = vperm.slane %v631, 5
      %v643 = vperm.slane %v631, 6
      %v644 = vperm.slane %v631, 7
      %v645 = vperm.slane %v632, 0
      %v646 = vperm.slane %v632, 1
      %v647 = vperm.slane %v632, 2
      %v648 = vperm.slane %v632, 3
      %v649 = vperm.slane %v632, 4
      %v650 = vperm.slane %v632, 5
      %v651 = vperm.slane %v632, 6
      %v652 = vperm.slane %v632, 7
      %v653 = vperm.slane %v633, 0
      %v654 = vperm.slane %v633, 1
      %v655 = vperm.slane %v633, 2
      %v656 = vperm.slane %v633, 3
      %v657 = vperm.slane %v633, 4
      %v658 = vperm.slane %v633, 5
      %v659 = vperm.slane %v633, 6
      %v660 = vperm.slane %v633, 7
      %v877 = vunpack.c.l.b16 %v439
      %v878 = vunpack.c.h.b16 %v439
      %v879 = vunpack.c.l.b16 %v440
      %v880 = vunpack.c.h.b16 %v440
      %v881 = vunpack.c.l.b16 %v441
      %v882 = vunpack.c.h.b16 %v441
      %v883 = vunpack.c.l.b16 %v442
      %v884 = vunpack.c.h.b16 %v442
      %v885 = vunpack.c.l.b16 %v443
      %v886 = vunpack.c.h.b16 %v443
      %v887 = vunpack.c.l.b16 %v444
      %v888 = vunpack.c.h.b16 %v444
      %v889 = vunpack.c.l.b16 %v445
      %v890 = vunpack.c.h.b16 %v445
      %v891 = vunpack.c.l.b16 %v446
      %v892 = vunpack.c.h.b16 %v446
      %v893 = vunpack.c.l.b16 %v447
      %v894 = vunpack.c.h.b16 %v447
      %v895 = vunpack.c.l.b16 %v448
      %v896 = vunpack.c.h.b16 %v448
      %v897 = vunpack.c.l.b16 %v449
      %v898 = vunpack.c.h.b16 %v449
      %v899 = vunpack.c.l.b16 %v450
      %v900 = vunpack.c.h.b16 %v450
      %v901 = vunpack.c.l.b16 %v451
      %v902 = vunpack.c.h.b16 %v451
      %v903 = vunpack.c.l.b16 %v452
      %v904 = vunpack.c.h.b16 %v452
      %v905 = vunpack.c.l.b16 %v453
      %v906 = vunpack.c.h.b16 %v453
      %v907 = vunpack.c.l.b16 %v454
      %v908 = vunpack.c.h.b16 %v454
      %v909 = vunpack.c.l.b16 %v455
      %v910 = vunpack.c.h.b16 %v455
      %v911 = vunpack.c.l.b16 %v456
      %v912 = vunpack.c.h.b16 %v456
      %v913 = vunpack.c.l.b16 %v457
      %v914 = vunpack.c.h.b16 %v457
      %v915 = vunpack.c.l.b16 %v458
      %v916 = vunpack.c.h.b16 %v458
      %v917 = vunpack.c.l.b16 %v459
      %v918 = vunpack.c.h.b16 %v459
      %v919 = vunpack.c.l.b16 %v460
      %v920 = vunpack.c.h.b16 %v460
      %v921 = vunpack.c.l.b16 %v461
      %v922 = vunpack.c.h.b16 %v461
      %v923 = vunpack.c.l.b16 %v462
      %v924 = vunpack.c.h.b16 %v462
      %v925 = vunpack.c.l.b16 %v463
      %v926 = vunpack.c.h.b16 %v463
      %v927 = vunpack.c.l.b16 %v464
      %v928 = vunpack.c.h.b16 %v464
      %v929 = vunpack.c.l.b16 %v465
      %v930 = vunpack.c.h.b16 %v465
      %v931 = vunpack.c.l.b16 %v466
      %v932 = vunpack.c.h.b16 %v466
      %v933 = vunpack.c.l.b16 %v467
      %v934 = vunpack.c.h.b16 %v467
      %v935 = vunpack.c.l.b16 %v468
      %v936 = vunpack.c.h.b16 %v468
      %v937 = vunpack.c.l.b16 %v469
      %v938 = vunpack.c.h.b16 %v469
      %v939 = vunpack.c.l.b16 %v470
      %v940 = vunpack.c.h.b16 %v470
      %v941 = vunpack.c.l.b16 %v471
      %v942 = vunpack.c.h.b16 %v471
      %v943 = vunpack.c.l.b16 %v472
      %v944 = vunpack.c.h.b16 %v472
      %v945 = vunpack.c.l.b16 %v473
      %v946 = vunpack.c.h.b16 %v473
      %v947 = vunpack.c.l.b16 %v474
      %v948 = vunpack.c.h.b16 %v474
      %v949 = vunpack.c.l.b16 %v475
      %v950 = vunpack.c.h.b16 %v475
      %v951 = vunpack.c.l.b16 %v476
      %v952 = vunpack.c.h.b16 %v476
      %v953 = vunpack.c.l.b16 %v477
      %v954 = vunpack.c.h.b16 %v477
      %v955 = vunpack.c.l.b16 %v478
      %v956 = vunpack.c.h.b16 %v478
      %v957 = vunpack.c.l.b16 %v479
      %v958 = vunpack.c.h.b16 %v479
      %v959 = vunpack.c.l.b16 %v480
      %v960 = vunpack.c.h.b16 %v480
      %v961 = vunpack.c.l.b16 %v481
      %v962 = vunpack.c.h.b16 %v481
      %v963 = vunpack.c.l.b16 %v482
      %v964 = vunpack.c.h.b16 %v482
      %v965 = vunpack.c.l.b16 %v483
      %v966 = vunpack.c.h.b16 %v483
      %v967 = vunpack.c.l.b16 %v484
      %v968 = vunpack.c.h.b16 %v484
      %v969 = vunpack.c.l.b16 %v485
      %v970 = vunpack.c.h.b16 %v485
      %v971 = vunpack.c.l.b16 %v486
      %v972 = vunpack.c.h.b16 %v486
      %v973 = vunpack.c.l.b16 %v487
      %v974 = vunpack.c.h.b16 %v487
      %v975 = vunpack.c.l.b16 %v488
      %v976 = vunpack.c.h.b16 %v488
      %v977 = vunpack.c.l.b16 %v489
      %v978 = vunpack.c.h.b16 %v489
      %v979 = vunpack.c.l.b16 %v490
      %v980 = vunpack.c.h.b16 %v490
      %v981 = vunpack.c.l.b16 %v491
      %v982 = vunpack.c.h.b16 %v491
      %v983 = vunpack.c.l.b16 %v492
      %v984 = vunpack.c.h.b16 %v492
      %v985 = vunpack.c.l.b16 %v493
      %v986 = vunpack.c.h.b16 %v493
      %v987 = vunpack.c.l.b16 %v494
      %v988 = vunpack.c.h.b16 %v494
      %v989 = vunpack.c.l.b16 %v495
      %v990 = vunpack.c.h.b16 %v495
      %v991 = vunpack.c.l.b16 %v496
      %v992 = vunpack.c.h.b16 %v496
      %v993 = vunpack.c.l.b16 %v497
      %v994 = vunpack.c.h.b16 %v497
      %v995 = vunpack.c.l.b16 %v498
      %v996 = vunpack.c.h.b16 %v498
      %v997 = vunpack.c.l.b16 %v499
      %v998 = vunpack.c.h.b16 %v499
      %v999 = vunpack.c.l.b16 %v500
      %v1000 = vunpack.c.h.b16 %v500
      %v1001 = vunpack.c.l.b16 %v501
      %v1002 = vunpack.c.h.b16 %v501
      %v1003 = vunpack.c.l.b16 %v502
      %v1004 = vunpack.c.h.b16 %v502
      %v1005 = vunpack.c.l.b16 %v503
      %v1006 = vunpack.c.h.b16 %v503
      %v1007 = vunpack.c.l.b16 %v504
      %v1008 = vunpack.c.h.b16 %v504
      %v1009 = vunpack.c.l.b16 %v505
      %v1010 = vunpack.c.h.b16 %v505
      %v1011 = vunpack.c.l.b16 %v506
      %v1012 = vunpack.c.h.b16 %v506
      %v1013 = vunpack.c.l.b16 %v507
      %v1014 = vunpack.c.h.b16 %v507
      %v1015 = vunpack.c.l.b16 %v508
      %v1016 = vunpack.c.h.b16 %v508
      %v1017 = vunpack.c.l.b16 %v509
      %v1018 = vunpack.c.h.b16 %v509
      %v1019 = vunpack.c.l.b16 %v510
      %v1020 = vunpack.c.h.b16 %v510
      %v1021 = vunpack.c.l.b16 %v511
      %v1022 = vunpack.c.h.b16 %v511
      %v1023 = vunpack.c.l.b16 %v512
      %v1024 = vunpack.c.h.b16 %v512
      %v1025 = vunpack.c.l.b16 %v513
      %v1026 = vunpack.c.h.b16 %v513
      %v1027 = vunpack.c.l.b16 %v514
      %v1028 = vunpack.c.h.b16 %v514
      %v1029 = vunpack.c.l.b16 %v515
      %v1030 = vunpack.c.h.b16 %v515
      %v1031 = vunpack.c.l.b16 %v516
      %v1032 = vunpack.c.h.b16 %v516
      %v1033 = vunpack.c.l.b16 %v517
      %v1034 = vunpack.c.h.b16 %v517
      %v1035 = vunpack.c.l.b16 %v518
      %v1036 = vunpack.c.h.b16 %v518
      %v1037 = vunpack.c.l.b16 %v519
      %v1038 = vunpack.c.h.b16 %v519
      %v1039 = vunpack.c.l.b16 %v520
      %v1040 = vunpack.c.h.b16 %v520
      %v1041 = vunpack.c.l.b16 %v521
      %v1042 = vunpack.c.h.b16 %v521
      %v1043 = vunpack.c.l.b16 %v522
      %v1044 = vunpack.c.h.b16 %v522
      %v1045 = vunpack.c.l.b16 %v523
      %v1046 = vunpack.c.h.b16 %v523
      %v1047 = vunpack.c.l.b16 %v524
      %v1048 = vunpack.c.h.b16 %v524
      %v1049 = vunpack.c.l.b16 %v525
      %v1050 = vunpack.c.h.b16 %v525
      %v1051 = vunpack.c.l.b16 %v526
      %v1052 = vunpack.c.h.b16 %v526
      %v1053 = vunpack.c.l.b16 %v527
      %v1054 = vunpack.c.h.b16 %v527
      %v1055 = vunpack.c.l.b16 %v528
      %v1056 = vunpack.c.h.b16 %v528
      %v1057 = vunpack.c.l.b16 %v529
      %v1058 = vunpack.c.h.b16 %v529
      %v1059 = vunpack.c.l.b16 %v530
      %v1060 = vunpack.c.h.b16 %v530
      %v1061 = vunpack.c.l.b16 %v531
      %v1062 = vunpack.c.h.b16 %v531
      %v1063 = vunpack.c.l.b16 %v532
      %v1064 = vunpack.c.h.b16 %v532
      %v1065 = vunpack.c.l.b16 %v533
      %v1066 = vunpack.c.h.b16 %v533
      %v1067 = vunpack.c.l.b16 %v534
      %v1068 = vunpack.c.h.b16 %v534
      %v1069 = vunpack.c.l.b16 %v535
      %v1070 = vunpack.c.h.b16 %v535
      %v1071 = vunpack.c.l.b16 %v536
      %v1072 = vunpack.c.h.b16 %v536
      %v1073 = vunpack.c.l.b16 %v537
      %v1074 = vunpack.c.h.b16 %v537
      %v1075 = vunpack.c.l.b16 %v538
      %v1076 = vunpack.c.h.b16 %v538
      %v1077 = vunpack.c.l.b16 %v539
      %v1078 = vunpack.c.h.b16 %v539
      %v1079 = vunpack.c.l.b16 %v540
      %v1080 = vunpack.c.h.b16 %v540
      %v1081 = vunpack.c.l.b16 %v541
      %v1082 = vunpack.c.h.b16 %v541
      %v1083 = vunpack.c.l.b16 %v542
      %v1084 = vunpack.c.h.b16 %v542
      %v1085 = vunpack.c.l.b16 %v543
      %v1086 = vunpack.c.h.b16 %v543
      %v1087 = vunpack.c.l.b16 %v544
      %v1088 = vunpack.c.h.b16 %v544
      %v1089 = vunpack.c.l.b16 %v545
      %v1090 = vunpack.c.h.b16 %v545
      %v1091 = vunpack.c.l.b16 %v546
      %v1092 = vunpack.c.h.b16 %v546
      %v1093 = vunpack.c.l.b16 %v547
      %v1094 = vunpack.c.h.b16 %v547
      %v1095 = vunpack.c.l.b16 %v548
      %v1096 = vunpack.c.h.b16 %v548
      %v1097 = vunpack.c.l.b16 %v549
      %v1098 = vunpack.c.h.b16 %v549
      %v1099 = vunpack.c.l.b16 %v550
      %v1100 = vunpack.c.h.b16 %v550
      %v1101 = vunpack.c.l.b16 %v551
      %v1102 = vunpack.c.h.b16 %v551
      %v1103 = vunpack.c.l.b16 %v552
      %v1104 = vunpack.c.h.b16 %v552
      %v1105 = vunpack.c.l.b16 %v553
      %v1106 = vunpack.c.h.b16 %v553
      %v1107 = vunpack.c.l.b16 %v554
      %v1108 = vunpack.c.h.b16 %v554
      %v1109 = vunpack.c.l.b16 %v555
      %v1110 = vunpack.c.h.b16 %v555
      %v1111 = vunpack.c.l.b16 %v556
      %v1112 = vunpack.c.h.b16 %v556
      %v1113 = vunpack.c.l.b16 %v557
      %v1114 = vunpack.c.h.b16 %v557
      %v1115 = vunpack.c.l.b16 %v558
      %v1116 = vunpack.c.h.b16 %v558
      %v1117 = vunpack.c.l.b16 %v559
      %v1118 = vunpack.c.h.b16 %v559
      %v1119 = vunpack.c.l.b16 %v560
      %v1120 = vunpack.c.h.b16 %v560
      %v1121 = vunpack.c.l.b16 %v561
      %v1122 = vunpack.c.h.b16 %v561
      %v1123 = vunpack.c.l.b16 %v562
      %v1124 = vunpack.c.h.b16 %v562
      %v1125 = vunpack.c.l.b16 %v563
      %v1126 = vunpack.c.h.b16 %v563
      %v1127 = vunpack.c.l.b16 %v564
      %v1128 = vunpack.c.h.b16 %v564
      %v1129 = vunpack.c.l.b16 %v565
      %v1130 = vunpack.c.h.b16 %v565
      %v1131 = vunpack.c.l.b16 %v566
      %v1132 = vunpack.c.h.b16 %v566
      %v1133 = vunpack.c.l.b16 %v567
      %v1134 = vunpack.c.h.b16 %v567
      %v1135 = vunpack.c.l.b16 %v568
      %v1136 = vunpack.c.h.b16 %v568
      %v1137 = vunpack.c.l.b16 %v569
      %v1138 = vunpack.c.h.b16 %v569
      %v1139 = vunpack.c.l.b16 %v570
      %v1140 = vunpack.c.h.b16 %v570
      %v1141 = vunpack.c.l.b16 %v571
      %v1142 = vunpack.c.h.b16 %v571
      %v1143 = vunpack.c.l.b16 %v572
      %v1144 = vunpack.c.h.b16 %v572
      %v1145 = vunpack.c.l.b16 %v573
      %v1146 = vunpack.c.h.b16 %v573
      %v1147 = vunpack.c.l.b16 %v574
      %v1148 = vunpack.c.h.b16 %v574
      %v1149 = vunpack.c.l.b16 %v575
      %v1150 = vunpack.c.h.b16 %v575
      %v1151 = vunpack.c.l.b16 %v576
      %v1152 = vunpack.c.h.b16 %v576
      %v1153 = vunpack.c.l.b16 %v577
      %v1154 = vunpack.c.h.b16 %v577
      %v1155 = vunpack.c.l.b16 %v578
      %v1156 = vunpack.c.h.b16 %v578
      %v1157 = vunpack.c.l.b16 %v579
      %v1158 = vunpack.c.h.b16 %v579
      %v1159 = vunpack.c.l.b16 %v580
      %v1160 = vunpack.c.h.b16 %v580
      %v1161 = vunpack.c.l.b16 %v581
      %v1162 = vunpack.c.h.b16 %v581
      %v1163 = vunpack.c.l.b16 %v582
      %v1164 = vunpack.c.h.b16 %v582
      %v1165 = vunpack.c.l.b16 %v583
      %v1166 = vunpack.c.h.b16 %v583
      %v1167 = vunpack.c.l.b16 %v584
      %v1168 = vunpack.c.h.b16 %v584
      %v1169 = vunpack.c.l.b16 %v585
      %v1170 = vunpack.c.h.b16 %v585
      %v1171 = vunpack.c.l.b16 %v586
      %v1172 = vunpack.c.h.b16 %v586
      %v1173 = vunpack.c.l.b16 %v587
      %v1174 = vunpack.c.h.b16 %v587
      %v1175 = vunpack.c.l.b16 %v588
      %v1176 = vunpack.c.h.b16 %v588
      %v1177 = vunpack.c.l.b16 %v589
      %v1178 = vunpack.c.h.b16 %v589
      %v1179 = vunpack.c.l.b16 %v590
      %v1180 = vunpack.c.h.b16 %v590
      %v1181 = vunpack.c.l.b16 %v591
      %v1182 = vunpack.c.h.b16 %v591
      %v1183 = vunpack.c.l.b16 %v592
      %v1184 = vunpack.c.h.b16 %v592
      %v1185 = vunpack.c.l.b16 %v593
      %v1186 = vunpack.c.h.b16 %v593
      %v1187 = vunpack.c.l.b16 %v594
      %v1188 = vunpack.c.h.b16 %v594
      %v1189 = vunpack.c.l.b16 %v595
      %v1190 = vunpack.c.h.b16 %v595
      %v1191 = vunpack.c.l.b16 %v596
      %v1192 = vunpack.c.h.b16 %v596
      %v1193 = vunpack.c.l.b16 %v597
      %v1194 = vunpack.c.h.b16 %v597
      %v1195 = vunpack.c.l.b16 %v598
      %v1196 = vunpack.c.h.b16 %v598
      %v1197 = vunpack.c.l.b16 %v599
      %v1198 = vunpack.c.h.b16 %v599
      %v1199 = vunpack.c.l.b16 %v600
      %v1200 = vunpack.c.h.b16 %v600
      %v1201 = vunpack.c.l.b16 %v601
      %v1202 = vunpack.c.h.b16 %v601
      %v1203 = vunpack.c.l.b16 %v602
      %v1204 = vunpack.c.h.b16 %v602
      %v1205 = vunpack.c.l.b16 %v603
      %v1206 = vunpack.c.h.b16 %v603
      %v1207 = vunpack.c.l.b16 %v604
      %v1208 = vunpack.c.h.b16 %v604
      %v1209 = vunpack.c.l.b16 %v605
      %v1210 = vunpack.c.h.b16 %v605
      %v1211 = vunpack.c.l.b16 %v606
      %v1212 = vunpack.c.h.b16 %v606
      %v1213 = vunpack.c.l.b16 %v607
      %v1214 = vunpack.c.h.b16 %v607
      %v1215 = vunpack.c.l.b16 %v608
      %v1216 = vunpack.c.h.b16 %v608
      %v1217 = vunpack.c.l.b16 %v609
      %v1218 = vunpack.c.h.b16 %v609
      %v1219 = vunpack.c.l.b16 %v610
      %v1220 = vunpack.c.h.b16 %v610
      %v1221 = vunpack.c.l.b16 %v611
      %v1222 = vunpack.c.h.b16 %v611
      %v1223 = vunpack.c.l.b16 %v612
      %v1224 = vunpack.c.h.b16 %v612
      %v1225 = vunpack.c.l.b16 %v613
      %v1226 = vunpack.c.h.b16 %v613
      %v1227 = vunpack.c.l.b16 %v614
      %v1228 = vunpack.c.h.b16 %v614
      %v1229 = vunpack.c.l.b16 %v615
      %v1230 = vunpack.c.h.b16 %v615
      %v1231 = vunpack.c.l.b16 %v616
      %v1232 = vunpack.c.h.b16 %v616
      %v1233 = vunpack.c.l.b16 %v617
      %v1234 = vunpack.c.h.b16 %v617
      %v1235 = vunpack.c.l.b16 %v618
      %v1236 = vunpack.c.h.b16 %v618
      %v1237 = vunpack.c.l.b16 %v619
      %v1238 = vunpack.c.h.b16 %v619
      %v1239 = vunpack.c.l.b16 %v620
      %v1240 = vunpack.c.h.b16 %v620
      %v1241 = vunpack.c.l.b16 %v621
      %v1242 = vunpack.c.h.b16 %v621
      %v1243 = vunpack.c.l.b16 %v622
      %v1244 = vunpack.c.h.b16 %v622
      %v1245 = vunpack.c.l.b16 %v623
      %v1246 = vunpack.c.h.b16 %v623
      %v1247 = vunpack.c.l.b16 %v624
      %v1248 = vunpack.c.h.b16 %v624
      %v1249 = vunpack.c.l.b16 %v625
      %v1250 = vunpack.c.h.b16 %v625
      %v1251 = vunpack.c.l.b16 %v626
      %v1252 = vunpack.c.h.b16 %v626
      %v1253 = vunpack.c.l.b16 %v627
      %v1254 = vunpack.c.h.b16 %v627
      %v1255 = vunpack.c.l.b16 %v628
      %v1256 = vunpack.c.h.b16 %v628
      %v1257 = vunpack.c.l.b16 %v629
      %v1258 = vunpack.c.h.b16 %v629
      %v1259 = vunpack.c.l.b16 %v630
      %v1260 = vunpack.c.h.b16 %v630
      %v1261 = vpack.c.b16 %v901, %v877
      %v1262 = vpack.c.b16 %v902, %v878
      %v1263 = vpack.c.b16 %v903, %v879
      %v1264 = vpack.c.b16 %v904, %v880
      %v1265 = vpack.c.b16 %v905, %v881
      %v1266 = vpack.c.b16 %v906, %v882
      %v1267 = vpack.c.b16 %v907, %v883
      %v1268 = vpack.c.b16 %v908, %v884
      %v1269 = vpack.c.b16 %v909, %v885
      %v1270 = vpack.c.b16 %v910, %v886
      %v1271 = vpack.c.b16 %v911, %v887
      %v1272 = vpack.c.b16 %v912, %v888
      %v1273 = vpack.c.b16 %v913, %v889
      %v1274 = vpack.c.b16 %v914, %v890
      %v1275 = vpack.c.b16 %v915, %v891
      %v1276 = vpack.c.b16 %v916, %v892
      %v1277 = vpack.c.b16 %v917, %v893
      %v1278 = vpack.c.b16 %v918, %v894
      %v1279 = vpack.c.b16 %v919, %v895
      %v1280 = vpack.c.b16 %v920, %v896
      %v1281 = vpack.c.b16 %v921, %v897
      %v1282 = vpack.c.b16 %v922, %v898
      %v1283 = vpack.c.b16 %v923, %v899
      %v1284 = vpack.c.b16 %v924, %v900
      %v1285 = vpack.c.b16 %v949, %v925
      %v1286 = vpack.c.b16 %v950, %v926
      %v1287 = vpack.c.b16 %v951, %v927
      %v1288 = vpack.c.b16 %v952, %v928
      %v1289 = vpack.c.b16 %v953, %v929
      %v1290 = vpack.c.b16 %v954, %v930
      %v1291 = vpack.c.b16 %v955, %v931
      %v1292 = vpack.c.b16 %v956, %v932
      %v1293 = vpack.c.b16 %v957, %v933
      %v1294 = vpack.c.b16 %v958, %v934
      %v1295 = vpack.c.b16 %v959, %v935
      %v1296 = vpack.c.b16 %v960, %v936
      %v1297 = vpack.c.b16 %v961, %v937
      %v1298 = vpack.c.b16 %v962, %v938
      %v1299 = vpack.c.b16 %v963, %v939
      %v1300 = vpack.c.b16 %v964, %v940
      %v1301 = vpack.c.b16 %v965, %v941
      %v1302 = vpack.c.b16 %v966, %v942
      %v1303 = vpack.c.b16 %v967, %v943
      %v1304 = vpack.c.b16 %v968, %v944
      %v1305 = vpack.c.b16 %v969, %v945
      %v1306 = vpack.c.b16 %v970, %v946
      %v1307 = vpack.c.b16 %v971, %v947
      %v1308 = vpack.c.b16 %v972, %v948
      %v1309 = vpack.c.b16 %v997, %v973
      %v1310 = vpack.c.b16 %v998, %v974
      %v1311 = vpack.c.b16 %v999, %v975
      %v1312 = vpack.c.b16 %v1000, %v976
      %v1313 = vpack.c.b16 %v1001, %v977
      %v1314 = vpack.c.b16 %v1002, %v978
      %v1315 = vpack.c.b16 %v1003, %v979
      %v1316 = vpack.c.b16 %v1004, %v980
      %v1317 = vpack.c.b16 %v1005, %v981
      %v1318 = vpack.c.b16 %v1006, %v982
      %v1319 = vpack.c.b16 %v1007, %v983
      %v1320 = vpack.c.b16 %v1008, %v984
      %v1321 = vpack.c.b16 %v1009, %v985
      %v1322 = vpack.c.b16 %v1010, %v986
      %v1323 = vpack.c.b16 %v1011, %v987
      %v1324 = vpack.c.b16 %v1012, %v988
      %v1325 = vpack.c.b16 %v1013, %v989
      %v1326 = vpack.c.b16 %v1014, %v990
      %v1327 = vpack.c.b16 %v1015, %v991
      %v1328 = vpack.c.b16 %v1016, %v992
      %v1329 = vpack.c.b16 %v1017, %v993
      %v1330 = vpack.c.b16 %v1018, %v994
      %v1331 = vpack.c.b16 %v1019, %v995
      %v1332 = vpack.c.b16 %v1020, %v996
      %v1333 = vpack.c.b16 %v1045, %v1021
      %v1334 = vpack.c.b16 %v1046, %v1022
      %v1335 = vpack.c.b16 %v1047, %v1023
      %v1336 = vpack.c.b16 %v1048, %v1024
      %v1337 = vpack.c.b16 %v1049, %v1025
      %v1338 = vpack.c.b16 %v1050, %v1026
      %v1339 = vpack.c.b16 %v1051, %v1027
      %v1340 = vpack.c.b16 %v1052, %v1028
      %v1341 = vpack.c.b16 %v1053, %v1029
      %v1342 = vpack.c.b16 %v1054, %v1030
      %v1343 = vpack.c.b16 %v1055, %v1031
      %v1344 = vpack.c.b16 %v1056, %v1032
      %v1345 = vpack.c.b16 %v1057, %v1033
      %v1346 = vpack.c.b16 %v1058, %v1034
      %v1347 = vpack.c.b16 %v1059, %v1035
      %v1348 = vpack.c.b16 %v1060, %v1036
      %v1349 = vpack.c.b16 %v1061, %v1037
      %v1350 = vpack.c.b16 %v1062, %v1038
      %v1351 = vpack.c.b16 %v1063, %v1039
      %v1352 = vpack.c.b16 %v1064, %v1040
      %v1353 = vpack.c.b16 %v1065, %v1041
      %v1354 = vpack.c.b16 %v1066, %v1042
      %v1355 = vpack.c.b16 %v1067, %v1043
      %v1356 = vpack.c.b16 %v1068, %v1044
      %v1357 = vpack.c.b16 %v1093, %v1069
      %v1358 = vpack.c.b16 %v1094, %v1070
      %v1359 = vpack.c.b16 %v1095, %v1071
      %v1360 = vpack.c.b16 %v1096, %v1072
      %v1361 = vpack.c.b16 %v1097, %v1073
      %v1362 = vpack.c.b16 %v1098, %v1074
      %v1363 = vpack.c.b16 %v1099, %v1075
      %v1364 = vpack.c.b16 %v1100, %v1076
      %v1365 = vpack.c.b16 %v1101, %v1077
      %v1366 = vpack.c.b16 %v1102, %v1078
      %v1367 = vpack.c.b16 %v1103, %v1079
      %v1368 = vpack.c.b16 %v1104, %v1080
      %v1369 = vpack.c.b16 %v1105, %v1081
      %v1370 = vpack.c.b16 %v1106, %v1082
      %v1371 = vpack.c.b16 %v1107, %v1083
      %v1372 = vpack.c.b16 %v1108, %v1084
      %v1373 = vpack.c.b16 %v1109, %v1085
      %v1374 = vpack.c.b16 %v1110, %v1086
      %v1375 = vpack.c.b16 %v1111, %v1087
      %v1376 = vpack.c.b16 %v1112, %v1088
      %v1377 = vpack.c.b16 %v1113, %v1089
      %v1378 = vpack.c.b16 %v1114, %v1090
      %v1379 = vpack.c.b16 %v1115, %v1091
      %v1380 = vpack.c.b16 %v1116, %v1092
      %v1381 = vpack.c.b16 %v1141, %v1117
      %v1382 = vpack.c.b16 %v1142, %v1118
      %v1383 = vpack.c.b16 %v1143, %v1119
      %v1384 = vpack.c.b16 %v1144, %v1120
      %v1385 = vpack.c.b16 %v1145, %v1121
      %v1386 = vpack.c.b16 %v1146, %v1122
      %v1387 = vpack.c.b16 %v1147, %v1123
      %v1388 = vpack.c.b16 %v1148, %v1124
      %v1389 = vpack.c.b16 %v1149, %v1125
      %v1390 = vpack.c.b16 %v1150, %v1126
      %v1391 = vpack.c.b16 %v1151, %v1127
      %v1392 = vpack.c.b16 %v1152, %v1128
      %v1393 = vpack.c.b16 %v1153, %v1129
      %v1394 = vpack.c.b16 %v1154, %v1130
      %v1395 = vpack.c.b16 %v1155, %v1131
      %v1396 = vpack.c.b16 %v1156, %v1132
      %v1397 = vpack.c.b16 %v1157, %v1133
      %v1398 = vpack.c.b16 %v1158, %v1134
      %v1399 = vpack.c.b16 %v1159, %v1135
      %v1400 = vpack.c.b16 %v1160, %v1136
      %v1401 = vpack.c.b16 %v1161, %v1137
      %v1402 = vpack.c.b16 %v1162, %v1138
      %v1403 = vpack.c.b16 %v1163, %v1139
      %v1404 = vpack.c.b16 %v1164, %v1140
      %v1405 = vpack.c.b16 %v1189, %v1165
      %v1406 = vpack.c.b16 %v1190, %v1166
      %v1407 = vpack.c.b16 %v1191, %v1167
      %v1408 = vpack.c.b16 %v1192, %v1168
      %v1409 = vpack.c.b16 %v1193, %v1169
      %v1410 = vpack.c.b16 %v1194, %v1170
      %v1411 = vpack.c.b16 %v1195, %v1171
      %v1412 = vpack.c.b16 %v1196, %v1172
      %v1413 = vpack.c.b16 %v1197, %v1173
      %v1414 = vpack.c.b16 %v1198, %v1174
      %v1415 = vpack.c.b16 %v1199, %v1175
      %v1416 = vpack.c.b16 %v1200, %v1176
      %v1417 = vpack.c.b16 %v1201, %v1177
      %v1418 = vpack.c.b16 %v1202, %v1178
      %v1419 = vpack.c.b16 %v1203, %v1179
      %v1420 = vpack.c.b16 %v1204, %v1180
      %v1421 = vpack.c.b16 %v1205, %v1181
      %v1422 = vpack.c.b16 %v1206, %v1182
      %v1423 = vpack.c.b16 %v1207, %v1183
      %v1424 = vpack.c.b16 %v1208, %v1184
      %v1425 = vpack.c.b16 %v1209, %v1185
      %v1426 = vpack.c.b16 %v1210, %v1186
      %v1427 = vpack.c.b16 %v1211, %v1187
      %v1428 = vpack.c.b16 %v1212, %v1188
      %v1429 = vpack.c.b16 %v1237, %v1213
      %v1430 = vpack.c.b16 %v1238, %v1214
      %v1431 = vpack.c.b16 %v1239, %v1215
      %v1432 = vpack.c.b16 %v1240, %v1216
      %v1433 = vpack.c.b16 %v1241, %v1217
      %v1434 = vpack.c.b16 %v1242, %v1218
      %v1435 = vpack.c.b16 %v1243, %v1219
      %v1436 = vpack.c.b16 %v1244, %v1220
      %v1437 = vpack.c.b16 %v1245, %v1221
      %v1438 = vpack.c.b16 %v1246, %v1222
      %v1439 = vpack.c.b16 %v1247, %v1223
      %v1440 = vpack.c.b16 %v1248, %v1224
      %v1441 = vpack.c.b16 %v1249, %v1225
      %v1442 = vpack.c.b16 %v1250, %v1226
      %v1443 = vpack.c.b16 %v1251, %v1227
      %v1444 = vpack.c.b16 %v1252, %v1228
      %v1445 = vpack.c.b16 %v1253, %v1229
      %v1446 = vpack.c.b16 %v1254, %v1230
      %v1447 = vpack.c.b16 %v1255, %v1231
      %v1448 = vpack.c.b16 %v1256, %v1232
      %v1449 = vpack.c.b16 %v1257, %v1233
      %v1450 = vpack.c.b16 %v1258, %v1234
      %v1451 = vpack.c.b16 %v1259, %v1235
      %v1452 = vpack.c.b16 %v1260, %v1236
      %1645 = vmatpush.bf16.msra.mxu0 %v1429
      %1646 = vmatpush.bf16.msra.mxu0 %v1405
      %1647 = vmatpush.bf16.msra.mxu0 %v1381
      %1648 = vmatpush.bf16.msra.mxu0 %v1357
      %1649 = vmatpush.bf16.msra.mxu0 %v1333
      %1650 = vmatpush.bf16.msra.mxu0 %v1309
      %1651 = vmatpush.bf16.msra.mxu0 %v1285
      %1652 = vmatpush.bf16.msra.mxu0 %v1261
      %1653 = vmatmul.bf16.gmra.mxu0 %v438
      %v1654 = vpop.f32.mrf.mxu0
      %v1655 = vadd.f32 %v637, %v1654
      %v1656 = vpop.f32.mrf.mxu0
      %1657 = vdwg.mxu0
      %1658 = vmatpush.bf16.msra.mxu0 %v1430
      %1659 = vmatpush.bf16.msra.mxu0 %v1406
      %1660 = vmatpush.bf16.msra.mxu0 %v1382
      %1661 = vmatpush.bf16.msra.mxu0 %v1358
      %1662 = vmatpush.bf16.msra.mxu0 %v1334
      %1663 = vmatpush.bf16.msra.mxu0 %v1310
      %1664 = vmatpush.bf16.msra.mxu0 %v1286
      %1665 = vmatpush.bf16.msra.mxu0 %v1262
      %1666 = vmatmul.bf16.gmra.mxu0 %v438
      %v1667 = vpop.f32.mrf.mxu0
      %v1668 = vadd.f32 %v638, %v1667
      %v1669 = vpop.f32.mrf.mxu0
      %1670 = vdwg.mxu0
      %1671 = vmatpush.bf16.msra.mxu0 %v1431
      %1672 = vmatpush.bf16.msra.mxu0 %v1407
      %1673 = vmatpush.bf16.msra.mxu0 %v1383
      %1674 = vmatpush.bf16.msra.mxu0 %v1359
      %1675 = vmatpush.bf16.msra.mxu0 %v1335
      %1676 = vmatpush.bf16.msra.mxu0 %v1311
      %1677 = vmatpush.bf16.msra.mxu0 %v1287
      %1678 = vmatpush.bf16.msra.mxu0 %v1263
      %1679 = vmatmul.bf16.gmra.mxu0 %v438
      %v1680 = vpop.f32.mrf.mxu0
      %v1681 = vadd.f32 %v639, %v1680
      %v1682 = vpop.f32.mrf.mxu0
      %1683 = vdwg.mxu0
      %1684 = vmatpush.bf16.msra.mxu0 %v1432
      %1685 = vmatpush.bf16.msra.mxu0 %v1408
      %1686 = vmatpush.bf16.msra.mxu0 %v1384
      %1687 = vmatpush.bf16.msra.mxu0 %v1360
      %1688 = vmatpush.bf16.msra.mxu0 %v1336
      %1689 = vmatpush.bf16.msra.mxu0 %v1312
      %1690 = vmatpush.bf16.msra.mxu0 %v1288
      %1691 = vmatpush.bf16.msra.mxu0 %v1264
      %1692 = vmatmul.bf16.gmra.mxu0 %v438
      %v1693 = vpop.f32.mrf.mxu0
      %v1694 = vadd.f32 %v640, %v1693
      %v1695 = vpop.f32.mrf.mxu0
      %1696 = vdwg.mxu0
      %1697 = vmatpush.bf16.msra.mxu0 %v1433
      %1698 = vmatpush.bf16.msra.mxu0 %v1409
      %1699 = vmatpush.bf16.msra.mxu0 %v1385
      %1700 = vmatpush.bf16.msra.mxu0 %v1361
      %1701 = vmatpush.bf16.msra.mxu0 %v1337
      %1702 = vmatpush.bf16.msra.mxu0 %v1313
      %1703 = vmatpush.bf16.msra.mxu0 %v1289
      %1704 = vmatpush.bf16.msra.mxu0 %v1265
      %1705 = vmatmul.bf16.gmra.mxu0 %v438
      %v1706 = vpop.f32.mrf.mxu0
      %v1707 = vadd.f32 %v641, %v1706
      %v1708 = vpop.f32.mrf.mxu0
      %1709 = vdwg.mxu0
      %1710 = vmatpush.bf16.msra.mxu0 %v1434
      %1711 = vmatpush.bf16.msra.mxu0 %v1410
      %1712 = vmatpush.bf16.msra.mxu0 %v1386
      %1713 = vmatpush.bf16.msra.mxu0 %v1362
      %1714 = vmatpush.bf16.msra.mxu0 %v1338
      %1715 = vmatpush.bf16.msra.mxu0 %v1314
      %1716 = vmatpush.bf16.msra.mxu0 %v1290
      %1717 = vmatpush.bf16.msra.mxu0 %v1266
      %1718 = vmatmul.bf16.gmra.mxu0 %v438
      %v1719 = vpop.f32.mrf.mxu0
      %v1720 = vadd.f32 %v642, %v1719
      %v1721 = vpop.f32.mrf.mxu0
      %1722 = vdwg.mxu0
      %1723 = vmatpush.bf16.msra.mxu0 %v1435
      %1724 = vmatpush.bf16.msra.mxu0 %v1411
      %1725 = vmatpush.bf16.msra.mxu0 %v1387
      %1726 = vmatpush.bf16.msra.mxu0 %v1363
      %1727 = vmatpush.bf16.msra.mxu0 %v1339
      %1728 = vmatpush.bf16.msra.mxu0 %v1315
      %1729 = vmatpush.bf16.msra.mxu0 %v1291
      %1730 = vmatpush.bf16.msra.mxu0 %v1267
      %1731 = vmatmul.bf16.gmra.mxu0 %v438
      %v1732 = vpop.f32.mrf.mxu0
      %v1733 = vadd.f32 %v643, %v1732
      %v1734 = vpop.f32.mrf.mxu0
      %1735 = vdwg.mxu0
      %1736 = vmatpush.bf16.msra.mxu0 %v1436
      %1737 = vmatpush.bf16.msra.mxu0 %v1412
      %1738 = vmatpush.bf16.msra.mxu0 %v1388
      %1739 = vmatpush.bf16.msra.mxu0 %v1364
      %1740 = vmatpush.bf16.msra.mxu0 %v1340
      %1741 = vmatpush.bf16.msra.mxu0 %v1316
      %1742 = vmatpush.bf16.msra.mxu0 %v1292
      %1743 = vmatpush.bf16.msra.mxu0 %v1268
      %1744 = vmatmul.bf16.gmra.mxu0 %v438
      %v1745 = vpop.f32.mrf.mxu0
      %v1746 = vadd.f32 %v644, %v1745
      %v1747 = vpop.f32.mrf.mxu0
      %1748 = vdwg.mxu0
      %1749 = vmatpush.bf16.msra.mxu0 %v1437
      %1750 = vmatpush.bf16.msra.mxu0 %v1413
      %1751 = vmatpush.bf16.msra.mxu0 %v1389
      %1752 = vmatpush.bf16.msra.mxu0 %v1365
      %1753 = vmatpush.bf16.msra.mxu0 %v1341
      %1754 = vmatpush.bf16.msra.mxu0 %v1317
      %1755 = vmatpush.bf16.msra.mxu0 %v1293
      %1756 = vmatpush.bf16.msra.mxu0 %v1269
      %1757 = vmatmul.bf16.gmra.mxu0 %v438
      %v1758 = vpop.f32.mrf.mxu0
      %v1759 = vadd.f32 %v645, %v1758
      %v1760 = vpop.f32.mrf.mxu0
      %1761 = vdwg.mxu0
      %1762 = vmatpush.bf16.msra.mxu0 %v1438
      %1763 = vmatpush.bf16.msra.mxu0 %v1414
      %1764 = vmatpush.bf16.msra.mxu0 %v1390
      %1765 = vmatpush.bf16.msra.mxu0 %v1366
      %1766 = vmatpush.bf16.msra.mxu0 %v1342
      %1767 = vmatpush.bf16.msra.mxu0 %v1318
      %1768 = vmatpush.bf16.msra.mxu0 %v1294
      %1769 = vmatpush.bf16.msra.mxu0 %v1270
      %1770 = vmatmul.bf16.gmra.mxu0 %v438
      %v1771 = vpop.f32.mrf.mxu0
      %v1772 = vadd.f32 %v646, %v1771
      %v1773 = vpop.f32.mrf.mxu0
      %1774 = vdwg.mxu0
      %1775 = vmatpush.bf16.msra.mxu0 %v1439
      %1776 = vmatpush.bf16.msra.mxu0 %v1415
      %1777 = vmatpush.bf16.msra.mxu0 %v1391
      %1778 = vmatpush.bf16.msra.mxu0 %v1367
      %1779 = vmatpush.bf16.msra.mxu0 %v1343
      %1780 = vmatpush.bf16.msra.mxu0 %v1319
      %1781 = vmatpush.bf16.msra.mxu0 %v1295
      %1782 = vmatpush.bf16.msra.mxu0 %v1271
      %1783 = vmatmul.bf16.gmra.mxu0 %v438
      %v1784 = vpop.f32.mrf.mxu0
      %v1785 = vadd.f32 %v647, %v1784
      %v1786 = vpop.f32.mrf.mxu0
      %1787 = vdwg.mxu0
      %1788 = vmatpush.bf16.msra.mxu0 %v1440
      %1789 = vmatpush.bf16.msra.mxu0 %v1416
      %1790 = vmatpush.bf16.msra.mxu0 %v1392
      %1791 = vmatpush.bf16.msra.mxu0 %v1368
      %1792 = vmatpush.bf16.msra.mxu0 %v1344
      %1793 = vmatpush.bf16.msra.mxu0 %v1320
      %1794 = vmatpush.bf16.msra.mxu0 %v1296
      %1795 = vmatpush.bf16.msra.mxu0 %v1272
      %1796 = vmatmul.bf16.gmra.mxu0 %v438
      %v1797 = vpop.f32.mrf.mxu0
      %v1798 = vadd.f32 %v648, %v1797
      %v1799 = vpop.f32.mrf.mxu0
      %1800 = vdwg.mxu0
      %1801 = vmatpush.bf16.msra.mxu0 %v1441
      %1802 = vmatpush.bf16.msra.mxu0 %v1417
      %1803 = vmatpush.bf16.msra.mxu0 %v1393
      %1804 = vmatpush.bf16.msra.mxu0 %v1369
      %1805 = vmatpush.bf16.msra.mxu0 %v1345
      %1806 = vmatpush.bf16.msra.mxu0 %v1321
      %1807 = vmatpush.bf16.msra.mxu0 %v1297
      %1808 = vmatpush.bf16.msra.mxu0 %v1273
      %1809 = vmatmul.bf16.gmra.mxu0 %v438
      %v1810 = vpop.f32.mrf.mxu0
      %v1811 = vadd.f32 %v649, %v1810
      %v1812 = vpop.f32.mrf.mxu0
      %1813 = vdwg.mxu0
      %1814 = vmatpush.bf16.msra.mxu0 %v1442
      %1815 = vmatpush.bf16.msra.mxu0 %v1418
      %1816 = vmatpush.bf16.msra.mxu0 %v1394
      %1817 = vmatpush.bf16.msra.mxu0 %v1370
      %1818 = vmatpush.bf16.msra.mxu0 %v1346
      %1819 = vmatpush.bf16.msra.mxu0 %v1322
      %1820 = vmatpush.bf16.msra.mxu0 %v1298
      %1821 = vmatpush.bf16.msra.mxu0 %v1274
      %1822 = vmatmul.bf16.gmra.mxu0 %v438
      %v1823 = vpop.f32.mrf.mxu0
      %v1824 = vadd.f32 %v650, %v1823
      %v1825 = vpop.f32.mrf.mxu0
      %1826 = vdwg.mxu0
      %1827 = vmatpush.bf16.msra.mxu0 %v1443
      %1828 = vmatpush.bf16.msra.mxu0 %v1419
      %1829 = vmatpush.bf16.msra.mxu0 %v1395
      %1830 = vmatpush.bf16.msra.mxu0 %v1371
      %1831 = vmatpush.bf16.msra.mxu0 %v1347
      %1832 = vmatpush.bf16.msra.mxu0 %v1323
      %1833 = vmatpush.bf16.msra.mxu0 %v1299
      %1834 = vmatpush.bf16.msra.mxu0 %v1275
      %1835 = vmatmul.bf16.gmra.mxu0 %v438
      %v1836 = vpop.f32.mrf.mxu0
      %v1837 = vadd.f32 %v651, %v1836
      %v1838 = vpop.f32.mrf.mxu0
      %1839 = vdwg.mxu0
      %1840 = vmatpush.bf16.msra.mxu0 %v1444
      %1841 = vmatpush.bf16.msra.mxu0 %v1420
      %1842 = vmatpush.bf16.msra.mxu0 %v1396
      %1843 = vmatpush.bf16.msra.mxu0 %v1372
      %1844 = vmatpush.bf16.msra.mxu0 %v1348
      %1845 = vmatpush.bf16.msra.mxu0 %v1324
      %1846 = vmatpush.bf16.msra.mxu0 %v1300
      %1847 = vmatpush.bf16.msra.mxu0 %v1276
      %1848 = vmatmul.bf16.gmra.mxu0 %v438
      %v1849 = vpop.f32.mrf.mxu0
      %v1850 = vadd.f32 %v652, %v1849
      %v1851 = vpop.f32.mrf.mxu0
      %1852 = vdwg.mxu0
      %1853 = vmatpush.bf16.msra.mxu0 %v1445
      %1854 = vmatpush.bf16.msra.mxu0 %v1421
      %1855 = vmatpush.bf16.msra.mxu0 %v1397
      %1856 = vmatpush.bf16.msra.mxu0 %v1373
      %1857 = vmatpush.bf16.msra.mxu0 %v1349
      %1858 = vmatpush.bf16.msra.mxu0 %v1325
      %1859 = vmatpush.bf16.msra.mxu0 %v1301
      %1860 = vmatpush.bf16.msra.mxu0 %v1277
      %1861 = vmatmul.bf16.gmra.mxu0 %v438
      %v1862 = vpop.f32.mrf.mxu0
      %v1863 = vadd.f32 %v653, %v1862
      %v1864 = vpop.f32.mrf.mxu0
      %1865 = vdwg.mxu0
      %1866 = vmatpush.bf16.msra.mxu0 %v1446
      %1867 = vmatpush.bf16.msra.mxu0 %v1422
      %1868 = vmatpush.bf16.msra.mxu0 %v1398
      %1869 = vmatpush.bf16.msra.mxu0 %v1374
      %1870 = vmatpush.bf16.msra.mxu0 %v1350
      %1871 = vmatpush.bf16.msra.mxu0 %v1326
      %1872 = vmatpush.bf16.msra.mxu0 %v1302
      %1873 = vmatpush.bf16.msra.mxu0 %v1278
      %1874 = vmatmul.bf16.gmra.mxu0 %v438
      %v1875 = vpop.f32.mrf.mxu0
      %v1876 = vadd.f32 %v654, %v1875
      %v1877 = vpop.f32.mrf.mxu0
      %1878 = vdwg.mxu0
      %1879 = vmatpush.bf16.msra.mxu0 %v1447
      %1880 = vmatpush.bf16.msra.mxu0 %v1423
      %1881 = vmatpush.bf16.msra.mxu0 %v1399
      %1882 = vmatpush.bf16.msra.mxu0 %v1375
      %1883 = vmatpush.bf16.msra.mxu0 %v1351
      %1884 = vmatpush.bf16.msra.mxu0 %v1327
      %1885 = vmatpush.bf16.msra.mxu0 %v1303
      %1886 = vmatpush.bf16.msra.mxu0 %v1279
      %1887 = vmatmul.bf16.gmra.mxu0 %v438
      %v1888 = vpop.f32.mrf.mxu0
      %v1889 = vadd.f32 %v655, %v1888
      %v1890 = vpop.f32.mrf.mxu0
      %1891 = vdwg.mxu0
      %1892 = vmatpush.bf16.msra.mxu0 %v1448
      %1893 = vmatpush.bf16.msra.mxu0 %v1424
      %1894 = vmatpush.bf16.msra.mxu0 %v1400
      %1895 = vmatpush.bf16.msra.mxu0 %v1376
      %1896 = vmatpush.bf16.msra.mxu0 %v1352
      %1897 = vmatpush.bf16.msra.mxu0 %v1328
      %1898 = vmatpush.bf16.msra.mxu0 %v1304
      %1899 = vmatpush.bf16.msra.mxu0 %v1280
      %1900 = vmatmul.bf16.gmra.mxu0 %v438
      %v1901 = vpop.f32.mrf.mxu0
      %v1902 = vadd.f32 %v656, %v1901
      %v1903 = vpop.f32.mrf.mxu0
      %1904 = vdwg.mxu0
      %1905 = vmatpush.bf16.msra.mxu0 %v1449
      %1906 = vmatpush.bf16.msra.mxu0 %v1425
      %1907 = vmatpush.bf16.msra.mxu0 %v1401
      %1908 = vmatpush.bf16.msra.mxu0 %v1377
      %1909 = vmatpush.bf16.msra.mxu0 %v1353
      %1910 = vmatpush.bf16.msra.mxu0 %v1329
      %1911 = vmatpush.bf16.msra.mxu0 %v1305
      %1912 = vmatpush.bf16.msra.mxu0 %v1281
      %1913 = vmatmul.bf16.gmra.mxu0 %v438
      %v1914 = vpop.f32.mrf.mxu0
      %v1915 = vadd.f32 %v657, %v1914
      %v1916 = vpop.f32.mrf.mxu0
      %1917 = vdwg.mxu0
      %1918 = vmatpush.bf16.msra.mxu0 %v1450
      %1919 = vmatpush.bf16.msra.mxu0 %v1426
      %1920 = vmatpush.bf16.msra.mxu0 %v1402
      %1921 = vmatpush.bf16.msra.mxu0 %v1378
      %1922 = vmatpush.bf16.msra.mxu0 %v1354
      %1923 = vmatpush.bf16.msra.mxu0 %v1330
      %1924 = vmatpush.bf16.msra.mxu0 %v1306
      %1925 = vmatpush.bf16.msra.mxu0 %v1282
      %1926 = vmatmul.bf16.gmra.mxu0 %v438
      %v1927 = vpop.f32.mrf.mxu0
      %v1928 = vadd.f32 %v658, %v1927
      %v1929 = vpop.f32.mrf.mxu0
      %1930 = vdwg.mxu0
      %1931 = vmatpush.bf16.msra.mxu0 %v1451
      %1932 = vmatpush.bf16.msra.mxu0 %v1427
      %1933 = vmatpush.bf16.msra.mxu0 %v1403
      %1934 = vmatpush.bf16.msra.mxu0 %v1379
      %1935 = vmatpush.bf16.msra.mxu0 %v1355
      %1936 = vmatpush.bf16.msra.mxu0 %v1331
      %1937 = vmatpush.bf16.msra.mxu0 %v1307
      %1938 = vmatpush.bf16.msra.mxu0 %v1283
      %1939 = vmatmul.bf16.gmra.mxu0 %v438
      %v1940 = vpop.f32.mrf.mxu0
      %v1941 = vadd.f32 %v659, %v1940
      %v1942 = vpop.f32.mrf.mxu0
      %1943 = vdwg.mxu0
      %1944 = vmatpush.bf16.msra.mxu0 %v1452
      %1945 = vmatpush.bf16.msra.mxu0 %v1428
      %1946 = vmatpush.bf16.msra.mxu0 %v1404
      %1947 = vmatpush.bf16.msra.mxu0 %v1380
      %1948 = vmatpush.bf16.msra.mxu0 %v1356
      %1949 = vmatpush.bf16.msra.mxu0 %v1332
      %1950 = vmatpush.bf16.msra.mxu0 %v1308
      %1951 = vmatpush.bf16.msra.mxu0 %v1284
      %1952 = vmatmul.bf16.gmra.mxu0 %v438
      %v1953 = vpop.f32.mrf.mxu0
      %v1954 = vadd.f32 %v660, %v1953
      %v1955 = vpop.f32.mrf.mxu0
      %1956 = vdwg.mxu0
      %v1957 = vmul.f32 %v1655, 0.25
      %v1958 = vpack.c.bf16 %v1957, %v1957
      %v1959 = vpack.c.bf16 %v1759, %v1759
      %1960 = vmatpush.bf16.xpose.msra.mxu0 0
      %1961 = vmatpush.bf16.xpose.msra.mxu0 0
      %1962 = vmatpush.bf16.xpose.msra.mxu0 0
      %1963 = vmatpush.bf16.xpose.msra.mxu0 0
      %1964 = vmatpush.bf16.xpose.msra.mxu0 0
      %1965 = vmatpush.bf16.xpose.msra.mxu0 0
      %1966 = vmatpush.bf16.xpose.msra.mxu0 0
      %1967 = vmatpush.bf16.xpose.msra.mxu0 %v1959
      %1968 = vmatmul.bf16.gmra.mxu0 %v1958
      %v1969 = vpop.f32.mrf.mxu0
      %v1970 = vadd.f32 0.0, %v1969
      %v1971 = vpop.f32.mrf.mxu0
      %1972 = vdwg.mxu0
      %vm1973 = vcmask 64512
      %v1974 = vsel %vm1973, %v1970, -inf
      %1975 = vmax.xlane.f32.xlu0 %v1974
      %v1976 = vpop.xlane.xlu0 %1975
      %v1977 = vsub.f32 %v1970, %v1976
      %v1978 = vmul.f32 %v1977, 1.442695
      %v1979 = vpow.pop %v1978
      %v1980 = vsel %vm1973, %v1979, 0.0
      %1981 = vadd.xlane.f32.xlu0 %v1980
      %v1982 = vpop.xlane.xlu0 %1981
      %v1983 = vrcp.pop %v1982
      %v1984 = vmul.f32 %v1979, %v1983
      %v1985 = vpack.c.bf16 %v1984, %v1984
      %v1986 = vpack.c.bf16 %v1863, %v1863
      %v1988 = vsel %vm1973, %v1985, 0
      %vm1990 = vcmask 1043456
      %v1992 = vsel %vm1990, %v1986, 0
      %1994 = vmatpush.bf16.msra.mxu0 0
      %1995 = vmatpush.bf16.msra.mxu0 0
      %1996 = vmatpush.bf16.msra.mxu0 0
      %1997 = vmatpush.bf16.msra.mxu0 0
      %1998 = vmatpush.bf16.msra.mxu0 0
      %1999 = vmatpush.bf16.msra.mxu0 0
      %2000 = vmatpush.bf16.msra.mxu0 0
      %2001 = vmatpush.bf16.msra.mxu0 %v1992
      %2002 = vmatmul.bf16.gmra.mxu0 %v1988
      %v2003 = vpop.f32.mrf.mxu0
      %v2004 = vadd.f32 0.0, %v2003
      %v2005 = vpop.f32.mrf.mxu0
      %2006 = vdwg.mxu0
      %v2007 = vpack.c.bf16 %v2004, %v2004
      %v2008 = vld [vmem:[%s3] sm:$0xf]
      %v2009 = vld [vmem:[%s3 + $0x4] sm:$0xf]
      %v2010 = vld [vmem:[%s3 + $0x8] sm:$0xf]
      %v2011 = vld [vmem:[%s3 + $0xc] sm:$0xf]
      %v2012 = vld [vmem:[%s3 + $0x10] sm:$0xf]
      %v2013 = vld [vmem:[%s3 + $0x14] sm:$0xf]
      %v2014 = vld [vmem:[%s3 + $0x18] sm:$0xf]
      %v2015 = vld [vmem:[%s3 + $0x1c] sm:$0xf]
      %v2016 = vld [vmem:[%s3 + $0x20] sm:$0xf]
      %v2017 = vld [vmem:[%s3 + $0x24] sm:$0xf]
      %v2018 = vld [vmem:[%s3 + $0x28] sm:$0xf]
      %v2019 = vld [vmem:[%s3 + $0x2c] sm:$0xf]
      %v2020 = vld [vmem:[%s3 + $0x30] sm:$0xf]
      %v2021 = vld [vmem:[%s3 + $0x34] sm:$0xf]
      %v2022 = vld [vmem:[%s3 + $0x38] sm:$0xf]
      %v2023 = vld [vmem:[%s3 + $0x3c] sm:$0xf]
      %v2024 = vmul.f32 %v1668, 0.25
      %v2025 = vpack.c.bf16 %v2024, %v2024
      %v2026 = vpack.c.bf16 %v1772, %v1772
      %2027 = vmatpush.bf16.xpose.msra.mxu0 0
      %2028 = vmatpush.bf16.xpose.msra.mxu0 0
      %2029 = vmatpush.bf16.xpose.msra.mxu0 0
      %2030 = vmatpush.bf16.xpose.msra.mxu0 0
      %2031 = vmatpush.bf16.xpose.msra.mxu0 0
      %2032 = vmatpush.bf16.xpose.msra.mxu0 0
      %2033 = vmatpush.bf16.xpose.msra.mxu0 0
      %2034 = vmatpush.bf16.xpose.msra.mxu0 %v2026
      %2035 = vmatmul.bf16.gmra.mxu0 %v2025
      %v2036 = vpop.f32.mrf.mxu0
      %v2037 = vadd.f32 0.0, %v2036
      %v2038 = vpop.f32.mrf.mxu0
      %2039 = vdwg.mxu0
      %v2040 = vsel %vm1973, %v2037, -inf
      %2041 = vmax.xlane.f32.xlu0 %v2040
      %v2042 = vpop.xlane.xlu0 %2041
      %v2043 = vsub.f32 %v2037, %v2042
      %v2044 = vmul.f32 %v2043, 1.442695
      %v2045 = vpow.pop %v2044
      %v2046 = vsel %vm1973, %v2045, 0.0
      %2047 = vadd.xlane.f32.xlu0 %v2046
      %v2048 = vpop.xlane.xlu0 %2047
      %v2049 = vrcp.pop %v2048
      %v2050 = vmul.f32 %v2045, %v2049
      %v2051 = vpack.c.bf16 %v2050, %v2050
      %v2052 = vpack.c.bf16 %v1876, %v1876
      %v2054 = vsel %vm1973, %v2051, 0
      %v2057 = vsel %vm1990, %v2052, 0
      %2059 = vmatpush.bf16.msra.mxu0 0
      %2060 = vmatpush.bf16.msra.mxu0 0
      %2061 = vmatpush.bf16.msra.mxu0 0
      %2062 = vmatpush.bf16.msra.mxu0 0
      %2063 = vmatpush.bf16.msra.mxu0 0
      %2064 = vmatpush.bf16.msra.mxu0 0
      %2065 = vmatpush.bf16.msra.mxu0 0
      %2066 = vmatpush.bf16.msra.mxu0 %v2057
      %2067 = vmatmul.bf16.gmra.mxu0 %v2054
      %v2068 = vpop.f32.mrf.mxu0
      %v2069 = vadd.f32 0.0, %v2068
      %v2070 = vpop.f32.mrf.mxu0
      %2071 = vdwg.mxu0
      %v2072 = vpack.c.bf16 %v2069, %v2069
      %v2073 = vld [vmem:[%s3 + $0x40] sm:$0xf]
      %v2074 = vld [vmem:[%s3 + $0x44] sm:$0xf]
      %v2075 = vld [vmem:[%s3 + $0x48] sm:$0xf]
      %v2076 = vld [vmem:[%s3 + $0x4c] sm:$0xf]
      %v2077 = vld [vmem:[%s3 + $0x50] sm:$0xf]
      %v2078 = vld [vmem:[%s3 + $0x54] sm:$0xf]
      %v2079 = vld [vmem:[%s3 + $0x58] sm:$0xf]
      %v2080 = vld [vmem:[%s3 + $0x5c] sm:$0xf]
      %v2081 = vld [vmem:[%s3 + $0x60] sm:$0xf]
      %v2082 = vld [vmem:[%s3 + $0x64] sm:$0xf]
      %v2083 = vld [vmem:[%s3 + $0x68] sm:$0xf]
      %v2084 = vld [vmem:[%s3 + $0x6c] sm:$0xf]
      %v2085 = vld [vmem:[%s3 + $0x70] sm:$0xf]
      %v2086 = vld [vmem:[%s3 + $0x74] sm:$0xf]
      %v2087 = vld [vmem:[%s3 + $0x78] sm:$0xf]
      %v2088 = vld [vmem:[%s3 + $0x7c] sm:$0xf]
      %v2105 = vunpack.c.l.b16 %v2073
      %v2106 = vunpack.c.l.b16 %v2074
      %v2107 = vunpack.c.l.b16 %v2075
      %v2108 = vunpack.c.l.b16 %v2076
      %v2109 = vunpack.c.l.b16 %v2077
      %v2110 = vunpack.c.l.b16 %v2078
      %v2111 = vunpack.c.l.b16 %v2079
      %v2112 = vunpack.c.l.b16 %v2080
      %v2113 = vunpack.c.l.b16 %v2081
      %v2114 = vunpack.c.l.b16 %v2082
      %v2115 = vunpack.c.l.b16 %v2083
      %v2116 = vunpack.c.l.b16 %v2084
      %v2117 = vunpack.c.l.b16 %v2085
      %v2118 = vunpack.c.l.b16 %v2086
      %v2119 = vunpack.c.l.b16 %v2087
      %v2120 = vunpack.c.l.b16 %v2088
      %v2121 = vpack.c.b16 %v2106, %v2105
      %v2122 = vpack.c.b16 %v2108, %v2107
      %v2123 = vpack.c.b16 %v2110, %v2109
      %v2124 = vpack.c.b16 %v2112, %v2111
      %v2125 = vpack.c.b16 %v2114, %v2113
      %v2126 = vpack.c.b16 %v2116, %v2115
      %v2127 = vpack.c.b16 %v2118, %v2117
      %v2128 = vpack.c.b16 %v2120, %v2119
      %2137 = vmatpush.bf16.msra.mxu0 %v2128
      %2138 = vmatpush.bf16.msra.mxu0 %v2127
      %2139 = vmatpush.bf16.msra.mxu0 %v2126
      %2140 = vmatpush.bf16.msra.mxu0 %v2125
      %2141 = vmatpush.bf16.msra.mxu0 %v2124
      %2142 = vmatpush.bf16.msra.mxu0 %v2123
      %2143 = vmatpush.bf16.msra.mxu0 %v2122
      %2144 = vmatpush.bf16.msra.mxu0 %v2121
      %2145 = vmatmul.bf16.gmra.mxu0 %v2072
      %v2146 = vpop.f32.mrf.mxu0
      %v2147 = vadd.f32 0.0, %v2146
      %v2148 = vpop.f32.mrf.mxu0
      %2149 = vdwg.mxu0
      %v2166 = vunpack.c.l.b16 %v2008
      %v2167 = vunpack.c.l.b16 %v2009
      %v2168 = vunpack.c.l.b16 %v2010
      %v2169 = vunpack.c.l.b16 %v2011
      %v2170 = vunpack.c.l.b16 %v2012
      %v2171 = vunpack.c.l.b16 %v2013
      %v2172 = vunpack.c.l.b16 %v2014
      %v2173 = vunpack.c.l.b16 %v2015
      %v2174 = vunpack.c.l.b16 %v2016
      %v2175 = vunpack.c.l.b16 %v2017
      %v2176 = vunpack.c.l.b16 %v2018
      %v2177 = vunpack.c.l.b16 %v2019
      %v2178 = vunpack.c.l.b16 %v2020
      %v2179 = vunpack.c.l.b16 %v2021
      %v2180 = vunpack.c.l.b16 %v2022
      %v2181 = vunpack.c.l.b16 %v2023
      %v2182 = vpack.c.b16 %v2167, %v2166
      %v2183 = vpack.c.b16 %v2169, %v2168
      %v2184 = vpack.c.b16 %v2171, %v2170
      %v2185 = vpack.c.b16 %v2173, %v2172
      %v2186 = vpack.c.b16 %v2175, %v2174
      %v2187 = vpack.c.b16 %v2177, %v2176
      %v2188 = vpack.c.b16 %v2179, %v2178
      %v2189 = vpack.c.b16 %v2181, %v2180
      %2198 = vmatpush.bf16.msra.mxu0 %v2189
      %2199 = vmatpush.bf16.msra.mxu0 %v2188
      %2200 = vmatpush.bf16.msra.mxu0 %v2187
      %2201 = vmatpush.bf16.msra.mxu0 %v2186
      %2202 = vmatpush.bf16.msra.mxu0 %v2185
      %2203 = vmatpush.bf16.msra.mxu0 %v2184
      %2204 = vmatpush.bf16.msra.mxu0 %v2183
      %2205 = vmatpush.bf16.msra.mxu0 %v2182
      %2206 = vmatmul.bf16.gmra.mxu0 %v2007
      %v2207 = vpop.f32.mrf.mxu0
      %v2208 = vadd.f32 %v2147, %v2207
      %v2209 = vpop.f32.mrf.mxu0
      %2210 = vdwg.mxu0
      %v2211 = vmul.f32 %v1681, 0.25
      %v2212 = vpack.c.bf16 %v2211, %v2211
      %v2213 = vpack.c.bf16 %v1785, %v1785
      %2214 = vmatpush.bf16.xpose.msra.mxu0 0
      %2215 = vmatpush.bf16.xpose.msra.mxu0 0
      %2216 = vmatpush.bf16.xpose.msra.mxu0 0
      %2217 = vmatpush.bf16.xpose.msra.mxu0 0
      %2218 = vmatpush.bf16.xpose.msra.mxu0 0
      %2219 = vmatpush.bf16.xpose.msra.mxu0 0
      %2220 = vmatpush.bf16.xpose.msra.mxu0 0
      %2221 = vmatpush.bf16.xpose.msra.mxu0 %v2213
      %2222 = vmatmul.bf16.gmra.mxu0 %v2212
      %v2223 = vpop.f32.mrf.mxu0
      %v2224 = vadd.f32 0.0, %v2223
      %v2225 = vpop.f32.mrf.mxu0
      %2226 = vdwg.mxu0
      %v2227 = vsel %vm1973, %v2224, -inf
      %2228 = vmax.xlane.f32.xlu0 %v2227
      %v2229 = vpop.xlane.xlu0 %2228
      %v2230 = vsub.f32 %v2224, %v2229
      %v2231 = vmul.f32 %v2230, 1.442695
      %v2232 = vpow.pop %v2231
      %v2233 = vsel %vm1973, %v2232, 0.0
      %2234 = vadd.xlane.f32.xlu0 %v2233
      %v2235 = vpop.xlane.xlu0 %2234
      %v2236 = vrcp.pop %v2235
      %v2237 = vmul.f32 %v2232, %v2236
      %v2238 = vpack.c.bf16 %v2237, %v2237
      %v2239 = vpack.c.bf16 %v1889, %v1889
      %v2241 = vsel %vm1973, %v2238, 0
      %v2244 = vsel %vm1990, %v2239, 0
      %2246 = vmatpush.bf16.msra.mxu0 0
      %2247 = vmatpush.bf16.msra.mxu0 0
      %2248 = vmatpush.bf16.msra.mxu0 0
      %2249 = vmatpush.bf16.msra.mxu0 0
      %2250 = vmatpush.bf16.msra.mxu0 0
      %2251 = vmatpush.bf16.msra.mxu0 0
      %2252 = vmatpush.bf16.msra.mxu0 0
      %2253 = vmatpush.bf16.msra.mxu0 %v2244
      %2254 = vmatmul.bf16.gmra.mxu0 %v2241
      %v2255 = vpop.f32.mrf.mxu0
      %v2256 = vadd.f32 0.0, %v2255
      %v2257 = vpop.f32.mrf.mxu0
      %2258 = vdwg.mxu0
      %v2259 = vpack.c.bf16 %v2256, %v2256
      %v2260 = vld [vmem:[%s3 + $0x80] sm:$0xf]
      %v2261 = vld [vmem:[%s3 + $0x84] sm:$0xf]
      %v2262 = vld [vmem:[%s3 + $0x88] sm:$0xf]
      %v2263 = vld [vmem:[%s3 + $0x8c] sm:$0xf]
      %v2264 = vld [vmem:[%s3 + $0x90] sm:$0xf]
      %v2265 = vld [vmem:[%s3 + $0x94] sm:$0xf]
      %v2266 = vld [vmem:[%s3 + $0x98] sm:$0xf]
      %v2267 = vld [vmem:[%s3 + $0x9c] sm:$0xf]
      %v2268 = vld [vmem:[%s3 + $0xa0] sm:$0xf]
      %v2269 = vld [vmem:[%s3 + $0xa4] sm:$0xf]
      %v2270 = vld [vmem:[%s3 + $0xa8] sm:$0xf]
      %v2271 = vld [vmem:[%s3 + $0xac] sm:$0xf]
      %v2272 = vld [vmem:[%s3 + $0xb0] sm:$0xf]
      %v2273 = vld [vmem:[%s3 + $0xb4] sm:$0xf]
      %v2274 = vld [vmem:[%s3 + $0xb8] sm:$0xf]
      %v2275 = vld [vmem:[%s3 + $0xbc] sm:$0xf]
      %v2292 = vunpack.c.l.b16 %v2260
      %v2293 = vunpack.c.l.b16 %v2261
      %v2294 = vunpack.c.l.b16 %v2262
      %v2295 = vunpack.c.l.b16 %v2263
      %v2296 = vunpack.c.l.b16 %v2264
      %v2297 = vunpack.c.l.b16 %v2265
      %v2298 = vunpack.c.l.b16 %v2266
      %v2299 = vunpack.c.l.b16 %v2267
      %v2300 = vunpack.c.l.b16 %v2268
      %v2301 = vunpack.c.l.b16 %v2269
      %v2302 = vunpack.c.l.b16 %v2270
      %v2303 = vunpack.c.l.b16 %v2271
      %v2304 = vunpack.c.l.b16 %v2272
      %v2305 = vunpack.c.l.b16 %v2273
      %v2306 = vunpack.c.l.b16 %v2274
      %v2307 = vunpack.c.l.b16 %v2275
      %v2308 = vpack.c.b16 %v2293, %v2292
      %v2309 = vpack.c.b16 %v2295, %v2294
      %v2310 = vpack.c.b16 %v2297, %v2296
      %v2311 = vpack.c.b16 %v2299, %v2298
      %v2312 = vpack.c.b16 %v2301, %v2300
      %v2313 = vpack.c.b16 %v2303, %v2302
      %v2314 = vpack.c.b16 %v2305, %v2304
      %v2315 = vpack.c.b16 %v2307, %v2306
      %2324 = vmatpush.bf16.msra.mxu0 %v2315
      %2325 = vmatpush.bf16.msra.mxu0 %v2314
      %2326 = vmatpush.bf16.msra.mxu0 %v2313
      %2327 = vmatpush.bf16.msra.mxu0 %v2312
      %2328 = vmatpush.bf16.msra.mxu0 %v2311
      %2329 = vmatpush.bf16.msra.mxu0 %v2310
      %2330 = vmatpush.bf16.msra.mxu0 %v2309
      %2331 = vmatpush.bf16.msra.mxu0 %v2308
      %2332 = vmatmul.bf16.gmra.mxu0 %v2259
      %v2333 = vpop.f32.mrf.mxu0
      %v2334 = vadd.f32 0.0, %v2333
      %v2335 = vpop.f32.mrf.mxu0
      %2336 = vdwg.mxu0
      %v2337 = vadd.f32 %v2208, %v2334
      %v2338 = vmul.f32 %v1694, 0.25
      %v2339 = vpack.c.bf16 %v2338, %v2338
      %v2340 = vpack.c.bf16 %v1798, %v1798
      %2341 = vmatpush.bf16.xpose.msra.mxu0 0
      %2342 = vmatpush.bf16.xpose.msra.mxu0 0
      %2343 = vmatpush.bf16.xpose.msra.mxu0 0
      %2344 = vmatpush.bf16.xpose.msra.mxu0 0
      %2345 = vmatpush.bf16.xpose.msra.mxu0 0
      %2346 = vmatpush.bf16.xpose.msra.mxu0 0
      %2347 = vmatpush.bf16.xpose.msra.mxu0 0
      %2348 = vmatpush.bf16.xpose.msra.mxu0 %v2340
      %2349 = vmatmul.bf16.gmra.mxu0 %v2339
      %v2350 = vpop.f32.mrf.mxu0
      %v2351 = vadd.f32 0.0, %v2350
      %v2352 = vpop.f32.mrf.mxu0
      %2353 = vdwg.mxu0
      %v2354 = vsel %vm1973, %v2351, -inf
      %2355 = vmax.xlane.f32.xlu0 %v2354
      %v2356 = vpop.xlane.xlu0 %2355
      %v2357 = vsub.f32 %v2351, %v2356
      %v2358 = vmul.f32 %v2357, 1.442695
      %v2359 = vpow.pop %v2358
      %v2360 = vsel %vm1973, %v2359, 0.0
      %2361 = vadd.xlane.f32.xlu0 %v2360
      %v2362 = vpop.xlane.xlu0 %2361
      %v2363 = vrcp.pop %v2362
      %v2364 = vmul.f32 %v2359, %v2363
      %v2365 = vpack.c.bf16 %v2364, %v2364
      %v2366 = vpack.c.bf16 %v1902, %v1902
      %v2368 = vsel %vm1973, %v2365, 0
      %v2371 = vsel %vm1990, %v2366, 0
      %2373 = vmatpush.bf16.msra.mxu0 0
      %2374 = vmatpush.bf16.msra.mxu0 0
      %2375 = vmatpush.bf16.msra.mxu0 0
      %2376 = vmatpush.bf16.msra.mxu0 0
      %2377 = vmatpush.bf16.msra.mxu0 0
      %2378 = vmatpush.bf16.msra.mxu0 0
      %2379 = vmatpush.bf16.msra.mxu0 0
      %2380 = vmatpush.bf16.msra.mxu0 %v2371
      %2381 = vmatmul.bf16.gmra.mxu0 %v2368
      %v2382 = vpop.f32.mrf.mxu0
      %v2383 = vadd.f32 0.0, %v2382
      %v2384 = vpop.f32.mrf.mxu0
      %2385 = vdwg.mxu0
      %v2386 = vpack.c.bf16 %v2383, %v2383
      %v2387 = vld [vmem:[%s3 + $0xc0] sm:$0xf]
      %v2388 = vld [vmem:[%s3 + $0xc4] sm:$0xf]
      %v2389 = vld [vmem:[%s3 + $0xc8] sm:$0xf]
      %v2390 = vld [vmem:[%s3 + $0xcc] sm:$0xf]
      %v2391 = vld [vmem:[%s3 + $0xd0] sm:$0xf]
      %v2392 = vld [vmem:[%s3 + $0xd4] sm:$0xf]
      %v2393 = vld [vmem:[%s3 + $0xd8] sm:$0xf]
      %v2394 = vld [vmem:[%s3 + $0xdc] sm:$0xf]
      %v2395 = vld [vmem:[%s3 + $0xe0] sm:$0xf]
      %v2396 = vld [vmem:[%s3 + $0xe4] sm:$0xf]
      %v2397 = vld [vmem:[%s3 + $0xe8] sm:$0xf]
      %v2398 = vld [vmem:[%s3 + $0xec] sm:$0xf]
      %v2399 = vld [vmem:[%s3 + $0xf0] sm:$0xf]
      %v2400 = vld [vmem:[%s3 + $0xf4] sm:$0xf]
      %v2401 = vld [vmem:[%s3 + $0xf8] sm:$0xf]
      %v2402 = vld [vmem:[%s3 + $0xfc] sm:$0xf]
      %v2419 = vunpack.c.l.b16 %v2387
      %v2420 = vunpack.c.l.b16 %v2388
      %v2421 = vunpack.c.l.b16 %v2389
      %v2422 = vunpack.c.l.b16 %v2390
      %v2423 = vunpack.c.l.b16 %v2391
      %v2424 = vunpack.c.l.b16 %v2392
      %v2425 = vunpack.c.l.b16 %v2393
      %v2426 = vunpack.c.l.b16 %v2394
      %v2427 = vunpack.c.l.b16 %v2395
      %v2428 = vunpack.c.l.b16 %v2396
      %v2429 = vunpack.c.l.b16 %v2397
      %v2430 = vunpack.c.l.b16 %v2398
      %v2431 = vunpack.c.l.b16 %v2399
      %v2432 = vunpack.c.l.b16 %v2400
      %v2433 = vunpack.c.l.b16 %v2401
      %v2434 = vunpack.c.l.b16 %v2402
      %v2435 = vpack.c.b16 %v2420, %v2419
      %v2436 = vpack.c.b16 %v2422, %v2421
      %v2437 = vpack.c.b16 %v2424, %v2423
      %v2438 = vpack.c.b16 %v2426, %v2425
      %v2439 = vpack.c.b16 %v2428, %v2427
      %v2440 = vpack.c.b16 %v2430, %v2429
      %v2441 = vpack.c.b16 %v2432, %v2431
      %v2442 = vpack.c.b16 %v2434, %v2433
      %2451 = vmatpush.bf16.msra.mxu0 %v2442
      %2452 = vmatpush.bf16.msra.mxu0 %v2441
      %2453 = vmatpush.bf16.msra.mxu0 %v2440
      %2454 = vmatpush.bf16.msra.mxu0 %v2439
      %2455 = vmatpush.bf16.msra.mxu0 %v2438
      %2456 = vmatpush.bf16.msra.mxu0 %v2437
      %2457 = vmatpush.bf16.msra.mxu0 %v2436
      %2458 = vmatpush.bf16.msra.mxu0 %v2435
      %2459 = vmatmul.bf16.gmra.mxu0 %v2386
      %v2460 = vpop.f32.mrf.mxu0
      %v2461 = vadd.f32 0.0, %v2460
      %v2462 = vpop.f32.mrf.mxu0
      %2463 = vdwg.mxu0
      %v2464 = vadd.f32 %v2337, %v2461
      %v2465 = vmul.f32 %v1707, 0.25
      %v2466 = vpack.c.bf16 %v2465, %v2465
      %v2467 = vpack.c.bf16 %v1811, %v1811
      %2468 = vmatpush.bf16.xpose.msra.mxu0 0
      %2469 = vmatpush.bf16.xpose.msra.mxu0 0
      %2470 = vmatpush.bf16.xpose.msra.mxu0 0
      %2471 = vmatpush.bf16.xpose.msra.mxu0 0
      %2472 = vmatpush.bf16.xpose.msra.mxu0 0
      %2473 = vmatpush.bf16.xpose.msra.mxu0 0
      %2474 = vmatpush.bf16.xpose.msra.mxu0 0
      %2475 = vmatpush.bf16.xpose.msra.mxu0 %v2467
      %2476 = vmatmul.bf16.gmra.mxu0 %v2466
      %v2477 = vpop.f32.mrf.mxu0
      %v2478 = vadd.f32 0.0, %v2477
      %v2479 = vpop.f32.mrf.mxu0
      %2480 = vdwg.mxu0
      %v2481 = vsel %vm1973, %v2478, -inf
      %2482 = vmax.xlane.f32.xlu0 %v2481
      %v2483 = vpop.xlane.xlu0 %2482
      %v2484 = vsub.f32 %v2478, %v2483
      %v2485 = vmul.f32 %v2484, 1.442695
      %v2486 = vpow.pop %v2485
      %v2487 = vsel %vm1973, %v2486, 0.0
      %2488 = vadd.xlane.f32.xlu0 %v2487
      %v2489 = vpop.xlane.xlu0 %2488
      %v2490 = vrcp.pop %v2489
      %v2491 = vmul.f32 %v2486, %v2490
      %v2492 = vpack.c.bf16 %v2491, %v2491
      %v2493 = vpack.c.bf16 %v1915, %v1915
      %v2495 = vsel %vm1973, %v2492, 0
      %v2498 = vsel %vm1990, %v2493, 0
      %2500 = vmatpush.bf16.msra.mxu0 0
      %2501 = vmatpush.bf16.msra.mxu0 0
      %2502 = vmatpush.bf16.msra.mxu0 0
      %2503 = vmatpush.bf16.msra.mxu0 0
      %2504 = vmatpush.bf16.msra.mxu0 0
      %2505 = vmatpush.bf16.msra.mxu0 0
      %2506 = vmatpush.bf16.msra.mxu0 0
      %2507 = vmatpush.bf16.msra.mxu0 %v2498
      %2508 = vmatmul.bf16.gmra.mxu0 %v2495
      %v2509 = vpop.f32.mrf.mxu0
      %v2510 = vadd.f32 0.0, %v2509
      %v2511 = vpop.f32.mrf.mxu0
      %2512 = vdwg.mxu0
      %v2513 = vpack.c.bf16 %v2510, %v2510
      %v2514 = vld [vmem:[%s3 + $0x100] sm:$0xf]
      %v2515 = vld [vmem:[%s3 + $0x104] sm:$0xf]
      %v2516 = vld [vmem:[%s3 + $0x108] sm:$0xf]
      %v2517 = vld [vmem:[%s3 + $0x10c] sm:$0xf]
      %v2518 = vld [vmem:[%s3 + $0x110] sm:$0xf]
      %v2519 = vld [vmem:[%s3 + $0x114] sm:$0xf]
      %v2520 = vld [vmem:[%s3 + $0x118] sm:$0xf]
      %v2521 = vld [vmem:[%s3 + $0x11c] sm:$0xf]
      %v2522 = vld [vmem:[%s3 + $0x120] sm:$0xf]
      %v2523 = vld [vmem:[%s3 + $0x124] sm:$0xf]
      %v2524 = vld [vmem:[%s3 + $0x128] sm:$0xf]
      %v2525 = vld [vmem:[%s3 + $0x12c] sm:$0xf]
      %v2526 = vld [vmem:[%s3 + $0x130] sm:$0xf]
      %v2527 = vld [vmem:[%s3 + $0x134] sm:$0xf]
      %v2528 = vld [vmem:[%s3 + $0x138] sm:$0xf]
      %v2529 = vld [vmem:[%s3 + $0x13c] sm:$0xf]
      %v2546 = vunpack.c.l.b16 %v2514
      %v2547 = vunpack.c.l.b16 %v2515
      %v2548 = vunpack.c.l.b16 %v2516
      %v2549 = vunpack.c.l.b16 %v2517
      %v2550 = vunpack.c.l.b16 %v2518
      %v2551 = vunpack.c.l.b16 %v2519
      %v2552 = vunpack.c.l.b16 %v2520
      %v2553 = vunpack.c.l.b16 %v2521
      %v2554 = vunpack.c.l.b16 %v2522
      %v2555 = vunpack.c.l.b16 %v2523
      %v2556 = vunpack.c.l.b16 %v2524
      %v2557 = vunpack.c.l.b16 %v2525
      %v2558 = vunpack.c.l.b16 %v2526
      %v2559 = vunpack.c.l.b16 %v2527
      %v2560 = vunpack.c.l.b16 %v2528
      %v2561 = vunpack.c.l.b16 %v2529
      %v2562 = vpack.c.b16 %v2547, %v2546
      %v2563 = vpack.c.b16 %v2549, %v2548
      %v2564 = vpack.c.b16 %v2551, %v2550
      %v2565 = vpack.c.b16 %v2553, %v2552
      %v2566 = vpack.c.b16 %v2555, %v2554
      %v2567 = vpack.c.b16 %v2557, %v2556
      %v2568 = vpack.c.b16 %v2559, %v2558
      %v2569 = vpack.c.b16 %v2561, %v2560
      %2578 = vmatpush.bf16.msra.mxu0 %v2569
      %2579 = vmatpush.bf16.msra.mxu0 %v2568
      %2580 = vmatpush.bf16.msra.mxu0 %v2567
      %2581 = vmatpush.bf16.msra.mxu0 %v2566
      %2582 = vmatpush.bf16.msra.mxu0 %v2565
      %2583 = vmatpush.bf16.msra.mxu0 %v2564
      %2584 = vmatpush.bf16.msra.mxu0 %v2563
      %2585 = vmatpush.bf16.msra.mxu0 %v2562
      %2586 = vmatmul.bf16.gmra.mxu0 %v2513
      %v2587 = vpop.f32.mrf.mxu0
      %v2588 = vadd.f32 0.0, %v2587
      %v2589 = vpop.f32.mrf.mxu0
      %2590 = vdwg.mxu0
      %v2591 = vadd.f32 %v2464, %v2588
      %v2592 = vmul.f32 %v1720, 0.25
      %v2593 = vpack.c.bf16 %v2592, %v2592
      %v2594 = vpack.c.bf16 %v1824, %v1824
      %2595 = vmatpush.bf16.xpose.msra.mxu0 0
      %2596 = vmatpush.bf16.xpose.msra.mxu0 0
      %2597 = vmatpush.bf16.xpose.msra.mxu0 0
      %2598 = vmatpush.bf16.xpose.msra.mxu0 0
      %2599 = vmatpush.bf16.xpose.msra.mxu0 0
      %2600 = vmatpush.bf16.xpose.msra.mxu0 0
      %2601 = vmatpush.bf16.xpose.msra.mxu0 0
      %2602 = vmatpush.bf16.xpose.msra.mxu0 %v2594
      %2603 = vmatmul.bf16.gmra.mxu0 %v2593
      %v2604 = vpop.f32.mrf.mxu0
      %v2605 = vadd.f32 0.0, %v2604
      %v2606 = vpop.f32.mrf.mxu0
      %2607 = vdwg.mxu0
      %v2608 = vsel %vm1973, %v2605, -inf
      %2609 = vmax.xlane.f32.xlu0 %v2608
      %v2610 = vpop.xlane.xlu0 %2609
      %v2611 = vsub.f32 %v2605, %v2610
      %v2612 = vmul.f32 %v2611, 1.442695
      %v2613 = vpow.pop %v2612
      %v2614 = vsel %vm1973, %v2613, 0.0
      %2615 = vadd.xlane.f32.xlu0 %v2614
      %v2616 = vpop.xlane.xlu0 %2615
      %v2617 = vrcp.pop %v2616
      %v2618 = vmul.f32 %v2613, %v2617
      %v2619 = vpack.c.bf16 %v2618, %v2618
      %v2620 = vpack.c.bf16 %v1928, %v1928
      %v2622 = vsel %vm1973, %v2619, 0
      %v2625 = vsel %vm1990, %v2620, 0
      %2627 = vmatpush.bf16.msra.mxu0 0
      %2628 = vmatpush.bf16.msra.mxu0 0
      %2629 = vmatpush.bf16.msra.mxu0 0
      %2630 = vmatpush.bf16.msra.mxu0 0
      %2631 = vmatpush.bf16.msra.mxu0 0
      %2632 = vmatpush.bf16.msra.mxu0 0
      %2633 = vmatpush.bf16.msra.mxu0 0
      %2634 = vmatpush.bf16.msra.mxu0 %v2625
      %2635 = vmatmul.bf16.gmra.mxu0 %v2622
      %v2636 = vpop.f32.mrf.mxu0
      %v2637 = vadd.f32 0.0, %v2636
      %v2638 = vpop.f32.mrf.mxu0
      %2639 = vdwg.mxu0
      %v2640 = vpack.c.bf16 %v2637, %v2637
      %v2641 = vld [vmem:[%s3 + $0x140] sm:$0xf]
      %v2642 = vld [vmem:[%s3 + $0x144] sm:$0xf]
      %v2643 = vld [vmem:[%s3 + $0x148] sm:$0xf]
      %v2644 = vld [vmem:[%s3 + $0x14c] sm:$0xf]
      %v2645 = vld [vmem:[%s3 + $0x150] sm:$0xf]
      %v2646 = vld [vmem:[%s3 + $0x154] sm:$0xf]
      %v2647 = vld [vmem:[%s3 + $0x158] sm:$0xf]
      %v2648 = vld [vmem:[%s3 + $0x15c] sm:$0xf]
      %v2649 = vld [vmem:[%s3 + $0x160] sm:$0xf]
      %v2650 = vld [vmem:[%s3 + $0x164] sm:$0xf]
      %v2651 = vld [vmem:[%s3 + $0x168] sm:$0xf]
      %v2652 = vld [vmem:[%s3 + $0x16c] sm:$0xf]
      %v2653 = vld [vmem:[%s3 + $0x170] sm:$0xf]
      %v2654 = vld [vmem:[%s3 + $0x174] sm:$0xf]
      %v2655 = vld [vmem:[%s3 + $0x178] sm:$0xf]
      %v2656 = vld [vmem:[%s3 + $0x17c] sm:$0xf]
      %v2673 = vunpack.c.l.b16 %v2641
      %v2674 = vunpack.c.l.b16 %v2642
      %v2675 = vunpack.c.l.b16 %v2643
      %v2676 = vunpack.c.l.b16 %v2644
      %v2677 = vunpack.c.l.b16 %v2645
      %v2678 = vunpack.c.l.b16 %v2646
      %v2679 = vunpack.c.l.b16 %v2647
      %v2680 = vunpack.c.l.b16 %v2648
      %v2681 = vunpack.c.l.b16 %v2649
      %v2682 = vunpack.c.l.b16 %v2650
      %v2683 = vunpack.c.l.b16 %v2651
      %v2684 = vunpack.c.l.b16 %v2652
      %v2685 = vunpack.c.l.b16 %v2653
      %v2686 = vunpack.c.l.b16 %v2654
      %v2687 = vunpack.c.l.b16 %v2655
      %v2688 = vunpack.c.l.b16 %v2656
      %v2689 = vpack.c.b16 %v2674, %v2673
      %v2690 = vpack.c.b16 %v2676, %v2675
      %v2691 = vpack.c.b16 %v2678, %v2677
      %v2692 = vpack.c.b16 %v2680, %v2679
      %v2693 = vpack.c.b16 %v2682, %v2681
      %v2694 = vpack.c.b16 %v2684, %v2683
      %v2695 = vpack.c.b16 %v2686, %v2685
      %v2696 = vpack.c.b16 %v2688, %v2687
      %2705 = vmatpush.bf16.msra.mxu0 %v2696
      %2706 = vmatpush.bf16.msra.mxu0 %v2695
      %2707 = vmatpush.bf16.msra.mxu0 %v2694
      %2708 = vmatpush.bf16.msra.mxu0 %v2693
      %2709 = vmatpush.bf16.msra.mxu0 %v2692
      %2710 = vmatpush.bf16.msra.mxu0 %v2691
      %2711 = vmatpush.bf16.msra.mxu0 %v2690
      %2712 = vmatpush.bf16.msra.mxu0 %v2689
      %2713 = vmatmul.bf16.gmra.mxu0 %v2640
      %v2714 = vpop.f32.mrf.mxu0
      %v2715 = vadd.f32 0.0, %v2714
      %v2716 = vpop.f32.mrf.mxu0
      %2717 = vdwg.mxu0
      %v2718 = vadd.f32 %v2591, %v2715
      %v2719 = vmul.f32 %v1733, 0.25
      %v2720 = vpack.c.bf16 %v2719, %v2719
      %v2721 = vpack.c.bf16 %v1837, %v1837
      %2722 = vmatpush.bf16.xpose.msra.mxu0 0
      %2723 = vmatpush.bf16.xpose.msra.mxu0 0
      %2724 = vmatpush.bf16.xpose.msra.mxu0 0
      %2725 = vmatpush.bf16.xpose.msra.mxu0 0
      %2726 = vmatpush.bf16.xpose.msra.mxu0 0
      %2727 = vmatpush.bf16.xpose.msra.mxu0 0
      %2728 = vmatpush.bf16.xpose.msra.mxu0 0
      %2729 = vmatpush.bf16.xpose.msra.mxu0 %v2721
      %2730 = vmatmul.bf16.gmra.mxu0 %v2720
      %v2731 = vpop.f32.mrf.mxu0
      %v2732 = vadd.f32 0.0, %v2731
      %v2733 = vpop.f32.mrf.mxu0
      %2734 = vdwg.mxu0
      %v2735 = vsel %vm1973, %v2732, -inf
      %2736 = vmax.xlane.f32.xlu0 %v2735
      %v2737 = vpop.xlane.xlu0 %2736
      %v2738 = vsub.f32 %v2732, %v2737
      %v2739 = vmul.f32 %v2738, 1.442695
      %v2740 = vpow.pop %v2739
      %v2741 = vsel %vm1973, %v2740, 0.0
      %2742 = vadd.xlane.f32.xlu0 %v2741
      %v2743 = vpop.xlane.xlu0 %2742
      %v2744 = vrcp.pop %v2743
      %v2745 = vmul.f32 %v2740, %v2744
      %v2746 = vpack.c.bf16 %v2745, %v2745
      %v2747 = vpack.c.bf16 %v1941, %v1941
      %v2749 = vsel %vm1973, %v2746, 0
      %v2752 = vsel %vm1990, %v2747, 0
      %2754 = vmatpush.bf16.msra.mxu0 0
      %2755 = vmatpush.bf16.msra.mxu0 0
      %2756 = vmatpush.bf16.msra.mxu0 0
      %2757 = vmatpush.bf16.msra.mxu0 0
      %2758 = vmatpush.bf16.msra.mxu0 0
      %2759 = vmatpush.bf16.msra.mxu0 0
      %2760 = vmatpush.bf16.msra.mxu0 0
      %2761 = vmatpush.bf16.msra.mxu0 %v2752
      %2762 = vmatmul.bf16.gmra.mxu0 %v2749
      %v2763 = vpop.f32.mrf.mxu0
      %v2764 = vadd.f32 0.0, %v2763
      %v2765 = vpop.f32.mrf.mxu0
      %2766 = vdwg.mxu0
      %v2767 = vpack.c.bf16 %v2764, %v2764
      %v2768 = vld [vmem:[%s3 + $0x180] sm:$0xf]
      %v2769 = vld [vmem:[%s3 + $0x184] sm:$0xf]
      %v2770 = vld [vmem:[%s3 + $0x188] sm:$0xf]
      %v2771 = vld [vmem:[%s3 + $0x18c] sm:$0xf]
      %v2772 = vld [vmem:[%s3 + $0x190] sm:$0xf]
      %v2773 = vld [vmem:[%s3 + $0x194] sm:$0xf]
      %v2774 = vld [vmem:[%s3 + $0x198] sm:$0xf]
      %v2775 = vld [vmem:[%s3 + $0x19c] sm:$0xf]
      %v2776 = vld [vmem:[%s3 + $0x1a0] sm:$0xf]
      %v2777 = vld [vmem:[%s3 + $0x1a4] sm:$0xf]
      %v2778 = vld [vmem:[%s3 + $0x1a8] sm:$0xf]
      %v2779 = vld [vmem:[%s3 + $0x1ac] sm:$0xf]
      %v2780 = vld [vmem:[%s3 + $0x1b0] sm:$0xf]
      %v2781 = vld [vmem:[%s3 + $0x1b4] sm:$0xf]
      %v2782 = vld [vmem:[%s3 + $0x1b8] sm:$0xf]
      %v2783 = vld [vmem:[%s3 + $0x1bc] sm:$0xf]
      %v2800 = vunpack.c.l.b16 %v2768
      %v2801 = vunpack.c.l.b16 %v2769
      %v2802 = vunpack.c.l.b16 %v2770
      %v2803 = vunpack.c.l.b16 %v2771
      %v2804 = vunpack.c.l.b16 %v2772
      %v2805 = vunpack.c.l.b16 %v2773
      %v2806 = vunpack.c.l.b16 %v2774
      %v2807 = vunpack.c.l.b16 %v2775
      %v2808 = vunpack.c.l.b16 %v2776
      %v2809 = vunpack.c.l.b16 %v2777
      %v2810 = vunpack.c.l.b16 %v2778
      %v2811 = vunpack.c.l.b16 %v2779
      %v2812 = vunpack.c.l.b16 %v2780
      %v2813 = vunpack.c.l.b16 %v2781
      %v2814 = vunpack.c.l.b16 %v2782
      %v2815 = vunpack.c.l.b16 %v2783
      %v2816 = vpack.c.b16 %v2801, %v2800
      %v2817 = vpack.c.b16 %v2803, %v2802
      %v2818 = vpack.c.b16 %v2805, %v2804
      %v2819 = vpack.c.b16 %v2807, %v2806
      %v2820 = vpack.c.b16 %v2809, %v2808
      %v2821 = vpack.c.b16 %v2811, %v2810
      %v2822 = vpack.c.b16 %v2813, %v2812
      %v2823 = vpack.c.b16 %v2815, %v2814
      %2832 = vmatpush.bf16.msra.mxu0 %v2823
      %2833 = vmatpush.bf16.msra.mxu0 %v2822
      %2834 = vmatpush.bf16.msra.mxu0 %v2821
      %2835 = vmatpush.bf16.msra.mxu0 %v2820
      %2836 = vmatpush.bf16.msra.mxu0 %v2819
      %2837 = vmatpush.bf16.msra.mxu0 %v2818
      %2838 = vmatpush.bf16.msra.mxu0 %v2817
      %2839 = vmatpush.bf16.msra.mxu0 %v2816
      %2840 = vmatmul.bf16.gmra.mxu0 %v2767
      %v2841 = vpop.f32.mrf.mxu0
      %v2842 = vadd.f32 0.0, %v2841
      %v2843 = vpop.f32.mrf.mxu0
      %2844 = vdwg.mxu0
      %v2845 = vadd.f32 %v2718, %v2842
      %v2846 = vmul.f32 %v1746, 0.25
      %v2847 = vpack.c.bf16 %v2846, %v2846
      %v2848 = vpack.c.bf16 %v1850, %v1850
      %2849 = vmatpush.bf16.xpose.msra.mxu0 0
      %2850 = vmatpush.bf16.xpose.msra.mxu0 0
      %2851 = vmatpush.bf16.xpose.msra.mxu0 0
      %2852 = vmatpush.bf16.xpose.msra.mxu0 0
      %2853 = vmatpush.bf16.xpose.msra.mxu0 0
      %2854 = vmatpush.bf16.xpose.msra.mxu0 0
      %2855 = vmatpush.bf16.xpose.msra.mxu0 0
      %2856 = vmatpush.bf16.xpose.msra.mxu0 %v2848
      %2857 = vmatmul.bf16.gmra.mxu0 %v2847
      %v2858 = vpop.f32.mrf.mxu0
      %v2859 = vadd.f32 0.0, %v2858
      %v2860 = vpop.f32.mrf.mxu0
      %2861 = vdwg.mxu0
      %v2862 = vsel %vm1973, %v2859, -inf
      %2863 = vmax.xlane.f32.xlu0 %v2862
      %v2864 = vpop.xlane.xlu0 %2863
      %v2865 = vsub.f32 %v2859, %v2864
      %v2866 = vmul.f32 %v2865, 1.442695
      %v2867 = vpow.pop %v2866
      %v2868 = vsel %vm1973, %v2867, 0.0
      %2869 = vadd.xlane.f32.xlu0 %v2868
      %v2870 = vpop.xlane.xlu0 %2869
      %v2871 = vrcp.pop %v2870
      %v2872 = vmul.f32 %v2867, %v2871
      %v2873 = vpack.c.bf16 %v2872, %v2872
      %v2874 = vpack.c.bf16 %v1954, %v1954
      %v2876 = vsel %vm1973, %v2873, 0
      %v2879 = vsel %vm1990, %v2874, 0
      %2881 = vmatpush.bf16.msra.mxu0 0
      %2882 = vmatpush.bf16.msra.mxu0 0
      %2883 = vmatpush.bf16.msra.mxu0 0
      %2884 = vmatpush.bf16.msra.mxu0 0
      %2885 = vmatpush.bf16.msra.mxu0 0
      %2886 = vmatpush.bf16.msra.mxu0 0
      %2887 = vmatpush.bf16.msra.mxu0 0
      %2888 = vmatpush.bf16.msra.mxu0 %v2879
      %2889 = vmatmul.bf16.gmra.mxu0 %v2876
      %v2890 = vpop.f32.mrf.mxu0
      %v2891 = vadd.f32 0.0, %v2890
      %v2892 = vpop.f32.mrf.mxu0
      %2893 = vdwg.mxu0
      %v2894 = vpack.c.bf16 %v2891, %v2891
      %v2895 = vld [vmem:[%s3 + $0x1c0] sm:$0xf]
      %v2896 = vld [vmem:[%s3 + $0x1c4] sm:$0xf]
      %v2897 = vld [vmem:[%s3 + $0x1c8] sm:$0xf]
      %v2898 = vld [vmem:[%s3 + $0x1cc] sm:$0xf]
      %v2899 = vld [vmem:[%s3 + $0x1d0] sm:$0xf]
      %v2900 = vld [vmem:[%s3 + $0x1d4] sm:$0xf]
      %v2901 = vld [vmem:[%s3 + $0x1d8] sm:$0xf]
      %v2902 = vld [vmem:[%s3 + $0x1dc] sm:$0xf]
      %v2903 = vld [vmem:[%s3 + $0x1e0] sm:$0xf]
      %v2904 = vld [vmem:[%s3 + $0x1e4] sm:$0xf]
      %v2905 = vld [vmem:[%s3 + $0x1e8] sm:$0xf]
      %v2906 = vld [vmem:[%s3 + $0x1ec] sm:$0xf]
      %v2907 = vld [vmem:[%s3 + $0x1f0] sm:$0xf]
      %v2908 = vld [vmem:[%s3 + $0x1f4] sm:$0xf]
      %v2909 = vld [vmem:[%s3 + $0x1f8] sm:$0xf]
      %v2910 = vld [vmem:[%s3 + $0x1fc] sm:$0xf]
      %v2927 = vunpack.c.l.b16 %v2895
      %v2928 = vunpack.c.l.b16 %v2896
      %v2929 = vunpack.c.l.b16 %v2897
      %v2930 = vunpack.c.l.b16 %v2898
      %v2931 = vunpack.c.l.b16 %v2899
      %v2932 = vunpack.c.l.b16 %v2900
      %v2933 = vunpack.c.l.b16 %v2901
      %v2934 = vunpack.c.l.b16 %v2902
      %v2935 = vunpack.c.l.b16 %v2903
      %v2936 = vunpack.c.l.b16 %v2904
      %v2937 = vunpack.c.l.b16 %v2905
      %v2938 = vunpack.c.l.b16 %v2906
      %v2939 = vunpack.c.l.b16 %v2907
      %v2940 = vunpack.c.l.b16 %v2908
      %v2941 = vunpack.c.l.b16 %v2909
      %v2942 = vunpack.c.l.b16 %v2910
      %v2943 = vpack.c.b16 %v2928, %v2927
      %v2944 = vpack.c.b16 %v2930, %v2929
      %v2945 = vpack.c.b16 %v2932, %v2931
      %v2946 = vpack.c.b16 %v2934, %v2933
      %v2947 = vpack.c.b16 %v2936, %v2935
      %v2948 = vpack.c.b16 %v2938, %v2937
      %v2949 = vpack.c.b16 %v2940, %v2939
      %v2950 = vpack.c.b16 %v2942, %v2941
      %2959 = vmatpush.bf16.msra.mxu0 %v2950
      %2960 = vmatpush.bf16.msra.mxu0 %v2949
      %2961 = vmatpush.bf16.msra.mxu0 %v2948
      %2962 = vmatpush.bf16.msra.mxu0 %v2947
      %2963 = vmatpush.bf16.msra.mxu0 %v2946
      %2964 = vmatpush.bf16.msra.mxu0 %v2945
      %2965 = vmatpush.bf16.msra.mxu0 %v2944
      %2966 = vmatpush.bf16.msra.mxu0 %v2943
      %2967 = vmatmul.bf16.gmra.mxu0 %v2894
      %v2968 = vpop.f32.mrf.mxu0
      %v2969 = vadd.f32 0.0, %v2968
      %v2970 = vpop.f32.mrf.mxu0
      %2971 = vdwg.mxu0
      %v2972 = vadd.f32 %v2845, %v2969
      %v2973 = vld [vmem:[%s4] sm:$0x1]
      %v2975 = vperm.slane %v2973, 0
      %v2977 = vadd.f32 %v2972, %v2975
      %v2978 = vadd.f32 %v437, %v2977
      %2979 = vadd.xlane.f32.xlu0 %v2978
      %v2980 = vpop.xlane.xlu0 %2979
      %v2981 = vrcp.pop 128.0
      %v2982 = vmul.f32 128.0, %v2981
      %v2983 = vsub.f32 1.0, %v2982
      %v2984 = vmul.f32 %v2981, %v2983
      %v2985 = vadd.f32 %v2981, %v2984
      %vm2986 = vweird.f32 %v2981
      %v2987 = vsel %vm2986, %v2981, %v2985
      %v2988 = vmul.f32 %v2980, %v2987
      %v2989 = vsub.f32 %v2978, %v2988
      %v2990 = vmul.f32 %v2989, %v2989
      %2991 = vadd.xlane.f32.xlu0 %v2990
      %v2992 = vpop.xlane.xlu0 %2991
      %v2993 = vmul.f32 %v2992, %v2987
      %v2994 = vadd.f32 %v2993, 1e-05
      %v2995 = vrsqrt.pop %v2994
      %v2996 = vmul.f32 %v2995, %v2994
      %v2997 = vmul.f32 %v2996, %v2995
      %v2998 = vmul.f32 0.5, %v2997
      %v2999 = vsub.f32 1.5, %v2998
      %v3000 = vmul.f32 %v2995, %v2999
      %vm3001 = vweird.f32 %v2994
      %vm3002 = vweird.f32 %v2995
      %vm3003 = vmor %vm3001, %vm3002
      %v3004 = vsel %vm3003, %v2995, %v3000
      %v3005 = vmul.f32 %v2989, %v3004
      %v3006 = vld [vmem:[%s5] sm:$0x1]
      %v3008 = vperm.slane %v3006, 0
      %v3010 = vmul.f32 %v3005, %v3008
      %v3011 = vld [vmem:[%s6] sm:$0x1]
      %v3013 = vperm.slane %v3011, 0
      %v3015 = vadd.f32 %v3010, %v3013
      %v3016 = vpack.c.bf16 %v3015, %v3015
      %v3017 = vld [vmem:[%s7] sm:$0xff]
      %v3018 = vld [vmem:[%s7 + $0x8] sm:$0xff]
      %v3019 = vld [vmem:[%s7 + $0x10] sm:$0xff]
      %v3020 = vld [vmem:[%s7 + $0x18] sm:$0xff]
      %v3021 = vld [vmem:[%s7 + $0x20] sm:$0xff]
      %v3022 = vld [vmem:[%s7 + $0x28] sm:$0xff]
      %v3023 = vld [vmem:[%s7 + $0x30] sm:$0xff]
      %v3024 = vld [vmem:[%s7 + $0x38] sm:$0xff]
      %v3025 = vld [vmem:[%s7 + $0x40] sm:$0xff]
      %v3026 = vld [vmem:[%s7 + $0x48] sm:$0xff]
      %v3027 = vld [vmem:[%s7 + $0x50] sm:$0xff]
      %v3028 = vld [vmem:[%s7 + $0x58] sm:$0xff]
      %v3029 = vld [vmem:[%s7 + $0x60] sm:$0xff]
      %v3030 = vld [vmem:[%s7 + $0x68] sm:$0xff]
      %v3031 = vld [vmem:[%s7 + $0x70] sm:$0xff]
      %v3032 = vld [vmem:[%s7 + $0x78] sm:$0xff]
      %v3033 = vld [vmem:[%s8] sm:$0x3]
      %v3035 = vperm.slane %v3033, 0
      %v3036 = vperm.slane %v3033, 1
      %v3055 = vunpack.c.l.b16 %v3017
      %v3056 = vunpack.c.h.b16 %v3017
      %v3057 = vunpack.c.l.b16 %v3018
      %v3058 = vunpack.c.h.b16 %v3018
      %v3059 = vunpack.c.l.b16 %v3019
      %v3060 = vunpack.c.h.b16 %v3019
      %v3061 = vunpack.c.l.b16 %v3020
      %v3062 = vunpack.c.h.b16 %v3020
      %v3063 = vunpack.c.l.b16 %v3021
      %v3064 = vunpack.c.h.b16 %v3021
      %v3065 = vunpack.c.l.b16 %v3022
      %v3066 = vunpack.c.h.b16 %v3022
      %v3067 = vunpack.c.l.b16 %v3023
      %v3068 = vunpack.c.h.b16 %v3023
      %v3069 = vunpack.c.l.b16 %v3024
      %v3070 = vunpack.c.h.b16 %v3024
      %v3071 = vunpack.c.l.b16 %v3025
      %v3072 = vunpack.c.h.b16 %v3025
      %v3073 = vunpack.c.l.b16 %v3026
      %v3074 = vunpack.c.h.b16 %v3026
      %v3075 = vunpack.c.l.b16 %v3027
      %v3076 = vunpack.c.h.b16 %v3027
      %v3077 = vunpack.c.l.b16 %v3028
      %v3078 = vunpack.c.h.b16 %v3028
      %v3079 = vunpack.c.l.b16 %v3029
      %v3080 = vunpack.c.h.b16 %v3029
      %v3081 = vunpack.c.l.b16 %v3030
      %v3082 = vunpack.c.h.b16 %v3030
      %v3083 = vunpack.c.l.b16 %v3031
      %v3084 = vunpack.c.h.b16 %v3031
      %v3085 = vunpack.c.l.b16 %v3032
      %v3086 = vunpack.c.h.b16 %v3032
      %v3087 = vpack.c.b16 %v3057, %v3055
      %v3088 = vpack.c.b16 %v3058, %v3056
      %v3089 = vpack.c.b16 %v3061, %v3059
      %v3090 = vpack.c.b16 %v3062, %v3060
      %v3091 = vpack.c.b16 %v3065, %v3063
      %v3092 = vpack.c.b16 %v3066, %v3064
      %v3093 = vpack.c.b16 %v3069, %v3067
      %v3094 = vpack.c.b16 %v3070, %v3068
      %v3095 = vpack.c.b16 %v3073, %v3071
      %v3096 = vpack.c.b16 %v3074, %v3072
      %v3097 = vpack.c.b16 %v3077, %v3075
      %v3098 = vpack.c.b16 %v3078, %v3076
      %v3099 = vpack.c.b16 %v3081, %v3079
      %v3100 = vpack.c.b16 %v3082, %v3080
      %v3101 = vpack.c.b16 %v3085, %v3083
      %v3102 = vpack.c.b16 %v3086, %v3084
      %3119 = vmatpush.bf16.msra.mxu0 %v3101
      %3120 = vmatpush.bf16.msra.mxu0 %v3099
      %3121 = vmatpush.bf16.msra.mxu0 %v3097
      %3122 = vmatpush.bf16.msra.mxu0 %v3095
      %3123 = vmatpush.bf16.msra.mxu0 %v3093
      %3124 = vmatpush.bf16.msra.mxu0 %v3091
      %3125 = vmatpush.bf16.msra.mxu0 %v3089
      %3126 = vmatpush.bf16.msra.mxu0 %v3087
      %3127 = vmatmul.bf16.gmra.mxu0 %v3016
      %v3128 = vpop.f32.mrf.mxu0
      %v3129 = vadd.f32 %v3035, %v3128
      %v3130 = vpop.f32.mrf.mxu0
      %3131 = vdwg.mxu0
      %3132 = vmatpush.bf16.msra.mxu0 %v3102
      %3133 = vmatpush.bf16.msra.mxu0 %v3100
      %3134 = vmatpush.bf16.msra.mxu0 %v3098
      %3135 = vmatpush.bf16.msra.mxu0 %v3096
      %3136 = vmatpush.bf16.msra.mxu0 %v3094
      %3137 = vmatpush.bf16.msra.mxu0 %v3092
      %3138 = vmatpush.bf16.msra.mxu0 %v3090
      %3139 = vmatpush.bf16.msra.mxu0 %v3088
      %3140 = vmatmul.bf16.gmra.mxu0 %v3016
      %v3141 = vpop.f32.mrf.mxu0
      %v3142 = vadd.f32 %v3036, %v3141
      %v3143 = vpop.f32.mrf.mxu0
      %3144 = vdwg.mxu0
      %v3145 = vmax.f32 %v3129, 0.0
      %v3146 = vmax.f32 %v3142, 0.0
      %v3147 = vpack.c.bf16 %v3145, %v3145
      %v3148 = vpack.c.bf16 %v3146, %v3146
      %v3149 = vld [vmem:[%s9] sm:$0xf]
      %v3150 = vld [vmem:[%s9 + $0x4] sm:$0xf]
      %v3151 = vld [vmem:[%s9 + $0x8] sm:$0xf]
      %v3152 = vld [vmem:[%s9 + $0xc] sm:$0xf]
      %v3153 = vld [vmem:[%s9 + $0x10] sm:$0xf]
      %v3154 = vld [vmem:[%s9 + $0x14] sm:$0xf]
      %v3155 = vld [vmem:[%s9 + $0x18] sm:$0xf]
      %v3156 = vld [vmem:[%s9 + $0x1c] sm:$0xf]
      %v3157 = vld [vmem:[%s9 + $0x20] sm:$0xf]
      %v3158 = vld [vmem:[%s9 + $0x24] sm:$0xf]
      %v3159 = vld [vmem:[%s9 + $0x28] sm:$0xf]
      %v3160 = vld [vmem:[%s9 + $0x2c] sm:$0xf]
      %v3161 = vld [vmem:[%s9 + $0x30] sm:$0xf]
      %v3162 = vld [vmem:[%s9 + $0x34] sm:$0xf]
      %v3163 = vld [vmem:[%s9 + $0x38] sm:$0xf]
      %v3164 = vld [vmem:[%s9 + $0x3c] sm:$0xf]
      %v3165 = vld [vmem:[%s9 + $0x40] sm:$0xf]
      %v3166 = vld [vmem:[%s9 + $0x44] sm:$0xf]
      %v3167 = vld [vmem:[%s9 + $0x48] sm:$0xf]
      %v3168 = vld [vmem:[%s9 + $0x4c] sm:$0xf]
      %v3169 = vld [vmem:[%s9 + $0x50] sm:$0xf]
      %v3170 = vld [vmem:[%s9 + $0x54] sm:$0xf]
      %v3171 = vld [vmem:[%s9 + $0x58] sm:$0xf]
      %v3172 = vld [vmem:[%s9 + $0x5c] sm:$0xf]
      %v3173 = vld [vmem:[%s9 + $0x60] sm:$0xf]
      %v3174 = vld [vmem:[%s9 + $0x64] sm:$0xf]
      %v3175 = vld [vmem:[%s9 + $0x68] sm:$0xf]
      %v3176 = vld [vmem:[%s9 + $0x6c] sm:$0xf]
      %v3177 = vld [vmem:[%s9 + $0x70] sm:$0xf]
      %v3178 = vld [vmem:[%s9 + $0x74] sm:$0xf]
      %v3179 = vld [vmem:[%s9 + $0x78] sm:$0xf]
      %v3180 = vld [vmem:[%s9 + $0x7c] sm:$0xf]
      %v3181 = vld [vmem:[%s10] sm:$0x1]
      %v3183 = vperm.slane %v3181, 0
      %v3217 = vunpack.c.l.b16 %v3149
      %v3218 = vunpack.c.l.b16 %v3150
      %v3219 = vunpack.c.l.b16 %v3151
      %v3220 = vunpack.c.l.b16 %v3152
      %v3221 = vunpack.c.l.b16 %v3153
      %v3222 = vunpack.c.l.b16 %v3154
      %v3223 = vunpack.c.l.b16 %v3155
      %v3224 = vunpack.c.l.b16 %v3156
      %v3225 = vunpack.c.l.b16 %v3157
      %v3226 = vunpack.c.l.b16 %v3158
      %v3227 = vunpack.c.l.b16 %v3159
      %v3228 = vunpack.c.l.b16 %v3160
      %v3229 = vunpack.c.l.b16 %v3161
      %v3230 = vunpack.c.l.b16 %v3162
      %v3231 = vunpack.c.l.b16 %v3163
      %v3232 = vunpack.c.l.b16 %v3164
      %v3233 = vunpack.c.l.b16 %v3165
      %v3234 = vunpack.c.l.b16 %v3166
      %v3235 = vunpack.c.l.b16 %v3167
      %v3236 = vunpack.c.l.b16 %v3168
      %v3237 = vunpack.c.l.b16 %v3169
      %v3238 = vunpack.c.l.b16 %v3170
      %v3239 = vunpack.c.l.b16 %v3171
      %v3240 = vunpack.c.l.b16 %v3172
      %v3241 = vunpack.c.l.b16 %v3173
      %v3242 = vunpack.c.l.b16 %v3174
      %v3243 = vunpack.c.l.b16 %v3175
      %v3244 = vunpack.c.l.b16 %v3176
      %v3245 = vunpack.c.l.b16 %v3177
      %v3246 = vunpack.c.l.b16 %v3178
      %v3247 = vunpack.c.l.b16 %v3179
      %v3248 = vunpack.c.l.b16 %v3180
      %v3249 = vpack.c.b16 %v3218, %v3217
      %v3250 = vpack.c.b16 %v3220, %v3219
      %v3251 = vpack.c.b16 %v3222, %v3221
      %v3252 = vpack.c.b16 %v3224, %v3223
      %v3253 = vpack.c.b16 %v3226, %v3225
      %v3254 = vpack.c.b16 %v3228, %v3227
      %v3255 = vpack.c.b16 %v3230, %v3229
      %v3256 = vpack.c.b16 %v3232, %v3231
      %v3257 = vpack.c.b16 %v3234, %v3233
      %v3258 = vpack.c.b16 %v3236, %v3235
      %v3259 = vpack.c.b16 %v3238, %v3237
      %v3260 = vpack.c.b16 %v3240, %v3239
      %v3261 = vpack.c.b16 %v3242, %v3241
      %v3262 = vpack.c.b16 %v3244, %v3243
      %v3263 = vpack.c.b16 %v3246, %v3245
      %v3264 = vpack.c.b16 %v3248, %v3247
      %3281 = vmatpush.bf16.msra.mxu0 %v3256
      %3282 = vmatpush.bf16.msra.mxu0 %v3255
      %3283 = vmatpush.bf16.msra.mxu0 %v3254
      %3284 = vmatpush.bf16.msra.mxu0 %v3253
      %3285 = vmatpush.bf16.msra.mxu0 %v3252
      %3286 = vmatpush.bf16.msra.mxu0 %v3251
      %3287 = vmatpush.bf16.msra.mxu0 %v3250
      %3288 = vmatpush.bf16.msra.mxu0 %v3249
      %3289 = vmatmul.bf16.gmra.mxu0 %v3147
      %v3290 = vpop.f32.mrf.mxu0
      %v3291 = vadd.f32 %v3183, %v3290
      %v3292 = vpop.f32.mrf.mxu0
      %3293 = vdwg.mxu0
      %3294 = vmatpush.bf16.msra.mxu0 %v3264
      %3295 = vmatpush.bf16.msra.mxu0 %v3263
      %3296 = vmatpush.bf16.msra.mxu0 %v3262
      %3297 = vmatpush.bf16.msra.mxu0 %v3261
      %3298 = vmatpush.bf16.msra.mxu0 %v3260
      %3299 = vmatpush.bf16.msra.mxu0 %v3259
      %3300 = vmatpush.bf16.msra.mxu0 %v3258
      %3301 = vmatpush.bf16.msra.mxu0 %v3257
      %3302 = vmatmul.bf16.gmra.mxu0 %v3148
      %v3303 = vpop.f32.mrf.mxu0
      %v3304 = vadd.f32 %v3291, %v3303
      %v3305 = vpop.f32.mrf.mxu0
      %3306 = vdwg.mxu0
      %v3307 = vadd.f32 %v3015, %v3304
      %3308 = vadd.xlane.f32.xlu0 %v3307
      %v3309 = vpop.xlane.xlu0 %3308
      %v3310 = vmul.f32 %v3309, %v2987
      %v3311 = vsub.f32 %v3307, %v3310
      %v3312 = vmul.f32 %v3311, %v3311
      %3313 = vadd.xlane.f32.xlu0 %v3312
      %v3314 = vpop.xlane.xlu0 %3313
      %v3315 = vmul.f32 %v3314, %v2987
      %v3316 = vadd.f32 %v3315, 1e-05
      %v3317 = vrsqrt.pop %v3316
      %v3318 = vmul.f32 %v3317, %v3316
      %v3319 = vmul.f32 %v3318, %v3317
      %v3320 = vmul.f32 0.5, %v3319
      %v3321 = vsub.f32 1.5, %v3320
      %v3322 = vmul.f32 %v3317, %v3321
      %vm3323 = vweird.f32 %v3316
      %vm3324 = vweird.f32 %v3317
      %vm3325 = vmor %vm3323, %vm3324
      %v3326 = vsel %vm3325, %v3317, %v3322
      %v3327 = vmul.f32 %v3311, %v3326
      %v3328 = vld [vmem:[%s11] sm:$0x1]
      %v3330 = vperm.slane %v3328, 0
      %v3332 = vmul.f32 %v3327, %v3330
      %v3333 = vld [vmem:[%s12] sm:$0x1]
      %v3335 = vperm.slane %v3333, 0
      %v3337 = vadd.f32 %v3332, %v3335
      %3338 = vst [vmem:[%s435] sm:$0xff] %v3337
      %p3339 = scmp.lt.s32.totalorder %s24, 1
      %s3340 = scalar_select %p3339, %s24, 1
      %s3341 = smul.addr %s3340, 8
      %s3342 = scalar_lea.vmem %s13, %s3341
      // Predicated region
      $region73: #{decoder_block_pallas.1} parent=71 // pred_check
        %p3343 = pneg %p320
      $region74: #{decoder_block_pallas.1} parent=71 // pred_check_branch
        %3345 = sbr.rel (%p3343) target = $region76
      $region75: #{decoder_block_pallas.1} parent=71 // pred_region
        _
      $region76: #{decoder_block_pallas.1} parent=71 // pred_fallthru
        _
    $region72: #{decoder_block_pallas.1} parent=5 // pred_fallthru
      _
    %p3346 = scmp.le.s32.totalorder 2, %s19
    // Predicated region
    $region77: #{decoder_block_pallas.1} parent=5 // pred_check
      %p3347 = pneg %p3346
    $region78: #{decoder_block_pallas.1} parent=5 // pred_check_branch
      %3349 = sbr.rel (%p3347) target = $region80
    $region79: #{decoder_block_pallas.1} parent=5 // pred_region
      %s3350 = ssub.s32 %s19, 2
      // Predicated region
      $region81: #{decoder_block_pallas.1} parent=79 // pred_check
        %p3351 = pneg %p326
      $region82: #{decoder_block_pallas.1} parent=79 // pred_check_branch
        %3353 = sbr.rel (%p3351) target = $region84
      $region83: #{decoder_block_pallas.1} parent=79 // pred_region
        %p3354 = scmp.lt.s32.totalorder %s25, 1
        %s3355 = scalar_select %p3354, %s25, 1
        %s3356 = smul.addr %s3355, 8
        %s3357 = scalar_lea.vmem %s13, %s3356
      $region84: #{decoder_block_pallas.1} parent=79 // pred_fallthru
        _
    $region80: #{decoder_block_pallas.1} parent=5 // pred_fallthru
      _
  $region6: #{decoder_block_pallas.1} parent=0 // loop_footer
    %s23 = sadd.s32 1, %s19
  $region7: #{decoder_block_pallas.1} parent=0 // loop_footer_branch
    %18 = sbr.rel target = $region3
  $region8: #{decoder_block_pallas.1} parent=0 // loop_exit
    _

</llo_original>
